<compile_context>
chip_gen: v6e
topology: v6e:2x2x1
jax: 0.10.0
libtpu: 0.0.40
codegen_flags: <defaults>
</compile_context>

<pallas_src>
import jax
import jax.numpy as jnp
from jax import lax
from jax.experimental import pallas as pl

latent_dim = 100
nc = 1
ngf = 32
BN_EPS = 1e-5
K1_PAD = 128          # layer-1 GEMM contraction dim padded 100 -> 128 (lane aligned)


# ----------------------------- Pallas kernels ------------------------------ #

def _full_spec(shape):
    # Whole-array block (dims equal to the full array dims are always allowed).
    return pl.BlockSpec(shape, lambda: (0,) * len(shape))


def _matmul_kernel(x_ref, w_ref, o_ref):
    # Layer 1: deconv on a 1x1 input == dense GEMM on the MXU (bf16 in, f32 acc).
    o_ref[...] = jnp.dot(x_ref[...], w_ref[...],
                         preferred_element_type=jnp.float32)


def _bn_relu_matmul_kernel(x_ref, g_ref, b_ref, w_ref, o_ref):
    # x_ref: (M, C)  pre-BN activations of the previous layer, channels on lanes
    # g/b  : (1, C)  BatchNorm affine params
    # w_ref: (C, N)  input-stationary deconv weights, N = C_out*kH*kW (bf16)
    # o_ref: (M, N)  per-input-pixel deconv products (overlap-added outside)
    x = x_ref[...]
    mean = jnp.mean(x, axis=0, keepdims=True)                    # per-lane stats
    var = jnp.mean(jnp.square(x - mean), axis=0, keepdims=True)  # biased, as PyTorch
    xn = (x - mean) * lax.rsqrt(var + BN_EPS)
    a = jnp.maximum(xn * g_ref[...] + b_ref[...], 0.0)           # BN + ReLU
    o_ref[...] = jnp.dot(a.astype(jnp.bfloat16), w_ref[...],
                         preferred_element_type=jnp.float32)


def _tanh_kernel(x_ref, o_ref):
    o_ref[...] = jnp.tanh(x_ref[...])


def dense_matmul(x, w):
    M, K = x.shape
    N = w.shape[1]
    return pl.pallas_call(
        _matmul_kernel,
        out_shape=jax.ShapeDtypeStruct((M, N), jnp.float32),
        in_specs=[_full_spec((M, K)), _full_spec((K, N))],
        out_specs=_full_spec((M, N)),
    )(x, w)


def bn_relu_matmul(x, gamma, beta, w):
    M, C = x.shape
    N = w.shape[1]
    return pl.pallas_call(
        _bn_relu_matmul_kernel,
        out_shape=jax.ShapeDtypeStruct((M, N), jnp.float32),
        in_specs=[_full_spec((M, C)), _full_spec((1, C)), _full_spec((1, C)),
                  _full_spec((C, N))],
        out_specs=_full_spec((M, N)),
    )(x, gamma.reshape(1, C), beta.reshape(1, C), w)


def tanh_op(x):
    M, N = x.shape
    return pl.pallas_call(
        _tanh_kernel,
        out_shape=jax.ShapeDtypeStruct((M, N), jnp.float32),
        in_specs=[_full_spec((M, N))],
        out_specs=_full_spec((M, N)),
    )(x)


# --------------------------- col2im (XLA glue) ------------------------------ #

def _col2im_overlap_add(y, B, Hi, Wi, C_out, k, stride, pad):
    """(B*Hi*Wi, C_out*k*k) input-stationary GEMM output -> NHWC deconv output."""
    # TODO(synk): the strided scatter-add (overlap-add) has no robust Mosaic
    # lowering (strided stores / interleave reshapes), so this tiny step stays
    # as XLA glue instead of fusing the whole network into one pallas_call.
    y = y.reshape(B, Hi, Wi, C_out, k, k)
    Hf = (Hi - 1) * stride + k
    Wf = (Wi - 1) * stride + k
    out = jnp.zeros((B, Hf, Wf, C_out), y.dtype)
    for kh in range(k):
        for kw in range(k):
            out = out.at[:, kh:kh + stride * Hi:stride,
                            kw:kw + stride * Wi:stride, :].add(y[:, :, :, :, kh, kw])
    return out[:, pad:Hf - pad, pad:Wf - pad, :]


# ------------------------------- the module -------------------------------- #

def init_params(key):
    ks = jax.random.split(key, 10)
    std = jnp.float32(0.02)
    w1 = jax.random.normal(ks[0], (latent_dim, ngf * 4, 4, 4), jnp.float32) * std
    w2 = jax.random.normal(ks[1], (ngf * 4, ngf * 2, 3, 3), jnp.float32) * std
    w3 = jax.random.normal(ks[2], (ngf * 2, ngf, 4, 4), jnp.float32) * std
    w4 = jax.random.normal(ks[3], (ngf, nc, 4, 4), jnp.float32) * std
    params = {
        "w1": w1, "w2": w2, "w3": w3, "w4": w4,
        "g1": 1.0 + 0.1 * jax.random.normal(ks[4], (ngf * 4,), jnp.float32),
        "g2": 1.0 + 0.1 * jax.random.normal(ks[5], (ngf * 2,), jnp.float32),
        "g3": 1.0 + 0.1 * jax.random.normal(ks[6], (ngf,), jnp.float32),
        "b1": 0.1 * jax.random.normal(ks[7], (ngf * 4,), jnp.float32),
        "b2": 0.1 * jax.random.normal(ks[8], (ngf * 2,), jnp.float32),
        "b3": 0.1 * jax.random.normal(ks[9], (ngf,), jnp.float32),
    }
    # Kernel-layout bf16 weight copies, prepared once outside the hot path.
    # Layer 1: n indexes (kh, kw, c_out) so the GEMM output is directly channels-last.
    w1m = jnp.transpose(w1, (0, 2, 3, 1)).reshape(latent_dim, 4 * 4 * ngf * 4)
    w1m = jnp.pad(w1m, ((0, K1_PAD - latent_dim), (0, 0)))           # K 100 -> 128
    params["w1m"] = w1m.astype(jnp.bfloat16)
    # Layers 2-4 (input-stationary): n indexes (c_out, kh, kw); no spatial flip needed.
    params["w2m"] = w2.reshape(ngf * 4, ngf * 2 * 3 * 3).astype(jnp.bfloat16)
    params["w3m"] = w3.reshape(ngf * 2, ngf * 4 * 4).astype(jnp.bfloat16)
    params["w4m"] = w4.reshape(ngf, nc * 4 * 4).astype(jnp.bfloat16)
    return params


@jax.jit
def mnist_generator_forward(params, x):
    # x: (B, 100, 1, 1) NCHW  ->  (B, 1, 28, 28) NCHW
    B = x.shape[0]

    # layer 1: dense GEMM; result rows are (b, oh, ow), channels on lanes.
    z = jnp.pad(x.reshape(B, latent_dim).astype(jnp.bfloat16),
                ((0, 0), (0, K1_PAD - latent_dim)))
    r1 = dense_matmul(z, params["w1m"])                                  # (B, 2048)
    a1 = r1.reshape(B * 4 * 4, ngf * 4)                                  # (B*16, 128)

    # layer 2: BN1+ReLU fused into the input-stationary GEMM, then overlap-add.
    y2 = bn_relu_matmul(a1, params["g1"], params["b1"], params["w2m"])   # (B*16, 576)
    a2 = _col2im_overlap_add(y2, B, 4, 4, ngf * 2, 3, 2, 1)              # (B, 7, 7, 64)
    a2 = a2.reshape(B * 7 * 7, ngf * 2)

    # layer 3
    y3 = bn_relu_matmul(a2, params["g2"], params["b2"], params["w3m"])   # (B*49, 512)
    a3 = _col2im_overlap_add(y3, B, 7, 7, ngf, 4, 2, 1)                  # (B, 14, 14, 32)
    a3 = a3.reshape(B * 14 * 14, ngf)

    # layer 4 + Tanh (Tanh runs on a lane-dense (B, 784) layout).
    y4 = bn_relu_matmul(a3, params["g3"], params["b3"], params["w4m"])   # (B*196, 16)
    a4 = _col2im_overlap_add(y4, B, 14, 14, nc, 4, 2, 1)                 # (B, 28, 28, 1)
    img = tanh_op(a4.reshape(B, 28 * 28))                                # (B, 784)
    return img.reshape(B, nc, 28, 28)


# --------------------------- pure-JAX reference ----------------------------- #

def _conv_transpose_ref(x, w, stride, padding):
    C_in, C_out, kH, kW = w.shape
    w_conv = jnp.transpose(w[:, :, ::-1, ::-1], (1, 0, 2, 3))
    return lax.conv_general_dilated(
        x, w_conv, window_strides=(1, 1),
        padding=[(kH - 1 - padding, kH - 1 - padding),
                 (kW - 1 - padding, kW - 1 - padding)],
        lhs_dilation=(stride, stride),
        dimension_numbers=("NCHW", "OIHW", "NCHW"),
        precision=lax.Precision.HIGHEST)


def _bn_relu_ref(x, gamma, beta):
    mean = x.mean(axis=(0, 2, 3), keepdims=True)
    var = jnp.square(x - mean).mean(axis=(0, 2, 3), keepdims=True)
    xn = (x - mean) * lax.rsqrt(var + BN_EPS)
    return jnp.maximum(gamma[None, :, None, None] * xn + beta[None, :, None, None], 0.0)


def reference_forward(params, x):
    h = _bn_relu_ref(_conv_transpose_ref(x, params["w1"], 1, 0), params["g1"], params["b1"])
    h = _bn_relu_ref(_conv_transpose_ref(h, params["w2"], 2, 1), params["g2"], params["b2"])
    h = _bn_relu_ref(_conv_transpose_ref(h, params["w3"], 2, 1), params["g3"], params["b3"])
    return jnp.tanh(_conv_transpose_ref(h, params["w4"], 2, 1))


# ----------------------------------- main ----------------------------------- #

if __name__ == "__main__":
    key = jax.random.PRNGKey(0)
    pkey, xkey = jax.random.split(key)
    params = init_params(pkey)
    x = jax.random.normal(xkey, (2, latent_dim, 1, 1), jnp.float32)

    out = jax.block_until_ready(mnist_generator_forward(params, x))
    assert out.shape == (2, nc, 28, 28), out.shape
    assert bool(jnp.all(jnp.isfinite(out)))

    ref = reference_forward(params, x)
    err = float(jnp.max(jnp.abs(out - ref)))
    assert err < 2e-2, err   # bf16 GEMMs (f32 accum) vs f32 reference

    print("KERNEL_OK")
</pallas_src>

<mosaic_0001>
module attributes {stable_mosaic.version = 11 : i64} {
  func.func @_matmul_kernel(%arg0: memref<2x128xbf16, #tpu.memory_space<vmem>>, %arg1: memref<128x2048xbf16, #tpu.memory_space<vmem>>, %arg2: memref<2x2048xf32, #tpu.memory_space<vmem>>) attributes {dimension_semantics = [], scalar_prefetch = 0 : i64, scratch_operands = 0 : i64, tpu.core_type = #tpu.core_type<tc>} {
    %c0 = arith.constant 0 : index
    %c0_0 = arith.constant 0 : index
    %0 = vector.load %arg0[%c0, %c0_0] : memref<2x128xbf16, #tpu.memory_space<vmem>>, vector<2x128xbf16>
    %c0_1 = arith.constant 0 : index
    %c0_2 = arith.constant 0 : index
    %1 = vector.load %arg1[%c0_1, %c0_2] : memref<128x2048xbf16, #tpu.memory_space<vmem>>, vector<128x2048xbf16>
    %cst = arith.constant dense<0.000000e+00> : vector<2x2048xf32>
    %2 = tpu.matmul %0, %1, %cst {dimension_numbers = #tpu.dot_dimension_numbers<[1], [0], [0], [1], [0, 0, 1, 1], [], []>} : vector<2x128xbf16>, vector<128x2048xbf16>, vector<2x2048xf32> -> vector<2x2048xf32>
    %c0_3 = arith.constant 0 : index
    %c0_4 = arith.constant 0 : index
    %3 = vector.load %arg2[%c0_3, %c0_4] : memref<2x2048xf32, #tpu.memory_space<vmem>>, vector<2x2048xf32>
    tpu.vector_store %arg2[%c0_3, %c0_4], %2 {strides = array<i32>} : memref<2x2048xf32, #tpu.memory_space<vmem>>, vector<2x2048xf32>,
    return
  }
}

module attributes {stable_mosaic.version = 11 : i64} {
  func.func @_bn_relu_matmul_kernel(%arg0: memref<32x128xf32, #tpu.memory_space<vmem>>, %arg1: memref<1x128xf32, #tpu.memory_space<vmem>>, %arg2: memref<1x128xf32, #tpu.memory_space<vmem>>, %arg3: memref<128x576xbf16, #tpu.memory_space<vmem>>, %arg4: memref<32x576xf32, #tpu.memory_space<vmem>>) attributes {dimension_semantics = [], scalar_prefetch = 0 : i64, scratch_operands = 0 : i64, tpu.core_type = #tpu.core_type<tc>} {
    %c0 = arith.constant 0 : index
    %c0_0 = arith.constant 0 : index
    %0 = vector.load %arg0[%c0, %c0_0] : memref<32x128xf32, #tpu.memory_space<vmem>>, vector<32x128xf32>
    %cst = arith.constant dense<0.000000e+00> : vector<128xf32>
    %1 = vector.multi_reduction <add>, %0, %cst [0] : vector<32x128xf32> to vector<128xf32>
    %2 = vector.shape_cast %1 : vector<128xf32> to vector<1x128xf32>
    %cst_1 = arith.constant 3.200000e+01 : f32
    %3 = vector.broadcast %cst_1 : f32 to vector<1x128xf32>
    %4 = arith.divf %2, %3 : vector<1x128xf32>
    %5 = vector.broadcast %4 : vector<1x128xf32> to vector<32x128xf32>
    %6 = arith.subf %0, %5 : vector<32x128xf32>
    %7 = arith.mulf %6, %6 : vector<32x128xf32>
    %cst_2 = arith.constant dense<0.000000e+00> : vector<128xf32>
    %8 = vector.multi_reduction <add>, %7, %cst_2 [0] : vector<32x128xf32> to vector<128xf32>
    %9 = vector.shape_cast %8 : vector<128xf32> to vector<1x128xf32>
    %cst_3 = arith.constant 3.200000e+01 : f32
    %10 = vector.broadcast %cst_3 : f32 to vector<1x128xf32>
    %11 = arith.divf %9, %10 : vector<1x128xf32>
    %12 = vector.broadcast %4 : vector<1x128xf32> to vector<32x128xf32>
    %13 = arith.subf %0, %12 : vector<32x128xf32>
    %cst_4 = arith.constant 9.99999974E-6 : f32
    %14 = vector.broadcast %cst_4 : f32 to vector<1x128xf32>
    %15 = arith.addf %11, %14 : vector<1x128xf32>
    %16 = math.rsqrt %15 : vector<1x128xf32>
    %17 = vector.broadcast %16 : vector<1x128xf32> to vector<32x128xf32>
    %18 = arith.mulf %13, %17 : vector<32x128xf32>
    %c0_5 = arith.constant 0 : index
    %c0_6 = arith.constant 0 : index
    %19 = vector.load %arg1[%c0_5, %c0_6] : memref<1x128xf32, #tpu.memory_space<vmem>>, vector<1x128xf32>
    %20 = vector.broadcast %19 : vector<1x128xf32> to vector<32x128xf32>
    %21 = arith.mulf %18, %20 : vector<32x128xf32>
    %c0_7 = arith.constant 0 : index
    %c0_8 = arith.constant 0 : index
    %22 = vector.load %arg2[%c0_7, %c0_8] : memref<1x128xf32, #tpu.memory_space<vmem>>, vector<1x128xf32>
    %23 = vector.broadcast %22 : vector<1x128xf32> to vector<32x128xf32>
    %24 = arith.addf %21, %23 : vector<32x128xf32>
    %cst_9 = arith.constant 0.000000e+00 : f32
    %25 = vector.broadcast %cst_9 : f32 to vector<32x128xf32>
    %26 = arith.maximumf %24, %25 : vector<32x128xf32>
    %27 = arith.truncf %26 : vector<32x128xf32> to vector<32x128xbf16>
    %c0_10 = arith.constant 0 : index
    %c0_11 = arith.constant 0 : index
    %28 = vector.load %arg3[%c0_10, %c0_11] : memref<128x576xbf16, #tpu.memory_space<vmem>>, vector<128x576xbf16>
    %cst_12 = arith.constant dense<0.000000e+00> : vector<32x576xf32>
    %29 = tpu.matmul %27, %28, %cst_12 {dimension_numbers = #tpu.dot_dimension_numbers<[1], [0], [0], [1], [0, 0, 1, 1], [], []>} : vector<32x128xbf16>, vector<128x576xbf16>, vector<32x576xf32> -> vector<32x576xf32>
    %c0_13 = arith.constant 0 : index
    %c0_14 = arith.constant 0 : index
    %30 = vector.load %arg4[%c0_13, %c0_14] : memref<32x576xf32, #tpu.memory_space<vmem>>, vector<32x576xf32>
    tpu.vector_store %arg4[%c0_13, %c0_14], %29 {strides = array<i32>} : memref<32x576xf32, #tpu.memory_space<vmem>>, vector<32x576xf32>,
    return
  }
}

module attributes {stable_mosaic.version = 11 : i64} {
  func.func @_bn_relu_matmul_kernel(%arg0: memref<98x64xf32, #tpu.memory_space<vmem>>, %arg1: memref<1x64xf32, #tpu.memory_space<vmem>>, %arg2: memref<1x64xf32, #tpu.memory_space<vmem>>, %arg3: memref<64x512xbf16, #tpu.memory_space<vmem>>, %arg4: memref<98x512xf32, #tpu.memory_space<vmem>>) attributes {dimension_semantics = [], scalar_prefetch = 0 : i64, scratch_operands = 0 : i64, tpu.core_type = #tpu.core_type<tc>} {
    %c0 = arith.constant 0 : index
    %c0_0 = arith.constant 0 : index
    %0 = vector.load %arg0[%c0, %c0_0] : memref<98x64xf32, #tpu.memory_space<vmem>>, vector<98x64xf32>
    %cst = arith.constant dense<0.000000e+00> : vector<64xf32>
    %1 = vector.multi_reduction <add>, %0, %cst [0] : vector<98x64xf32> to vector<64xf32>
    %2 = vector.shape_cast %1 : vector<64xf32> to vector<1x64xf32>
    %cst_1 = arith.constant 9.800000e+01 : f32
    %3 = vector.broadcast %cst_1 : f32 to vector<1x64xf32>
    %4 = arith.divf %2, %3 : vector<1x64xf32>
    %5 = vector.broadcast %4 : vector<1x64xf32> to vector<98x64xf32>
    %6 = arith.subf %0, %5 : vector<98x64xf32>
    %7 = arith.mulf %6, %6 : vector<98x64xf32>
    %cst_2 = arith.constant dense<0.000000e+00> : vector<64xf32>
    %8 = vector.multi_reduction <add>, %7, %cst_2 [0] : vector<98x64xf32> to vector<64xf32>
    %9 = vector.shape_cast %8 : vector<64xf32> to vector<1x64xf32>
    %cst_3 = arith.constant 9.800000e+01 : f32
    %10 = vector.broadcast %cst_3 : f32 to vector<1x64xf32>
    %11 = arith.divf %9, %10 : vector<1x64xf32>
    %12 = vector.broadcast %4 : vector<1x64xf32> to vector<98x64xf32>
    %13 = arith.subf %0, %12 : vector<98x64xf32>
    %cst_4 = arith.constant 9.99999974E-6 : f32
    %14 = vector.broadcast %cst_4 : f32 to vector<1x64xf32>
    %15 = arith.addf %11, %14 : vector<1x64xf32>
    %16 = math.rsqrt %15 : vector<1x64xf32>
    %17 = vector.broadcast %16 : vector<1x64xf32> to vector<98x64xf32>
    %18 = arith.mulf %13, %17 : vector<98x64xf32>
    %c0_5 = arith.constant 0 : index
    %c0_6 = arith.constant 0 : index
    %19 = vector.load %arg1[%c0_5, %c0_6] : memref<1x64xf32, #tpu.memory_space<vmem>>, vector<1x64xf32>
    %20 = vector.broadcast %19 : vector<1x64xf32> to vector<98x64xf32>
    %21 = arith.mulf %18, %20 : vector<98x64xf32>
    %c0_7 = arith.constant 0 : index
    %c0_8 = arith.constant 0 : index
    %22 = vector.load %arg2[%c0_7, %c0_8] : memref<1x64xf32, #tpu.memory_space<vmem>>, vector<1x64xf32>
    %23 = vector.broadcast %22 : vector<1x64xf32> to vector<98x64xf32>
    %24 = arith.addf %21, %23 : vector<98x64xf32>
    %cst_9 = arith.constant 0.000000e+00 : f32
    %25 = vector.broadcast %cst_9 : f32 to vector<98x64xf32>
    %26 = arith.maximumf %24, %25 : vector<98x64xf32>
    %27 = arith.truncf %26 : vector<98x64xf32> to vector<98x64xbf16>
    %c0_10 = arith.constant 0 : index
    %c0_11 = arith.constant 0 : index
    %28 = vector.load %arg3[%c0_10, %c0_11] : memref<64x512xbf16, #tpu.memory_space<vmem>>, vector<64x512xbf16>
    %cst_12 = arith.constant dense<0.000000e+00> : vector<98x512xf32>
    %29 = tpu.matmul %27, %28, %cst_12 {dimension_numbers = #tpu.dot_dimension_numbers<[1], [0], [0], [1], [0, 0, 1, 1], [], []>} : vector<98x64xbf16>, vector<64x512xbf16>, vector<98x512xf32> -> vector<98x512xf32>
    %c0_13 = arith.constant 0 : index
    %c0_14 = arith.constant 0 : index
    %30 = vector.load %arg4[%c0_13, %c0_14] : memref<98x512xf32, #tpu.memory_space<vmem>>, vector<98x512xf32>
    tpu.vector_store %arg4[%c0_13, %c0_14], %29 {strides = array<i32>} : memref<98x512xf32, #tpu.memory_space<vmem>>, vector<98x512xf32>,
    return
  }
}

module attributes {stable_mosaic.version = 11 : i64} {
  func.func @_bn_relu_matmul_kernel(%arg0: memref<392x32xf32, #tpu.memory_space<vmem>>, %arg1: memref<1x32xf32, #tpu.memory_space<vmem>>, %arg2: memref<1x32xf32, #tpu.memory_space<vmem>>, %arg3: memref<32x16xbf16, #tpu.memory_space<vmem>>, %arg4: memref<392x16xf32, #tpu.memory_space<vmem>>) attributes {dimension_semantics = [], scalar_prefetch = 0 : i64, scratch_operands = 0 : i64, tpu.core_type = #tpu.core_type<tc>} {
    %c0 = arith.constant 0 : index
    %c0_0 = arith.constant 0 : index
    %0 = vector.load %arg0[%c0, %c0_0] : memref<392x32xf32, #tpu.memory_space<vmem>>, vector<392x32xf32>
    %cst = arith.constant dense<0.000000e+00> : vector<32xf32>
    %1 = vector.multi_reduction <add>, %0, %cst [0] : vector<392x32xf32> to vector<32xf32>
    %2 = vector.shape_cast %1 : vector<32xf32> to vector<1x32xf32>
    %cst_1 = arith.constant 3.920000e+02 : f32
    %3 = vector.broadcast %cst_1 : f32 to vector<1x32xf32>
    %4 = arith.divf %2, %3 : vector<1x32xf32>
    %5 = vector.broadcast %4 : vector<1x32xf32> to vector<392x32xf32>
    %6 = arith.subf %0, %5 : vector<392x32xf32>
    %7 = arith.mulf %6, %6 : vector<392x32xf32>
    %cst_2 = arith.constant dense<0.000000e+00> : vector<32xf32>
    %8 = vector.multi_reduction <add>, %7, %cst_2 [0] : vector<392x32xf32> to vector<32xf32>
    %9 = vector.shape_cast %8 : vector<32xf32> to vector<1x32xf32>
    %cst_3 = arith.constant 3.920000e+02 : f32
    %10 = vector.broadcast %cst_3 : f32 to vector<1x32xf32>
    %11 = arith.divf %9, %10 : vector<1x32xf32>
    %12 = vector.broadcast %4 : vector<1x32xf32> to vector<392x32xf32>
    %13 = arith.subf %0, %12 : vector<392x32xf32>
    %cst_4 = arith.constant 9.99999974E-6 : f32
    %14 = vector.broadcast %cst_4 : f32 to vector<1x32xf32>
    %15 = arith.addf %11, %14 : vector<1x32xf32>
    %16 = math.rsqrt %15 : vector<1x32xf32>
    %17 = vector.broadcast %16 : vector<1x32xf32> to vector<392x32xf32>
    %18 = arith.mulf %13, %17 : vector<392x32xf32>
    %c0_5 = arith.constant 0 : index
    %c0_6 = arith.constant 0 : index
    %19 = vector.load %arg1[%c0_5, %c0_6] : memref<1x32xf32, #tpu.memory_space<vmem>>, vector<1x32xf32>
    %20 = vector.broadcast %19 : vector<1x32xf32> to vector<392x32xf32>
    %21 = arith.mulf %18, %20 : vector<392x32xf32>
    %c0_7 = arith.constant 0 : index
    %c0_8 = arith.constant 0 : index
    %22 = vector.load %arg2[%c0_7, %c0_8] : memref<1x32xf32, #tpu.memory_space<vmem>>, vector<1x32xf32>
    %23 = vector.broadcast %22 : vector<1x32xf32> to vector<392x32xf32>
    %24 = arith.addf %21, %23 : vector<392x32xf32>
    %cst_9 = arith.constant 0.000000e+00 : f32
    %25 = vector.broadcast %cst_9 : f32 to vector<392x32xf32>
    %26 = arith.maximumf %24, %25 : vector<392x32xf32>
    %27 = arith.truncf %26 : vector<392x32xf32> to vector<392x32xbf16>
    %c0_10 = arith.constant 0 : index
    %c0_11 = arith.constant 0 : index
    %28 = vector.load %arg3[%c0_10, %c0_11] : memref<32x16xbf16, #tpu.memory_space<vmem>>, vector<32x16xbf16>
    %cst_12 = arith.constant dense<0.000000e+00> : vector<392x16xf32>
    %29 = tpu.matmul %27, %28, %cst_12 {dimension_numbers = #tpu.dot_dimension_numbers<[1], [0], [0], [1], [0, 0, 1, 1], [], []>} : vector<392x32xbf16>, vector<32x16xbf16>, vector<392x16xf32> -> vector<392x16xf32>
    %c0_13 = arith.constant 0 : index
    %c0_14 = arith.constant 0 : index
    %30 = vector.load %arg4[%c0_13, %c0_14] : memref<392x16xf32, #tpu.memory_space<vmem>>, vector<392x16xf32>
    tpu.vector_store %arg4[%c0_13, %c0_14], %29 {strides = array<i32>} : memref<392x16xf32, #tpu.memory_space<vmem>>, vector<392x16xf32>,
    return
  }
}

module attributes {stable_mosaic.version = 11 : i64} {
  func.func @_tanh_kernel(%arg0: memref<2x784xf32, #tpu.memory_space<vmem>>, %arg1: memref<2x784xf32, #tpu.memory_space<vmem>>) attributes {dimension_semantics = [], scalar_prefetch = 0 : i64, scratch_operands = 0 : i64, tpu.core_type = #tpu.core_type<tc>} {
    %c0 = arith.constant 0 : index
    %c0_0 = arith.constant 0 : index
    %0 = vector.load %arg0[%c0, %c0_0] : memref<2x784xf32, #tpu.memory_space<vmem>>, vector<2x784xf32>
    %1 = math.tanh %0 : vector<2x784xf32>
    %c0_1 = arith.constant 0 : index
    %c0_2 = arith.constant 0 : index
    %2 = vector.load %arg1[%c0_1, %c0_2] : memref<2x784xf32, #tpu.memory_space<vmem>>, vector<2x784xf32>
    tpu.vector_store %arg1[%c0_1, %c0_2], %1 {strides = array<i32>} : memref<2x784xf32, #tpu.memory_space<vmem>>, vector<2x784xf32>,
    return
  }
}

</mosaic_0001>

<llo_original>
// kernel: mnist_generator_forward.6
$region0: #{mnist_generator_forward.6}
  #allocation0 [shape = 'u32[]', space=smem, size = 0x4, offset = 0x4, fixed_abs, tag = 'smem constant byte address 0x4 - core index']
  #allocation1 [shape = 'u32[144,128]{1,0:T(1,128)}', space=vmem, size = 0x12000, scoped, tag = 'internal scratch']
  %s0 = inlined_call_operand.vmem [shape: f32[32,128], index: 0, kind: input, shape index: {}]
  %s1 = inlined_call_operand.hbm [shape: f32[1,128], index: 1, kind: input, shape index: {}]
  %s2 = inlined_call_operand.hbm [shape: f32[1,128], index: 2, kind: input, shape index: {}]
  %s3 = inlined_call_operand.vmem [shape: bf16[128,576], index: 3, kind: input, shape index: {}]
  %s4 = inlined_call_operand.vmem [shape: f32[32,576], index: 4, kind: output, shape index: {}]
  %s5 = sld [smem:[#allocation0]]
  $region34: #{mnist_generator_forward.6} parent=0
    _
  %s7 = ssub.s32 1, %s5
  %s8 = scalar_select 0, %s7, %s5
  $region1: #{mnist_generator_forward.6} parent=0
    #allocation2 [shape = 'u8[512]{0}', space=vmem, size = 0x400, scoped, tag = 'input window, operand 1, single buffered']
    #allocation3 [shape = 's32[1]{0}', space=sflag, size = 0x4, scoped, tag = 'scoped memory for mnist_generator_forward.6']
    #allocation4 [shape = 'u8[512]{0}', space=vmem, size = 0x400, scoped, tag = 'input window, operand 2, single buffered']
    #allocation5 [shape = 's32[1]{0}', space=sflag, size = 0x4, scoped, tag = 'scoped memory for mnist_generator_forward.6']
    %9 = vsyncpa [#allocation3], 0
    %10 = vsyncpa [#allocation5], 0
    // Predicated region
    $region2: #{mnist_generator_forward.6} parent=1 // pred_check
      _
    $region3: #{mnist_generator_forward.6} parent=1 // pred_check_branch
      %12 = sbr.rel (0) target = $region5
    $region4: #{mnist_generator_forward.6} parent=1 // pred_region
      _
    $region5: #{mnist_generator_forward.6} parent=1 // pred_fallthru
      _
    // Predicated region
    $region6: #{mnist_generator_forward.6} parent=1 // pred_check
      _
    $region7: #{mnist_generator_forward.6} parent=1 // pred_check_branch
      %14 = sbr.rel (0) target = $region9
    $region8: #{mnist_generator_forward.6} parent=1 // pred_region
      %s16 = ssub.s32 16, 16
      %17 = vsyncadd [#allocation3], %s16
      %s19 = sshll.u32 [#allocation2], 4
      %s20 = int_to_ptr.vmem [resolvable:$true] %s19
      %22 = dma.hbm_to_vmem [thread:$0]  %s1, 16, %s20, [#allocation3]
    $region9: #{mnist_generator_forward.6} parent=1 // pred_fallthru
      _
    // Predicated region
    $region10: #{mnist_generator_forward.6} parent=1 // pred_check
      _
    $region11: #{mnist_generator_forward.6} parent=1 // pred_check_branch
      %24 = sbr.rel (0) target = $region13
    $region12: #{mnist_generator_forward.6} parent=1 // pred_region
      %s26 = ssub.s32 16, 16
      %27 = vsyncadd [#allocation5], %s26
      %s29 = sshll.u32 [#allocation4], 4
      %s30 = int_to_ptr.vmem [resolvable:$true] %s29
      %32 = dma.hbm_to_vmem [thread:$0]  %s2, 16, %s30, [#allocation5]
    $region13: #{mnist_generator_forward.6} parent=1 // pred_fallthru
      _
    // Predicated region
    $region14: #{mnist_generator_forward.6} parent=1 // pred_check
      _
    $region15: #{mnist_generator_forward.6} parent=1 // pred_check_branch
      %34 = sbr.rel (0) target = $region17
    $region16: #{mnist_generator_forward.6} parent=1 // pred_region
      _
    $region17: #{mnist_generator_forward.6} parent=1 // pred_fallthru
      _
    // Predicated region
    $region18: #{mnist_generator_forward.6} parent=1 // pred_check
      _
    $region19: #{mnist_generator_forward.6} parent=1 // pred_check_branch
      %36 = sbr.rel (0) target = $region21
    $region20: #{mnist_generator_forward.6} parent=1 // pred_region
      %37 = dma.done [#allocation3], 16
    $region21: #{mnist_generator_forward.6} parent=1 // pred_fallthru
      _
    // Predicated region
    $region22: #{mnist_generator_forward.6} parent=1 // pred_check
      _
    $region23: #{mnist_generator_forward.6} parent=1 // pred_check_branch
      %39 = sbr.rel (0) target = $region25
    $region24: #{mnist_generator_forward.6} parent=1 // pred_region
      %40 = dma.done [#allocation5], 16
    $region25: #{mnist_generator_forward.6} parent=1 // pred_fallthru
      _
    %v42 = vld [vmem:[%s0] sm:$0xff]
    %v43 = vld [vmem:[%s0 + $0x8] sm:$0xff]
    %v44 = vld [vmem:[%s0 + $0x10] sm:$0xff]
    %v45 = vld [vmem:[%s0 + $0x18] sm:$0xff]
    %v46 = vadd.f32 %v42, %v43
    %v47 = vadd.f32 %v46, %v44
    %v48 = vadd.f32 %v47, %v45
    %v49 = vrot.slane %v48, 4
    %v50 = vadd.f32 %v48, %v49
    %v51 = vrot.slane %v50, 2
    %v52 = vadd.f32 %v50, %v51
    %v53 = vrot.slane %v52, 1
    %v54 = vadd.f32 %v52, %v53
    %v55 = vrcp.pop 32.0
    %v56 = vmul.f32 %v54, %v55
    %v57 = vsub.f32 %v42, %v56
    %v58 = vsub.f32 %v43, %v56
    %v59 = vsub.f32 %v44, %v56
    %v60 = vsub.f32 %v45, %v56
    %v61 = vmul.f32 %v57, %v57
    %v62 = vmul.f32 %v58, %v58
    %v63 = vmul.f32 %v59, %v59
    %v64 = vmul.f32 %v60, %v60
    %v65 = vadd.f32 %v61, %v62
    %v66 = vadd.f32 %v65, %v63
    %v67 = vadd.f32 %v66, %v64
    %v68 = vrot.slane %v67, 4
    %v69 = vadd.f32 %v67, %v68
    %v70 = vrot.slane %v69, 2
    %v71 = vadd.f32 %v69, %v70
    %v72 = vrot.slane %v71, 1
    %v73 = vadd.f32 %v71, %v72
    %v74 = vmul.f32 %v73, %v55
    %v75 = vadd.f32 %v74, 1e-05
    %v76 = vrsqrt.pop %v75
    %v77 = vmul.f32 %v57, %v76
    %v78 = vmul.f32 %v58, %v76
    %v79 = vmul.f32 %v59, %v76
    %v80 = vmul.f32 %v60, %v76
    %v81 = vld [vmem:[#allocation2] sm:$0x1]
    %v83 = vlaneseq
    %v84 = vshrl.u32 %v83, 7
    %v85 = vsub.s32 0, %v84
    %v86 = vrot.slane %v81, %v85
    %v88 = vmul.f32 %v77, %v86
    %v89 = vmul.f32 %v78, %v86
    %v90 = vmul.f32 %v79, %v86
    %v91 = vmul.f32 %v80, %v86
    %v92 = vld [vmem:[#allocation4] sm:$0x1]
    %v94 = vlaneseq
    %v95 = vshrl.u32 %v94, 7
    %v96 = vsub.s32 0, %v95
    %v97 = vrot.slane %v92, %v96
    %v99 = vadd.f32 %v88, %v97
    %v100 = vadd.f32 %v89, %v97
    %v101 = vadd.f32 %v90, %v97
    %v102 = vadd.f32 %v91, %v97
    %v103 = vmax.f32 %v99, 0.0
    %v104 = vmax.f32 %v100, 0.0
    %v105 = vmax.f32 %v101, 0.0
    %v106 = vmax.f32 %v102, 0.0
    %v107 = vpack.c.bf16 %v104, %v103
    %v108 = vpack.c.bf16 %v106, %v105
    %v109 = vld [vmem:[%s3] sm:$0xff]
    %v110 = vld [vmem:[%s3 + $0x8] sm:$0xff]
    %v111 = vld [vmem:[%s3 + $0x10] sm:$0xf]
    %v112 = vld [vmem:[%s3 + $0x14] sm:$0xff]
    %v113 = vld [vmem:[%s3 + $0x1c] sm:$0xff]
    %v114 = vld [vmem:[%s3 + $0x24] sm:$0xf]
    %v115 = vld [vmem:[%s3 + $0x28] sm:$0xff]
    %v116 = vld [vmem:[%s3 + $0x30] sm:$0xff]
    %v117 = vld [vmem:[%s3 + $0x38] sm:$0xf]
    %v118 = vld [vmem:[%s3 + $0x3c] sm:$0xff]
    %v119 = vld [vmem:[%s3 + $0x44] sm:$0xff]
    %v120 = vld [vmem:[%s3 + $0x4c] sm:$0xf]
    %v121 = vld [vmem:[%s3 + $0x50] sm:$0xff]
    %v122 = vld [vmem:[%s3 + $0x58] sm:$0xff]
    %v123 = vld [vmem:[%s3 + $0x60] sm:$0xf]
    %v124 = vld [vmem:[%s3 + $0x64] sm:$0xff]
    %v125 = vld [vmem:[%s3 + $0x6c] sm:$0xff]
    %v126 = vld [vmem:[%s3 + $0x74] sm:$0xf]
    %v127 = vld [vmem:[%s3 + $0x78] sm:$0xff]
    %v128 = vld [vmem:[%s3 + $0x80] sm:$0xff]
    %v129 = vld [vmem:[%s3 + $0x88] sm:$0xf]
    %v130 = vld [vmem:[%s3 + $0x8c] sm:$0xff]
    %v131 = vld [vmem:[%s3 + $0x94] sm:$0xff]
    %v132 = vld [vmem:[%s3 + $0x9c] sm:$0xf]
    %v133 = vld [vmem:[%s3 + $0xa0] sm:$0xff]
    %v134 = vld [vmem:[%s3 + $0xa8] sm:$0xff]
    %v135 = vld [vmem:[%s3 + $0xb0] sm:$0xf]
    %v136 = vld [vmem:[%s3 + $0xb4] sm:$0xff]
    %v137 = vld [vmem:[%s3 + $0xbc] sm:$0xff]
    %v138 = vld [vmem:[%s3 + $0xc4] sm:$0xf]
    %v139 = vld [vmem:[%s3 + $0xc8] sm:$0xff]
    %v140 = vld [vmem:[%s3 + $0xd0] sm:$0xff]
    %v141 = vld [vmem:[%s3 + $0xd8] sm:$0xf]
    %v142 = vld [vmem:[%s3 + $0xdc] sm:$0xff]
    %v143 = vld [vmem:[%s3 + $0xe4] sm:$0xff]
    %v144 = vld [vmem:[%s3 + $0xec] sm:$0xf]
    %v145 = vld [vmem:[%s3 + $0xf0] sm:$0xff]
    %v146 = vld [vmem:[%s3 + $0xf8] sm:$0xff]
    %v147 = vld [vmem:[%s3 + $0x100] sm:$0xf]
    %v148 = vld [vmem:[%s3 + $0x104] sm:$0xff]
    %v149 = vld [vmem:[%s3 + $0x10c] sm:$0xff]
    %v150 = vld [vmem:[%s3 + $0x114] sm:$0xf]
    %v151 = vld [vmem:[%s3 + $0x118] sm:$0xff]
    %v152 = vld [vmem:[%s3 + $0x120] sm:$0xff]
    %v153 = vld [vmem:[%s3 + $0x128] sm:$0xf]
    %v154 = vld [vmem:[%s3 + $0x12c] sm:$0xff]
    %v155 = vld [vmem:[%s3 + $0x134] sm:$0xff]
    %v156 = vld [vmem:[%s3 + $0x13c] sm:$0xf]
    %v205 = vunpack.c.l.b16 %v109
    %v206 = vunpack.c.h.b16 %v109
    %v207 = vunpack.c.l.b16 %v110
    %v208 = vunpack.c.h.b16 %v110
    %v209 = vunpack.c.l.b16 %v111
    %v210 = vunpack.c.l.b16 %v112
    %v211 = vunpack.c.h.b16 %v112
    %v212 = vunpack.c.l.b16 %v113
    %v213 = vunpack.c.h.b16 %v113
    %v214 = vunpack.c.l.b16 %v114
    %v215 = vunpack.c.l.b16 %v115
    %v216 = vunpack.c.h.b16 %v115
    %v217 = vunpack.c.l.b16 %v116
    %v218 = vunpack.c.h.b16 %v116
    %v219 = vunpack.c.l.b16 %v117
    %v220 = vunpack.c.l.b16 %v118
    %v221 = vunpack.c.h.b16 %v118
    %v222 = vunpack.c.l.b16 %v119
    %v223 = vunpack.c.h.b16 %v119
    %v224 = vunpack.c.l.b16 %v120
    %v225 = vunpack.c.l.b16 %v121
    %v226 = vunpack.c.h.b16 %v121
    %v227 = vunpack.c.l.b16 %v122
    %v228 = vunpack.c.h.b16 %v122
    %v229 = vunpack.c.l.b16 %v123
    %v230 = vunpack.c.l.b16 %v124
    %v231 = vunpack.c.h.b16 %v124
    %v232 = vunpack.c.l.b16 %v125
    %v233 = vunpack.c.h.b16 %v125
    %v234 = vunpack.c.l.b16 %v126
    %v235 = vunpack.c.l.b16 %v127
    %v236 = vunpack.c.h.b16 %v127
    %v237 = vunpack.c.l.b16 %v128
    %v238 = vunpack.c.h.b16 %v128
    %v239 = vunpack.c.l.b16 %v129
    %v240 = vunpack.c.l.b16 %v130
    %v241 = vunpack.c.h.b16 %v130
    %v242 = vunpack.c.l.b16 %v131
    %v243 = vunpack.c.h.b16 %v131
    %v244 = vunpack.c.l.b16 %v132
    %v245 = vunpack.c.l.b16 %v133
    %v246 = vunpack.c.h.b16 %v133
    %v247 = vunpack.c.l.b16 %v134
    %v248 = vunpack.c.h.b16 %v134
    %v249 = vunpack.c.l.b16 %v135
    %v250 = vunpack.c.l.b16 %v136
    %v251 = vunpack.c.h.b16 %v136
    %v252 = vunpack.c.l.b16 %v137
    %v253 = vunpack.c.h.b16 %v137
    %v254 = vunpack.c.l.b16 %v138
    %v255 = vunpack.c.l.b16 %v139
    %v256 = vunpack.c.h.b16 %v139
    %v257 = vunpack.c.l.b16 %v140
    %v258 = vunpack.c.h.b16 %v140
    %v259 = vunpack.c.l.b16 %v141
    %v260 = vunpack.c.l.b16 %v142
    %v261 = vunpack.c.h.b16 %v142
    %v262 = vunpack.c.l.b16 %v143
    %v263 = vunpack.c.h.b16 %v143
    %v264 = vunpack.c.l.b16 %v144
    %v265 = vunpack.c.l.b16 %v145
    %v266 = vunpack.c.h.b16 %v145
    %v267 = vunpack.c.l.b16 %v146
    %v268 = vunpack.c.h.b16 %v146
    %v269 = vunpack.c.l.b16 %v147
    %v270 = vunpack.c.l.b16 %v148
    %v271 = vunpack.c.h.b16 %v148
    %v272 = vunpack.c.l.b16 %v149
    %v273 = vunpack.c.h.b16 %v149
    %v274 = vunpack.c.l.b16 %v150
    %v275 = vunpack.c.l.b16 %v151
    %v276 = vunpack.c.h.b16 %v151
    %v277 = vunpack.c.l.b16 %v152
    %v278 = vunpack.c.h.b16 %v152
    %v279 = vunpack.c.l.b16 %v153
    %v280 = vunpack.c.l.b16 %v154
    %v281 = vunpack.c.h.b16 %v154
    %v282 = vunpack.c.l.b16 %v155
    %v283 = vunpack.c.h.b16 %v155
    %v284 = vunpack.c.l.b16 %v156
    %v285 = vpack.c.b16 %v210, %v205
    %v286 = vpack.c.b16 %v211, %v206
    %v287 = vpack.c.b16 %v212, %v207
    %v288 = vpack.c.b16 %v213, %v208
    %v289 = vpack.c.b16 %v214, %v209
    %v290 = vpack.c.b16 %v220, %v215
    %v291 = vpack.c.b16 %v221, %v216
    %v292 = vpack.c.b16 %v222, %v217
    %v293 = vpack.c.b16 %v223, %v218
    %v294 = vpack.c.b16 %v224, %v219
    %v295 = vpack.c.b16 %v230, %v225
    %v296 = vpack.c.b16 %v231, %v226
    %v297 = vpack.c.b16 %v232, %v227
    %v298 = vpack.c.b16 %v233, %v228
    %v299 = vpack.c.b16 %v234, %v229
    %v300 = vpack.c.b16 %v240, %v235
    %v301 = vpack.c.b16 %v241, %v236
    %v302 = vpack.c.b16 %v242, %v237
    %v303 = vpack.c.b16 %v243, %v238
    %v304 = vpack.c.b16 %v244, %v239
    %v305 = vpack.c.b16 %v250, %v245
    %v306 = vpack.c.b16 %v251, %v246
    %v307 = vpack.c.b16 %v252, %v247
    %v308 = vpack.c.b16 %v253, %v248
    %v309 = vpack.c.b16 %v254, %v249
    %v310 = vpack.c.b16 %v260, %v255
    %v311 = vpack.c.b16 %v261, %v256
    %v312 = vpack.c.b16 %v262, %v257
    %v313 = vpack.c.b16 %v263, %v258
    %v314 = vpack.c.b16 %v264, %v259
    %v315 = vpack.c.b16 %v270, %v265
    %v316 = vpack.c.b16 %v271, %v266
    %v317 = vpack.c.b16 %v272, %v267
    %v318 = vpack.c.b16 %v273, %v268
    %v319 = vpack.c.b16 %v274, %v269
    %v320 = vpack.c.b16 %v280, %v275
    %v321 = vpack.c.b16 %v281, %v276
    %v322 = vpack.c.b16 %v282, %v277
    %v323 = vpack.c.b16 %v283, %v278
    %v324 = vpack.c.b16 %v284, %v279
    %365 = vmatprep.subr.bf16.mxu0 %v321
    %366 = vmatpush1.bf16.msra.mxu0 %v320
    %367 = vmatprep.subr.bf16.mxu0 %v316
    %368 = vmatpush1.bf16.msra.mxu0 %v315
    %369 = vmatprep.subr.bf16.mxu0 %v311
    %370 = vmatpush1.bf16.msra.mxu0 %v310
    %371 = vmatprep.subr.bf16.mxu0 %v306
    %372 = vmatpush1.bf16.msra.mxu0 %v305
    %373 = vmatprep.subr.bf16.mxu0 %v301
    %374 = vmatpush1.bf16.msra.mxu0 %v300
    %375 = vmatprep.subr.bf16.mxu0 %v296
    %376 = vmatpush1.bf16.msra.mxu0 %v295
    %377 = vmatprep.subr.bf16.mxu0 %v291
    %378 = vmatpush1.bf16.msra.mxu0 %v290
    %379 = vmatprep.subr.bf16.mxu0 %v286
    %380 = vmatpush1.bf16.msra.mxu0 %v285
    %381 = vmatprep.subr.bf16.mxu0 0
    %382 = vmatpush2.bf16.msra.mxu0 0
    %383 = vmatprep.subr.bf16.mxu0 0
    %384 = vmatpush2.bf16.msra.mxu0 0
    %385 = vmatprep.subr.bf16.mxu0 0
    %386 = vmatpush2.bf16.msra.mxu0 0
    %387 = vmatprep.subr.bf16.mxu0 0
    %388 = vmatpush2.bf16.msra.mxu0 0
    %389 = vmatprep.subr.bf16.mxu0 0
    %390 = vmatpush2.bf16.msra.mxu0 0
    %391 = vmatprep.subr.bf16.mxu0 0
    %392 = vmatpush2.bf16.msra.mxu0 0
    %393 = vmatprep.subr.bf16.mxu0 0
    %394 = vmatpush2.bf16.msra.mxu0 0
    %395 = vmatprep.subr.bf16.mxu0 0
    %396 = vmatpush2.bf16.msra.mxu0 0
    %397 = vmatprep.mubr.bf16.mxu0 0
    %398 = vmatmul.mubr.bf16.gmra.mxu0 %v107
    %v399 = vpop.f32.mrf.mxu0
    %v400 = vadd.f32 0.0, %v399
    %v401 = vpop.f32.mrf.mxu0
    %v402 = vadd.f32 0.0, %v401
    %v403 = vpop.f32.mrf.mxu0
    %v404 = vadd.f32 0.0, %v403
    %v405 = vpop.f32.mrf.mxu0
    %v406 = vadd.f32 0.0, %v405
    %407 = vmatprep.mubr.bf16.mxu0 0
    %408 = vmatmul.mubr.bf16.gmra.mxu0 %v108
    %v409 = vpop.f32.mrf.mxu0
    %v410 = vadd.f32 0.0, %v409
    %v411 = vpop.f32.mrf.mxu0
    %v412 = vadd.f32 0.0, %v411
    %v413 = vpop.f32.mrf.mxu0
    %v414 = vadd.f32 0.0, %v413
    %v415 = vpop.f32.mrf.mxu0
    %v416 = vadd.f32 0.0, %v415
    %417 = vdwg.mxu0
    %418 = vmatprep.subr.bf16.mxu0 %v323
    %419 = vmatpush1.bf16.msra.mxu0 %v322
    %420 = vmatprep.subr.bf16.mxu0 %v318
    %421 = vmatpush1.bf16.msra.mxu0 %v317
    %422 = vmatprep.subr.bf16.mxu0 %v313
    %423 = vmatpush1.bf16.msra.mxu0 %v312
    %424 = vmatprep.subr.bf16.mxu0 %v308
    %425 = vmatpush1.bf16.msra.mxu0 %v307
    %426 = vmatprep.subr.bf16.mxu0 %v303
    %427 = vmatpush1.bf16.msra.mxu0 %v302
    %428 = vmatprep.subr.bf16.mxu0 %v298
    %429 = vmatpush1.bf16.msra.mxu0 %v297
    %430 = vmatprep.subr.bf16.mxu0 %v293
    %431 = vmatpush1.bf16.msra.mxu0 %v292
    %432 = vmatprep.subr.bf16.mxu0 %v288
    %433 = vmatpush1.bf16.msra.mxu0 %v287
    %434 = vmatprep.subr.bf16.mxu0 0
    %435 = vmatpush2.bf16.msra.mxu0 0
    %436 = vmatprep.subr.bf16.mxu0 0
    %437 = vmatpush2.bf16.msra.mxu0 0
    %438 = vmatprep.subr.bf16.mxu0 0
    %439 = vmatpush2.bf16.msra.mxu0 0
    %440 = vmatprep.subr.bf16.mxu0 0
    %441 = vmatpush2.bf16.msra.mxu0 0
    %442 = vmatprep.subr.bf16.mxu0 0
    %443 = vmatpush2.bf16.msra.mxu0 0
    %444 = vmatprep.subr.bf16.mxu0 0
    %445 = vmatpush2.bf16.msra.mxu0 0
    %446 = vmatprep.subr.bf16.mxu0 0
    %447 = vmatpush2.bf16.msra.mxu0 0
    %448 = vmatprep.subr.bf16.mxu0 0
    %449 = vmatpush2.bf16.msra.mxu0 0
    %450 = vmatprep.mubr.bf16.mxu0 0
    %451 = vmatmul.mubr.bf16.gmra.mxu0 %v107
    %v452 = vpop.f32.mrf.mxu0
    %v453 = vadd.f32 0.0, %v452
    %v454 = vpop.f32.mrf.mxu0
    %v455 = vadd.f32 0.0, %v454
    %v456 = vpop.f32.mrf.mxu0
    %v457 = vadd.f32 0.0, %v456
    %v458 = vpop.f32.mrf.mxu0
    %v459 = vadd.f32 0.0, %v458
    %460 = vmatprep.mubr.bf16.mxu0 0
    %461 = vmatmul.mubr.bf16.gmra.mxu0 %v108
    %v462 = vpop.f32.mrf.mxu0
    %v463 = vadd.f32 0.0, %v462
    %v464 = vpop.f32.mrf.mxu0
    %v465 = vadd.f32 0.0, %v464
    %v466 = vpop.f32.mrf.mxu0
    %v467 = vadd.f32 0.0, %v466
    %v468 = vpop.f32.mrf.mxu0
    %v469 = vadd.f32 0.0, %v468
    %470 = vdwg.mxu0
    %471 = vmatprep.subr.bf16.mxu0 0
    %472 = vmatpush1.bf16.msra.mxu0 %v324
    %473 = vmatprep.subr.bf16.mxu0 0
    %474 = vmatpush1.bf16.msra.mxu0 %v319
    %475 = vmatprep.subr.bf16.mxu0 0
    %476 = vmatpush1.bf16.msra.mxu0 %v314
    %477 = vmatprep.subr.bf16.mxu0 0
    %478 = vmatpush1.bf16.msra.mxu0 %v309
    %479 = vmatprep.subr.bf16.mxu0 0
    %480 = vmatpush1.bf16.msra.mxu0 %v304
    %481 = vmatprep.subr.bf16.mxu0 0
    %482 = vmatpush1.bf16.msra.mxu0 %v299
    %483 = vmatprep.subr.bf16.mxu0 0
    %484 = vmatpush1.bf16.msra.mxu0 %v294
    %485 = vmatprep.subr.bf16.mxu0 0
    %486 = vmatpush1.bf16.msra.mxu0 %v289
    %487 = vmatprep.subr.bf16.mxu0 0
    %488 = vmatpush2.bf16.msra.mxu0 0
    %489 = vmatprep.subr.bf16.mxu0 0
    %490 = vmatpush2.bf16.msra.mxu0 0
    %491 = vmatprep.subr.bf16.mxu0 0
    %492 = vmatpush2.bf16.msra.mxu0 0
    %493 = vmatprep.subr.bf16.mxu0 0
    %494 = vmatpush2.bf16.msra.mxu0 0
    %495 = vmatprep.subr.bf16.mxu0 0
    %496 = vmatpush2.bf16.msra.mxu0 0
    %497 = vmatprep.subr.bf16.mxu0 0
    %498 = vmatpush2.bf16.msra.mxu0 0
    %499 = vmatprep.subr.bf16.mxu0 0
    %500 = vmatpush2.bf16.msra.mxu0 0
    %501 = vmatprep.subr.bf16.mxu0 0
    %502 = vmatpush2.bf16.msra.mxu0 0
    %503 = vmatprep.mubr.bf16.mxu0 0
    %504 = vmatmul.mubr.bf16.gmra.mxu0 %v107
    %v505 = vpop.f32.mrf.mxu0
    %v506 = vadd.f32 0.0, %v505
    %v507 = vpop.f32.mrf.mxu0
    %v508 = vpop.f32.mrf.mxu0
    %v509 = vadd.f32 0.0, %v508
    %v510 = vpop.f32.mrf.mxu0
    %511 = vmatprep.mubr.bf16.mxu0 0
    %512 = vmatmul.mubr.bf16.gmra.mxu0 %v108
    %v513 = vpop.f32.mrf.mxu0
    %v514 = vadd.f32 0.0, %v513
    %v515 = vpop.f32.mrf.mxu0
    %v516 = vpop.f32.mrf.mxu0
    %v517 = vadd.f32 0.0, %v516
    %v518 = vpop.f32.mrf.mxu0
    %519 = vdwg.mxu0
    %520 = vst [vmem:[%s4] sm:$0xff] %v400
    %521 = vst [vmem:[%s4 + $0x8] sm:$0xff] %v402
    %522 = vst [vmem:[%s4 + $0x10] sm:$0xff] %v453
    %523 = vst [vmem:[%s4 + $0x18] sm:$0xff] %v455
    %vm524 = vcmask 523264
    %525 = vst.msk [vmem:[%s4 + $0x20] sm:$0xff] %vm524, %v506
    %526 = vst [vmem:[%s4 + $0x28] sm:$0xff] %v404
    %527 = vst [vmem:[%s4 + $0x30] sm:$0xff] %v406
    %528 = vst [vmem:[%s4 + $0x38] sm:$0xff] %v457
    %529 = vst [vmem:[%s4 + $0x40] sm:$0xff] %v459
    %530 = vst.msk [vmem:[%s4 + $0x48] sm:$0xff] %vm524, %v509
    %531 = vst [vmem:[%s4 + $0x50] sm:$0xff] %v410
    %532 = vst [vmem:[%s4 + $0x58] sm:$0xff] %v412
    %533 = vst [vmem:[%s4 + $0x60] sm:$0xff] %v463
    %534 = vst [vmem:[%s4 + $0x68] sm:$0xff] %v465
    %535 = vst.msk [vmem:[%s4 + $0x70] sm:$0xff] %vm524, %v514
    %536 = vst [vmem:[%s4 + $0x78] sm:$0xff] %v414
    %537 = vst [vmem:[%s4 + $0x80] sm:$0xff] %v416
    %538 = vst [vmem:[%s4 + $0x88] sm:$0xff] %v467
    %539 = vst [vmem:[%s4 + $0x90] sm:$0xff] %v469
    %540 = vst.msk [vmem:[%s4 + $0x98] sm:$0xff] %vm524, %v517
    // Predicated region
    $region26: #{mnist_generator_forward.6} parent=1 // pred_check
      _
    $region27: #{mnist_generator_forward.6} parent=1 // pred_check_branch
      %542 = sbr.rel (0) target = $region29
    $region28: #{mnist_generator_forward.6} parent=1 // pred_region
      _
    $region29: #{mnist_generator_forward.6} parent=1 // pred_fallthru
      _
    // Predicated region
    $region30: #{mnist_generator_forward.6} parent=1 // pred_check
      _
    $region31: #{mnist_generator_forward.6} parent=1 // pred_check_branch
      %544 = sbr.rel (0) target = $region33
    $region32: #{mnist_generator_forward.6} parent=1 // pred_region
      _
    $region33: #{mnist_generator_forward.6} parent=1 // pred_fallthru
      _
    %545 = vsyncpa [#allocation3], 1
    %546 = vsyncpa [#allocation5], 1

// kernel: mnist_generator_forward.5
$region0: #{mnist_generator_forward.5}
  #allocation0 [shape = 'u32[]', space=smem, size = 0x4, offset = 0x4, fixed_abs, tag = 'smem constant byte address 0x4 - core index']
  #allocation1 [shape = 'u32[144,128]{1,0:T(1,128)}', space=vmem, size = 0x12000, scoped, tag = 'internal scratch']
  %s0 = inlined_call_operand.vmem [shape: bf16[2,128], index: 0, kind: input, shape index: {}]
  %s1 = inlined_call_operand.hbm [shape: bf16[128,2048], index: 1, kind: input, shape index: {}]
  %s2 = inlined_call_operand.vmem [shape: f32[2,2048], index: 2, kind: output, shape index: {}]
  %s3 = sld [smem:[#allocation0]]
  $region22: #{mnist_generator_forward.5} parent=0
    _
  %s5 = ssub.s32 1, %s3
  %s6 = scalar_select 0, %s5, %s3
  $region1: #{mnist_generator_forward.5} parent=0
    #allocation2 [shape = 'u8[524288]{0}', space=vmem, size = 0x80000, scoped, tag = 'input window, operand 1, single buffered']
    #allocation3 [shape = 's32[1]{0}', space=sflag, size = 0x4, scoped, tag = 'scoped memory for mnist_generator_forward.5']
    %7 = vsyncpa [#allocation3], 0
    // Predicated region
    $region2: #{mnist_generator_forward.5} parent=1 // pred_check
      _
    $region3: #{mnist_generator_forward.5} parent=1 // pred_check_branch
      %9 = sbr.rel (0) target = $region5
    $region4: #{mnist_generator_forward.5} parent=1 // pred_region
      _
    $region5: #{mnist_generator_forward.5} parent=1 // pred_fallthru
      _
    // Predicated region
    $region6: #{mnist_generator_forward.5} parent=1 // pred_check
      _
    $region7: #{mnist_generator_forward.5} parent=1 // pred_check_branch
      %11 = sbr.rel (0) target = $region9
    $region8: #{mnist_generator_forward.5} parent=1 // pred_region
      %s13 = ssub.s32 16384, 16384
      %14 = vsyncadd [#allocation3], %s13
      %s15 = sshll.u32 [#allocation2], 4
      %s16 = int_to_ptr.vmem [resolvable:$true] %s15
      %21 = dma.hbm_to_vmem [thread:$0]  %s1, 16384, %s16, [#allocation3], 1024, 1024, 64
    $region9: #{mnist_generator_forward.5} parent=1 // pred_fallthru
      _
    // Predicated region
    $region10: #{mnist_generator_forward.5} parent=1 // pred_check
      _
    $region11: #{mnist_generator_forward.5} parent=1 // pred_check_branch
      %23 = sbr.rel (0) target = $region13
    $region12: #{mnist_generator_forward.5} parent=1 // pred_region
      %24 = dma.done [#allocation3], 16384
    $region13: #{mnist_generator_forward.5} parent=1 // pred_fallthru
      _
    %v26 = vld [vmem:[%s0] sm:$0x1]
    %v27 = vld [vmem:[#allocation2] sm:$0xff]
    %v28 = vld [vmem:[#allocation2 + $0x8] sm:$0xff]
    %v29 = vld [vmem:[#allocation2 + $0x10] sm:$0xff]
    %v30 = vld [vmem:[#allocation2 + $0x18] sm:$0xff]
    %v31 = vld [vmem:[#allocation2 + $0x20] sm:$0xff]
    %v32 = vld [vmem:[#allocation2 + $0x28] sm:$0xff]
    %v33 = vld [vmem:[#allocation2 + $0x30] sm:$0xff]
    %v34 = vld [vmem:[#allocation2 + $0x38] sm:$0xff]
    %v35 = vld [vmem:[#allocation2 + $0x40] sm:$0xff]
    %v36 = vld [vmem:[#allocation2 + $0x48] sm:$0xff]
    %v37 = vld [vmem:[#allocation2 + $0x50] sm:$0xff]
    %v38 = vld [vmem:[#allocation2 + $0x58] sm:$0xff]
    %v39 = vld [vmem:[#allocation2 + $0x60] sm:$0xff]
    %v40 = vld [vmem:[#allocation2 + $0x68] sm:$0xff]
    %v41 = vld [vmem:[#allocation2 + $0x70] sm:$0xff]
    %v42 = vld [vmem:[#allocation2 + $0x78] sm:$0xff]
    %v43 = vld [vmem:[#allocation2 + $0x80] sm:$0xff]
    %v44 = vld [vmem:[#allocation2 + $0x88] sm:$0xff]
    %v45 = vld [vmem:[#allocation2 + $0x90] sm:$0xff]
    %v46 = vld [vmem:[#allocation2 + $0x98] sm:$0xff]
    %v47 = vld [vmem:[#allocation2 + $0xa0] sm:$0xff]
    %v48 = vld [vmem:[#allocation2 + $0xa8] sm:$0xff]
    %v49 = vld [vmem:[#allocation2 + $0xb0] sm:$0xff]
    %v50 = vld [vmem:[#allocation2 + $0xb8] sm:$0xff]
    %v51 = vld [vmem:[#allocation2 + $0xc0] sm:$0xff]
    %v52 = vld [vmem:[#allocation2 + $0xc8] sm:$0xff]
    %v53 = vld [vmem:[#allocation2 + $0xd0] sm:$0xff]
    %v54 = vld [vmem:[#allocation2 + $0xd8] sm:$0xff]
    %v55 = vld [vmem:[#allocation2 + $0xe0] sm:$0xff]
    %v56 = vld [vmem:[#allocation2 + $0xe8] sm:$0xff]
    %v57 = vld [vmem:[#allocation2 + $0xf0] sm:$0xff]
    %v58 = vld [vmem:[#allocation2 + $0xf8] sm:$0xff]
    %v59 = vld [vmem:[#allocation2 + $0x100] sm:$0xff]
    %v60 = vld [vmem:[#allocation2 + $0x108] sm:$0xff]
    %v61 = vld [vmem:[#allocation2 + $0x110] sm:$0xff]
    %v62 = vld [vmem:[#allocation2 + $0x118] sm:$0xff]
    %v63 = vld [vmem:[#allocation2 + $0x120] sm:$0xff]
    %v64 = vld [vmem:[#allocation2 + $0x128] sm:$0xff]
    %v65 = vld [vmem:[#allocation2 + $0x130] sm:$0xff]
    %v66 = vld [vmem:[#allocation2 + $0x138] sm:$0xff]
    %v67 = vld [vmem:[#allocation2 + $0x140] sm:$0xff]
    %v68 = vld [vmem:[#allocation2 + $0x148] sm:$0xff]
    %v69 = vld [vmem:[#allocation2 + $0x150] sm:$0xff]
    %v70 = vld [vmem:[#allocation2 + $0x158] sm:$0xff]
    %v71 = vld [vmem:[#allocation2 + $0x160] sm:$0xff]
    %v72 = vld [vmem:[#allocation2 + $0x168] sm:$0xff]
    %v73 = vld [vmem:[#allocation2 + $0x170] sm:$0xff]
    %v74 = vld [vmem:[#allocation2 + $0x178] sm:$0xff]
    %v75 = vld [vmem:[#allocation2 + $0x180] sm:$0xff]
    %v76 = vld [vmem:[#allocation2 + $0x188] sm:$0xff]
    %v77 = vld [vmem:[#allocation2 + $0x190] sm:$0xff]
    %v78 = vld [vmem:[#allocation2 + $0x198] sm:$0xff]
    %v79 = vld [vmem:[#allocation2 + $0x1a0] sm:$0xff]
    %v80 = vld [vmem:[#allocation2 + $0x1a8] sm:$0xff]
    %v81 = vld [vmem:[#allocation2 + $0x1b0] sm:$0xff]
    %v82 = vld [vmem:[#allocation2 + $0x1b8] sm:$0xff]
    %v83 = vld [vmem:[#allocation2 + $0x1c0] sm:$0xff]
    %v84 = vld [vmem:[#allocation2 + $0x1c8] sm:$0xff]
    %v85 = vld [vmem:[#allocation2 + $0x1d0] sm:$0xff]
    %v86 = vld [vmem:[#allocation2 + $0x1d8] sm:$0xff]
    %v87 = vld [vmem:[#allocation2 + $0x1e0] sm:$0xff]
    %v88 = vld [vmem:[#allocation2 + $0x1e8] sm:$0xff]
    %v89 = vld [vmem:[#allocation2 + $0x1f0] sm:$0xff]
    %v90 = vld [vmem:[#allocation2 + $0x1f8] sm:$0xff]
    %v91 = vld [vmem:[#allocation2 + $0x200] sm:$0xff]
    %v92 = vld [vmem:[#allocation2 + $0x208] sm:$0xff]
    %v93 = vld [vmem:[#allocation2 + $0x210] sm:$0xff]
    %v94 = vld [vmem:[#allocation2 + $0x218] sm:$0xff]
    %v95 = vld [vmem:[#allocation2 + $0x220] sm:$0xff]
    %v96 = vld [vmem:[#allocation2 + $0x228] sm:$0xff]
    %v97 = vld [vmem:[#allocation2 + $0x230] sm:$0xff]
    %v98 = vld [vmem:[#allocation2 + $0x238] sm:$0xff]
    %v99 = vld [vmem:[#allocation2 + $0x240] sm:$0xff]
    %v100 = vld [vmem:[#allocation2 + $0x248] sm:$0xff]
    %v101 = vld [vmem:[#allocation2 + $0x250] sm:$0xff]
    %v102 = vld [vmem:[#allocation2 + $0x258] sm:$0xff]
    %v103 = vld [vmem:[#allocation2 + $0x260] sm:$0xff]
    %v104 = vld [vmem:[#allocation2 + $0x268] sm:$0xff]
    %v105 = vld [vmem:[#allocation2 + $0x270] sm:$0xff]
    %v106 = vld [vmem:[#allocation2 + $0x278] sm:$0xff]
    %v107 = vld [vmem:[#allocation2 + $0x280] sm:$0xff]
    %v108 = vld [vmem:[#allocation2 + $0x288] sm:$0xff]
    %v109 = vld [vmem:[#allocation2 + $0x290] sm:$0xff]
    %v110 = vld [vmem:[#allocation2 + $0x298] sm:$0xff]
    %v111 = vld [vmem:[#allocation2 + $0x2a0] sm:$0xff]
    %v112 = vld [vmem:[#allocation2 + $0x2a8] sm:$0xff]
    %v113 = vld [vmem:[#allocation2 + $0x2b0] sm:$0xff]
    %v114 = vld [vmem:[#allocation2 + $0x2b8] sm:$0xff]
    %v115 = vld [vmem:[#allocation2 + $0x2c0] sm:$0xff]
    %v116 = vld [vmem:[#allocation2 + $0x2c8] sm:$0xff]
    %v117 = vld [vmem:[#allocation2 + $0x2d0] sm:$0xff]
    %v118 = vld [vmem:[#allocation2 + $0x2d8] sm:$0xff]
    %v119 = vld [vmem:[#allocation2 + $0x2e0] sm:$0xff]
    %v120 = vld [vmem:[#allocation2 + $0x2e8] sm:$0xff]
    %v121 = vld [vmem:[#allocation2 + $0x2f0] sm:$0xff]
    %v122 = vld [vmem:[#allocation2 + $0x2f8] sm:$0xff]
    %v123 = vld [vmem:[#allocation2 + $0x300] sm:$0xff]
    %v124 = vld [vmem:[#allocation2 + $0x308] sm:$0xff]
    %v125 = vld [vmem:[#allocation2 + $0x310] sm:$0xff]
    %v126 = vld [vmem:[#allocation2 + $0x318] sm:$0xff]
    %v127 = vld [vmem:[#allocation2 + $0x320] sm:$0xff]
    %v128 = vld [vmem:[#allocation2 + $0x328] sm:$0xff]
    %v129 = vld [vmem:[#allocation2 + $0x330] sm:$0xff]
    %v130 = vld [vmem:[#allocation2 + $0x338] sm:$0xff]
    %v131 = vld [vmem:[#allocation2 + $0x340] sm:$0xff]
    %v132 = vld [vmem:[#allocation2 + $0x348] sm:$0xff]
    %v133 = vld [vmem:[#allocation2 + $0x350] sm:$0xff]
    %v134 = vld [vmem:[#allocation2 + $0x358] sm:$0xff]
    %v135 = vld [vmem:[#allocation2 + $0x360] sm:$0xff]
    %v136 = vld [vmem:[#allocation2 + $0x368] sm:$0xff]
    %v137 = vld [vmem:[#allocation2 + $0x370] sm:$0xff]
    %v138 = vld [vmem:[#allocation2 + $0x378] sm:$0xff]
    %v139 = vld [vmem:[#allocation2 + $0x380] sm:$0xff]
    %v140 = vld [vmem:[#allocation2 + $0x388] sm:$0xff]
    %v141 = vld [vmem:[#allocation2 + $0x390] sm:$0xff]
    %v142 = vld [vmem:[#allocation2 + $0x398] sm:$0xff]
    %v143 = vld [vmem:[#allocation2 + $0x3a0] sm:$0xff]
    %v144 = vld [vmem:[#allocation2 + $0x3a8] sm:$0xff]
    %v145 = vld [vmem:[#allocation2 + $0x3b0] sm:$0xff]
    %v146 = vld [vmem:[#allocation2 + $0x3b8] sm:$0xff]
    %v147 = vld [vmem:[#allocation2 + $0x3c0] sm:$0xff]
    %v148 = vld [vmem:[#allocation2 + $0x3c8] sm:$0xff]
    %v149 = vld [vmem:[#allocation2 + $0x3d0] sm:$0xff]
    %v150 = vld [vmem:[#allocation2 + $0x3d8] sm:$0xff]
    %v151 = vld [vmem:[#allocation2 + $0x3e0] sm:$0xff]
    %v152 = vld [vmem:[#allocation2 + $0x3e8] sm:$0xff]
    %v153 = vld [vmem:[#allocation2 + $0x3f0] sm:$0xff]
    %v154 = vld [vmem:[#allocation2 + $0x3f8] sm:$0xff]
    %v283 = vunpack.c.l.b16 %v27
    %v284 = vunpack.c.h.b16 %v27
    %v285 = vunpack.c.l.b16 %v28
    %v286 = vunpack.c.h.b16 %v28
    %v287 = vunpack.c.l.b16 %v29
    %v288 = vunpack.c.h.b16 %v29
    %v289 = vunpack.c.l.b16 %v30
    %v290 = vunpack.c.h.b16 %v30
    %v291 = vunpack.c.l.b16 %v31
    %v292 = vunpack.c.h.b16 %v31
    %v293 = vunpack.c.l.b16 %v32
    %v294 = vunpack.c.h.b16 %v32
    %v295 = vunpack.c.l.b16 %v33
    %v296 = vunpack.c.h.b16 %v33
    %v297 = vunpack.c.l.b16 %v34
    %v298 = vunpack.c.h.b16 %v34
    %v299 = vunpack.c.l.b16 %v35
    %v300 = vunpack.c.h.b16 %v35
    %v301 = vunpack.c.l.b16 %v36
    %v302 = vunpack.c.h.b16 %v36
    %v303 = vunpack.c.l.b16 %v37
    %v304 = vunpack.c.h.b16 %v37
    %v305 = vunpack.c.l.b16 %v38
    %v306 = vunpack.c.h.b16 %v38
    %v307 = vunpack.c.l.b16 %v39
    %v308 = vunpack.c.h.b16 %v39
    %v309 = vunpack.c.l.b16 %v40
    %v310 = vunpack.c.h.b16 %v40
    %v311 = vunpack.c.l.b16 %v41
    %v312 = vunpack.c.h.b16 %v41
    %v313 = vunpack.c.l.b16 %v42
    %v314 = vunpack.c.h.b16 %v42
    %v315 = vunpack.c.l.b16 %v43
    %v316 = vunpack.c.h.b16 %v43
    %v317 = vunpack.c.l.b16 %v44
    %v318 = vunpack.c.h.b16 %v44
    %v319 = vunpack.c.l.b16 %v45
    %v320 = vunpack.c.h.b16 %v45
    %v321 = vunpack.c.l.b16 %v46
    %v322 = vunpack.c.h.b16 %v46
    %v323 = vunpack.c.l.b16 %v47
    %v324 = vunpack.c.h.b16 %v47
    %v325 = vunpack.c.l.b16 %v48
    %v326 = vunpack.c.h.b16 %v48
    %v327 = vunpack.c.l.b16 %v49
    %v328 = vunpack.c.h.b16 %v49
    %v329 = vunpack.c.l.b16 %v50
    %v330 = vunpack.c.h.b16 %v50
    %v331 = vunpack.c.l.b16 %v51
    %v332 = vunpack.c.h.b16 %v51
    %v333 = vunpack.c.l.b16 %v52
    %v334 = vunpack.c.h.b16 %v52
    %v335 = vunpack.c.l.b16 %v53
    %v336 = vunpack.c.h.b16 %v53
    %v337 = vunpack.c.l.b16 %v54
    %v338 = vunpack.c.h.b16 %v54
    %v339 = vunpack.c.l.b16 %v55
    %v340 = vunpack.c.h.b16 %v55
    %v341 = vunpack.c.l.b16 %v56
    %v342 = vunpack.c.h.b16 %v56
    %v343 = vunpack.c.l.b16 %v57
    %v344 = vunpack.c.h.b16 %v57
    %v345 = vunpack.c.l.b16 %v58
    %v346 = vunpack.c.h.b16 %v58
    %v347 = vunpack.c.l.b16 %v59
    %v348 = vunpack.c.h.b16 %v59
    %v349 = vunpack.c.l.b16 %v60
    %v350 = vunpack.c.h.b16 %v60
    %v351 = vunpack.c.l.b16 %v61
    %v352 = vunpack.c.h.b16 %v61
    %v353 = vunpack.c.l.b16 %v62
    %v354 = vunpack.c.h.b16 %v62
    %v355 = vunpack.c.l.b16 %v63
    %v356 = vunpack.c.h.b16 %v63
    %v357 = vunpack.c.l.b16 %v64
    %v358 = vunpack.c.h.b16 %v64
    %v359 = vunpack.c.l.b16 %v65
    %v360 = vunpack.c.h.b16 %v65
    %v361 = vunpack.c.l.b16 %v66
    %v362 = vunpack.c.h.b16 %v66
    %v363 = vunpack.c.l.b16 %v67
    %v364 = vunpack.c.h.b16 %v67
    %v365 = vunpack.c.l.b16 %v68
    %v366 = vunpack.c.h.b16 %v68
    %v367 = vunpack.c.l.b16 %v69
    %v368 = vunpack.c.h.b16 %v69
    %v369 = vunpack.c.l.b16 %v70
    %v370 = vunpack.c.h.b16 %v70
    %v371 = vunpack.c.l.b16 %v71
    %v372 = vunpack.c.h.b16 %v71
    %v373 = vunpack.c.l.b16 %v72
    %v374 = vunpack.c.h.b16 %v72
    %v375 = vunpack.c.l.b16 %v73
    %v376 = vunpack.c.h.b16 %v73
    %v377 = vunpack.c.l.b16 %v74
    %v378 = vunpack.c.h.b16 %v74
    %v379 = vunpack.c.l.b16 %v75
    %v380 = vunpack.c.h.b16 %v75
    %v381 = vunpack.c.l.b16 %v76
    %v382 = vunpack.c.h.b16 %v76
    %v383 = vunpack.c.l.b16 %v77
    %v384 = vunpack.c.h.b16 %v77
    %v385 = vunpack.c.l.b16 %v78
    %v386 = vunpack.c.h.b16 %v78
    %v387 = vunpack.c.l.b16 %v79
    %v388 = vunpack.c.h.b16 %v79
    %v389 = vunpack.c.l.b16 %v80
    %v390 = vunpack.c.h.b16 %v80
    %v391 = vunpack.c.l.b16 %v81
    %v392 = vunpack.c.h.b16 %v81
    %v393 = vunpack.c.l.b16 %v82
    %v394 = vunpack.c.h.b16 %v82
    %v395 = vunpack.c.l.b16 %v83
    %v396 = vunpack.c.h.b16 %v83
    %v397 = vunpack.c.l.b16 %v84
    %v398 = vunpack.c.h.b16 %v84
    %v399 = vunpack.c.l.b16 %v85
    %v400 = vunpack.c.h.b16 %v85
    %v401 = vunpack.c.l.b16 %v86
    %v402 = vunpack.c.h.b16 %v86
    %v403 = vunpack.c.l.b16 %v87
    %v404 = vunpack.c.h.b16 %v87
    %v405 = vunpack.c.l.b16 %v88
    %v406 = vunpack.c.h.b16 %v88
    %v407 = vunpack.c.l.b16 %v89
    %v408 = vunpack.c.h.b16 %v89
    %v409 = vunpack.c.l.b16 %v90
    %v410 = vunpack.c.h.b16 %v90
    %v411 = vunpack.c.l.b16 %v91
    %v412 = vunpack.c.h.b16 %v91
    %v413 = vunpack.c.l.b16 %v92
    %v414 = vunpack.c.h.b16 %v92
    %v415 = vunpack.c.l.b16 %v93
    %v416 = vunpack.c.h.b16 %v93
    %v417 = vunpack.c.l.b16 %v94
    %v418 = vunpack.c.h.b16 %v94
    %v419 = vunpack.c.l.b16 %v95
    %v420 = vunpack.c.h.b16 %v95
    %v421 = vunpack.c.l.b16 %v96
    %v422 = vunpack.c.h.b16 %v96
    %v423 = vunpack.c.l.b16 %v97
    %v424 = vunpack.c.h.b16 %v97
    %v425 = vunpack.c.l.b16 %v98
    %v426 = vunpack.c.h.b16 %v98
    %v427 = vunpack.c.l.b16 %v99
    %v428 = vunpack.c.h.b16 %v99
    %v429 = vunpack.c.l.b16 %v100
    %v430 = vunpack.c.h.b16 %v100
    %v431 = vunpack.c.l.b16 %v101
    %v432 = vunpack.c.h.b16 %v101
    %v433 = vunpack.c.l.b16 %v102
    %v434 = vunpack.c.h.b16 %v102
    %v435 = vunpack.c.l.b16 %v103
    %v436 = vunpack.c.h.b16 %v103
    %v437 = vunpack.c.l.b16 %v104
    %v438 = vunpack.c.h.b16 %v104
    %v439 = vunpack.c.l.b16 %v105
    %v440 = vunpack.c.h.b16 %v105
    %v441 = vunpack.c.l.b16 %v106
    %v442 = vunpack.c.h.b16 %v106
    %v443 = vunpack.c.l.b16 %v107
    %v444 = vunpack.c.h.b16 %v107
    %v445 = vunpack.c.l.b16 %v108
    %v446 = vunpack.c.h.b16 %v108
    %v447 = vunpack.c.l.b16 %v109
    %v448 = vunpack.c.h.b16 %v109
    %v449 = vunpack.c.l.b16 %v110
    %v450 = vunpack.c.h.b16 %v110
    %v451 = vunpack.c.l.b16 %v111
    %v452 = vunpack.c.h.b16 %v111
    %v453 = vunpack.c.l.b16 %v112
    %v454 = vunpack.c.h.b16 %v112
    %v455 = vunpack.c.l.b16 %v113
    %v456 = vunpack.c.h.b16 %v113
    %v457 = vunpack.c.l.b16 %v114
    %v458 = vunpack.c.h.b16 %v114
    %v459 = vunpack.c.l.b16 %v115
    %v460 = vunpack.c.h.b16 %v115
    %v461 = vunpack.c.l.b16 %v116
    %v462 = vunpack.c.h.b16 %v116
    %v463 = vunpack.c.l.b16 %v117
    %v464 = vunpack.c.h.b16 %v117
    %v465 = vunpack.c.l.b16 %v118
    %v466 = vunpack.c.h.b16 %v118
    %v467 = vunpack.c.l.b16 %v119
    %v468 = vunpack.c.h.b16 %v119
    %v469 = vunpack.c.l.b16 %v120
    %v470 = vunpack.c.h.b16 %v120
    %v471 = vunpack.c.l.b16 %v121
    %v472 = vunpack.c.h.b16 %v121
    %v473 = vunpack.c.l.b16 %v122
    %v474 = vunpack.c.h.b16 %v122
    %v475 = vunpack.c.l.b16 %v123
    %v476 = vunpack.c.h.b16 %v123
    %v477 = vunpack.c.l.b16 %v124
    %v478 = vunpack.c.h.b16 %v124
    %v479 = vunpack.c.l.b16 %v125
    %v480 = vunpack.c.h.b16 %v125
    %v481 = vunpack.c.l.b16 %v126
    %v482 = vunpack.c.h.b16 %v126
    %v483 = vunpack.c.l.b16 %v127
    %v484 = vunpack.c.h.b16 %v127
    %v485 = vunpack.c.l.b16 %v128
    %v486 = vunpack.c.h.b16 %v128
    %v487 = vunpack.c.l.b16 %v129
    %v488 = vunpack.c.h.b16 %v129
    %v489 = vunpack.c.l.b16 %v130
    %v490 = vunpack.c.h.b16 %v130
    %v491 = vunpack.c.l.b16 %v131
    %v492 = vunpack.c.h.b16 %v131
    %v493 = vunpack.c.l.b16 %v132
    %v494 = vunpack.c.h.b16 %v132
    %v495 = vunpack.c.l.b16 %v133
    %v496 = vunpack.c.h.b16 %v133
    %v497 = vunpack.c.l.b16 %v134
    %v498 = vunpack.c.h.b16 %v134
    %v499 = vunpack.c.l.b16 %v135
    %v500 = vunpack.c.h.b16 %v135
    %v501 = vunpack.c.l.b16 %v136
    %v502 = vunpack.c.h.b16 %v136
    %v503 = vunpack.c.l.b16 %v137
    %v504 = vunpack.c.h.b16 %v137
    %v505 = vunpack.c.l.b16 %v138
    %v506 = vunpack.c.h.b16 %v138
    %v507 = vunpack.c.l.b16 %v139
    %v508 = vunpack.c.h.b16 %v139
    %v509 = vunpack.c.l.b16 %v140
    %v510 = vunpack.c.h.b16 %v140
    %v511 = vunpack.c.l.b16 %v141
    %v512 = vunpack.c.h.b16 %v141
    %v513 = vunpack.c.l.b16 %v142
    %v514 = vunpack.c.h.b16 %v142
    %v515 = vunpack.c.l.b16 %v143
    %v516 = vunpack.c.h.b16 %v143
    %v517 = vunpack.c.l.b16 %v144
    %v518 = vunpack.c.h.b16 %v144
    %v519 = vunpack.c.l.b16 %v145
    %v520 = vunpack.c.h.b16 %v145
    %v521 = vunpack.c.l.b16 %v146
    %v522 = vunpack.c.h.b16 %v146
    %v523 = vunpack.c.l.b16 %v147
    %v524 = vunpack.c.h.b16 %v147
    %v525 = vunpack.c.l.b16 %v148
    %v526 = vunpack.c.h.b16 %v148
    %v527 = vunpack.c.l.b16 %v149
    %v528 = vunpack.c.h.b16 %v149
    %v529 = vunpack.c.l.b16 %v150
    %v530 = vunpack.c.h.b16 %v150
    %v531 = vunpack.c.l.b16 %v151
    %v532 = vunpack.c.h.b16 %v151
    %v533 = vunpack.c.l.b16 %v152
    %v534 = vunpack.c.h.b16 %v152
    %v535 = vunpack.c.l.b16 %v153
    %v536 = vunpack.c.h.b16 %v153
    %v537 = vunpack.c.l.b16 %v154
    %v538 = vunpack.c.h.b16 %v154
    %v539 = vpack.c.b16 %v299, %v283
    %v540 = vpack.c.b16 %v300, %v284
    %v541 = vpack.c.b16 %v301, %v285
    %v542 = vpack.c.b16 %v302, %v286
    %v543 = vpack.c.b16 %v303, %v287
    %v544 = vpack.c.b16 %v304, %v288
    %v545 = vpack.c.b16 %v305, %v289
    %v546 = vpack.c.b16 %v306, %v290
    %v547 = vpack.c.b16 %v307, %v291
    %v548 = vpack.c.b16 %v308, %v292
    %v549 = vpack.c.b16 %v309, %v293
    %v550 = vpack.c.b16 %v310, %v294
    %v551 = vpack.c.b16 %v311, %v295
    %v552 = vpack.c.b16 %v312, %v296
    %v553 = vpack.c.b16 %v313, %v297
    %v554 = vpack.c.b16 %v314, %v298
    %v555 = vpack.c.b16 %v331, %v315
    %v556 = vpack.c.b16 %v332, %v316
    %v557 = vpack.c.b16 %v333, %v317
    %v558 = vpack.c.b16 %v334, %v318
    %v559 = vpack.c.b16 %v335, %v319
    %v560 = vpack.c.b16 %v336, %v320
    %v561 = vpack.c.b16 %v337, %v321
    %v562 = vpack.c.b16 %v338, %v322
    %v563 = vpack.c.b16 %v339, %v323
    %v564 = vpack.c.b16 %v340, %v324
    %v565 = vpack.c.b16 %v341, %v325
    %v566 = vpack.c.b16 %v342, %v326
    %v567 = vpack.c.b16 %v343, %v327
    %v568 = vpack.c.b16 %v344, %v328
    %v569 = vpack.c.b16 %v345, %v329
    %v570 = vpack.c.b16 %v346, %v330
    %v571 = vpack.c.b16 %v363, %v347
    %v572 = vpack.c.b16 %v364, %v348
    %v573 = vpack.c.b16 %v365, %v349
    %v574 = vpack.c.b16 %v366, %v350
    %v575 = vpack.c.b16 %v367, %v351
    %v576 = vpack.c.b16 %v368, %v352
    %v577 = vpack.c.b16 %v369, %v353
    %v578 = vpack.c.b16 %v370, %v354
    %v579 = vpack.c.b16 %v371, %v355
    %v580 = vpack.c.b16 %v372, %v356
    %v581 = vpack.c.b16 %v373, %v357
    %v582 = vpack.c.b16 %v374, %v358
    %v583 = vpack.c.b16 %v375, %v359
    %v584 = vpack.c.b16 %v376, %v360
    %v585 = vpack.c.b16 %v377, %v361
    %v586 = vpack.c.b16 %v378, %v362
    %v587 = vpack.c.b16 %v395, %v379
    %v588 = vpack.c.b16 %v396, %v380
    %v589 = vpack.c.b16 %v397, %v381
    %v590 = vpack.c.b16 %v398, %v382
    %v591 = vpack.c.b16 %v399, %v383
    %v592 = vpack.c.b16 %v400, %v384
    %v593 = vpack.c.b16 %v401, %v385
    %v594 = vpack.c.b16 %v402, %v386
    %v595 = vpack.c.b16 %v403, %v387
    %v596 = vpack.c.b16 %v404, %v388
    %v597 = vpack.c.b16 %v405, %v389
    %v598 = vpack.c.b16 %v406, %v390
    %v599 = vpack.c.b16 %v407, %v391
    %v600 = vpack.c.b16 %v408, %v392
    %v601 = vpack.c.b16 %v409, %v393
    %v602 = vpack.c.b16 %v410, %v394
    %v603 = vpack.c.b16 %v427, %v411
    %v604 = vpack.c.b16 %v428, %v412
    %v605 = vpack.c.b16 %v429, %v413
    %v606 = vpack.c.b16 %v430, %v414
    %v607 = vpack.c.b16 %v431, %v415
    %v608 = vpack.c.b16 %v432, %v416
    %v609 = vpack.c.b16 %v433, %v417
    %v610 = vpack.c.b16 %v434, %v418
    %v611 = vpack.c.b16 %v435, %v419
    %v612 = vpack.c.b16 %v436, %v420
    %v613 = vpack.c.b16 %v437, %v421
    %v614 = vpack.c.b16 %v438, %v422
    %v615 = vpack.c.b16 %v439, %v423
    %v616 = vpack.c.b16 %v440, %v424
    %v617 = vpack.c.b16 %v441, %v425
    %v618 = vpack.c.b16 %v442, %v426
    %v619 = vpack.c.b16 %v459, %v443
    %v620 = vpack.c.b16 %v460, %v444
    %v621 = vpack.c.b16 %v461, %v445
    %v622 = vpack.c.b16 %v462, %v446
    %v623 = vpack.c.b16 %v463, %v447
    %v624 = vpack.c.b16 %v464, %v448
    %v625 = vpack.c.b16 %v465, %v449
    %v626 = vpack.c.b16 %v466, %v450
    %v627 = vpack.c.b16 %v467, %v451
    %v628 = vpack.c.b16 %v468, %v452
    %v629 = vpack.c.b16 %v469, %v453
    %v630 = vpack.c.b16 %v470, %v454
    %v631 = vpack.c.b16 %v471, %v455
    %v632 = vpack.c.b16 %v472, %v456
    %v633 = vpack.c.b16 %v473, %v457
    %v634 = vpack.c.b16 %v474, %v458
    %v635 = vpack.c.b16 %v491, %v475
    %v636 = vpack.c.b16 %v492, %v476
    %v637 = vpack.c.b16 %v493, %v477
    %v638 = vpack.c.b16 %v494, %v478
    %v639 = vpack.c.b16 %v495, %v479
    %v640 = vpack.c.b16 %v496, %v480
    %v641 = vpack.c.b16 %v497, %v481
    %v642 = vpack.c.b16 %v498, %v482
    %v643 = vpack.c.b16 %v499, %v483
    %v644 = vpack.c.b16 %v500, %v484
    %v645 = vpack.c.b16 %v501, %v485
    %v646 = vpack.c.b16 %v502, %v486
    %v647 = vpack.c.b16 %v503, %v487
    %v648 = vpack.c.b16 %v504, %v488
    %v649 = vpack.c.b16 %v505, %v489
    %v650 = vpack.c.b16 %v506, %v490
    %v651 = vpack.c.b16 %v523, %v507
    %v652 = vpack.c.b16 %v524, %v508
    %v653 = vpack.c.b16 %v525, %v509
    %v654 = vpack.c.b16 %v526, %v510
    %v655 = vpack.c.b16 %v527, %v511
    %v656 = vpack.c.b16 %v528, %v512
    %v657 = vpack.c.b16 %v529, %v513
    %v658 = vpack.c.b16 %v530, %v514
    %v659 = vpack.c.b16 %v531, %v515
    %v660 = vpack.c.b16 %v532, %v516
    %v661 = vpack.c.b16 %v533, %v517
    %v662 = vpack.c.b16 %v534, %v518
    %v663 = vpack.c.b16 %v535, %v519
    %v664 = vpack.c.b16 %v536, %v520
    %v665 = vpack.c.b16 %v537, %v521
    %v666 = vpack.c.b16 %v538, %v522
    %795 = vmatprep.subr.bf16.mxu0 %v652
    %796 = vmatpush1.bf16.msra.mxu0 %v651
    %797 = vmatprep.subr.bf16.mxu0 %v636
    %798 = vmatpush1.bf16.msra.mxu0 %v635
    %799 = vmatprep.subr.bf16.mxu0 %v620
    %800 = vmatpush1.bf16.msra.mxu0 %v619
    %801 = vmatprep.subr.bf16.mxu0 %v604
    %802 = vmatpush1.bf16.msra.mxu0 %v603
    %803 = vmatprep.subr.bf16.mxu0 %v588
    %804 = vmatpush1.bf16.msra.mxu0 %v587
    %805 = vmatprep.subr.bf16.mxu0 %v572
    %806 = vmatpush1.bf16.msra.mxu0 %v571
    %807 = vmatprep.subr.bf16.mxu0 %v556
    %808 = vmatpush1.bf16.msra.mxu0 %v555
    %809 = vmatprep.subr.bf16.mxu0 %v540
    %810 = vmatpush1.bf16.msra.mxu0 %v539
    %811 = vmatprep.subr.bf16.mxu0 0
    %812 = vmatpush2.bf16.msra.mxu0 0
    %813 = vmatprep.subr.bf16.mxu0 0
    %814 = vmatpush2.bf16.msra.mxu0 0
    %815 = vmatprep.subr.bf16.mxu0 0
    %816 = vmatpush2.bf16.msra.mxu0 0
    %817 = vmatprep.subr.bf16.mxu0 0
    %818 = vmatpush2.bf16.msra.mxu0 0
    %819 = vmatprep.subr.bf16.mxu0 0
    %820 = vmatpush2.bf16.msra.mxu0 0
    %821 = vmatprep.subr.bf16.mxu0 0
    %822 = vmatpush2.bf16.msra.mxu0 0
    %823 = vmatprep.subr.bf16.mxu0 0
    %824 = vmatpush2.bf16.msra.mxu0 0
    %825 = vmatprep.subr.bf16.mxu0 0
    %826 = vmatpush2.bf16.msra.mxu0 0
    %827 = vmatprep.mubr.bf16.mxu0 0
    %828 = vmatmul.mubr.bf16.gmra.mxu0 %v26
    %v829 = vpop.f32.mrf.mxu0
    %v830 = vadd.f32 0.0, %v829
    %v831 = vpop.f32.mrf.mxu0
    %v832 = vadd.f32 0.0, %v831
    %v833 = vpop.f32.mrf.mxu0
    %v834 = vpop.f32.mrf.mxu0
    %835 = vdwg.mxu0
    %836 = vmatprep.subr.bf16.mxu0 %v654
    %837 = vmatpush1.bf16.msra.mxu0 %v653
    %838 = vmatprep.subr.bf16.mxu0 %v638
    %839 = vmatpush1.bf16.msra.mxu0 %v637
    %840 = vmatprep.subr.bf16.mxu0 %v622
    %841 = vmatpush1.bf16.msra.mxu0 %v621
    %842 = vmatprep.subr.bf16.mxu0 %v606
    %843 = vmatpush1.bf16.msra.mxu0 %v605
    %844 = vmatprep.subr.bf16.mxu0 %v590
    %845 = vmatpush1.bf16.msra.mxu0 %v589
    %846 = vmatprep.subr.bf16.mxu0 %v574
    %847 = vmatpush1.bf16.msra.mxu0 %v573
    %848 = vmatprep.subr.bf16.mxu0 %v558
    %849 = vmatpush1.bf16.msra.mxu0 %v557
    %850 = vmatprep.subr.bf16.mxu0 %v542
    %851 = vmatpush1.bf16.msra.mxu0 %v541
    %852 = vmatprep.subr.bf16.mxu0 0
    %853 = vmatpush2.bf16.msra.mxu0 0
    %854 = vmatprep.subr.bf16.mxu0 0
    %855 = vmatpush2.bf16.msra.mxu0 0
    %856 = vmatprep.subr.bf16.mxu0 0
    %857 = vmatpush2.bf16.msra.mxu0 0
    %858 = vmatprep.subr.bf16.mxu0 0
    %859 = vmatpush2.bf16.msra.mxu0 0
    %860 = vmatprep.subr.bf16.mxu0 0
    %861 = vmatpush2.bf16.msra.mxu0 0
    %862 = vmatprep.subr.bf16.mxu0 0
    %863 = vmatpush2.bf16.msra.mxu0 0
    %864 = vmatprep.subr.bf16.mxu0 0
    %865 = vmatpush2.bf16.msra.mxu0 0
    %866 = vmatprep.subr.bf16.mxu0 0
    %867 = vmatpush2.bf16.msra.mxu0 0
    %868 = vmatprep.mubr.bf16.mxu0 0
    %869 = vmatmul.mubr.bf16.gmra.mxu0 %v26
    %v870 = vpop.f32.mrf.mxu0
    %v871 = vadd.f32 0.0, %v870
    %v872 = vpop.f32.mrf.mxu0
    %v873 = vadd.f32 0.0, %v872
    %v874 = vpop.f32.mrf.mxu0
    %v875 = vpop.f32.mrf.mxu0
    %876 = vdwg.mxu0
    %877 = vmatprep.subr.bf16.mxu0 %v656
    %878 = vmatpush1.bf16.msra.mxu0 %v655
    %879 = vmatprep.subr.bf16.mxu0 %v640
    %880 = vmatpush1.bf16.msra.mxu0 %v639
    %881 = vmatprep.subr.bf16.mxu0 %v624
    %882 = vmatpush1.bf16.msra.mxu0 %v623
    %883 = vmatprep.subr.bf16.mxu0 %v608
    %884 = vmatpush1.bf16.msra.mxu0 %v607
    %885 = vmatprep.subr.bf16.mxu0 %v592
    %886 = vmatpush1.bf16.msra.mxu0 %v591
    %887 = vmatprep.subr.bf16.mxu0 %v576
    %888 = vmatpush1.bf16.msra.mxu0 %v575
    %889 = vmatprep.subr.bf16.mxu0 %v560
    %890 = vmatpush1.bf16.msra.mxu0 %v559
    %891 = vmatprep.subr.bf16.mxu0 %v544
    %892 = vmatpush1.bf16.msra.mxu0 %v543
    %893 = vmatprep.subr.bf16.mxu0 0
    %894 = vmatpush2.bf16.msra.mxu0 0
    %895 = vmatprep.subr.bf16.mxu0 0
    %896 = vmatpush2.bf16.msra.mxu0 0
    %897 = vmatprep.subr.bf16.mxu0 0
    %898 = vmatpush2.bf16.msra.mxu0 0
    %899 = vmatprep.subr.bf16.mxu0 0
    %900 = vmatpush2.bf16.msra.mxu0 0
    %901 = vmatprep.subr.bf16.mxu0 0
    %902 = vmatpush2.bf16.msra.mxu0 0
    %903 = vmatprep.subr.bf16.mxu0 0
    %904 = vmatpush2.bf16.msra.mxu0 0
    %905 = vmatprep.subr.bf16.mxu0 0
    %906 = vmatpush2.bf16.msra.mxu0 0
    %907 = vmatprep.subr.bf16.mxu0 0
    %908 = vmatpush2.bf16.msra.mxu0 0
    %909 = vmatprep.mubr.bf16.mxu0 0
    %910 = vmatmul.mubr.bf16.gmra.mxu0 %v26
    %v911 = vpop.f32.mrf.mxu0
    %v912 = vadd.f32 0.0, %v911
    %v913 = vpop.f32.mrf.mxu0
    %v914 = vadd.f32 0.0, %v913
    %v915 = vpop.f32.mrf.mxu0
    %v916 = vpop.f32.mrf.mxu0
    %917 = vdwg.mxu0
    %918 = vmatprep.subr.bf16.mxu0 %v658
    %919 = vmatpush1.bf16.msra.mxu0 %v657
    %920 = vmatprep.subr.bf16.mxu0 %v642
    %921 = vmatpush1.bf16.msra.mxu0 %v641
    %922 = vmatprep.subr.bf16.mxu0 %v626
    %923 = vmatpush1.bf16.msra.mxu0 %v625
    %924 = vmatprep.subr.bf16.mxu0 %v610
    %925 = vmatpush1.bf16.msra.mxu0 %v609
    %926 = vmatprep.subr.bf16.mxu0 %v594
    %927 = vmatpush1.bf16.msra.mxu0 %v593
    %928 = vmatprep.subr.bf16.mxu0 %v578
    %929 = vmatpush1.bf16.msra.mxu0 %v577
    %930 = vmatprep.subr.bf16.mxu0 %v562
    %931 = vmatpush1.bf16.msra.mxu0 %v561
    %932 = vmatprep.subr.bf16.mxu0 %v546
    %933 = vmatpush1.bf16.msra.mxu0 %v545
    %934 = vmatprep.subr.bf16.mxu0 0
    %935 = vmatpush2.bf16.msra.mxu0 0
    %936 = vmatprep.subr.bf16.mxu0 0
    %937 = vmatpush2.bf16.msra.mxu0 0
    %938 = vmatprep.subr.bf16.mxu0 0
    %939 = vmatpush2.bf16.msra.mxu0 0
    %940 = vmatprep.subr.bf16.mxu0 0
    %941 = vmatpush2.bf16.msra.mxu0 0
    %942 = vmatprep.subr.bf16.mxu0 0
    %943 = vmatpush2.bf16.msra.mxu0 0
    %944 = vmatprep.subr.bf16.mxu0 0
    %945 = vmatpush2.bf16.msra.mxu0 0
    %946 = vmatprep.subr.bf16.mxu0 0
    %947 = vmatpush2.bf16.msra.mxu0 0
    %948 = vmatprep.subr.bf16.mxu0 0
    %949 = vmatpush2.bf16.msra.mxu0 0
    %950 = vmatprep.mubr.bf16.mxu0 0
    %951 = vmatmul.mubr.bf16.gmra.mxu0 %v26
    %v952 = vpop.f32.mrf.mxu0
    %v953 = vadd.f32 0.0, %v952
    %v954 = vpop.f32.mrf.mxu0
    %v955 = vadd.f32 0.0, %v954
    %v956 = vpop.f32.mrf.mxu0
    %v957 = vpop.f32.mrf.mxu0
    %958 = vdwg.mxu0
    %959 = vmatprep.subr.bf16.mxu0 %v660
    %960 = vmatpush1.bf16.msra.mxu0 %v659
    %961 = vmatprep.subr.bf16.mxu0 %v644
    %962 = vmatpush1.bf16.msra.mxu0 %v643
    %963 = vmatprep.subr.bf16.mxu0 %v628
    %964 = vmatpush1.bf16.msra.mxu0 %v627
    %965 = vmatprep.subr.bf16.mxu0 %v612
    %966 = vmatpush1.bf16.msra.mxu0 %v611
    %967 = vmatprep.subr.bf16.mxu0 %v596
    %968 = vmatpush1.bf16.msra.mxu0 %v595
    %969 = vmatprep.subr.bf16.mxu0 %v580
    %970 = vmatpush1.bf16.msra.mxu0 %v579
    %971 = vmatprep.subr.bf16.mxu0 %v564
    %972 = vmatpush1.bf16.msra.mxu0 %v563
    %973 = vmatprep.subr.bf16.mxu0 %v548
    %974 = vmatpush1.bf16.msra.mxu0 %v547
    %975 = vmatprep.subr.bf16.mxu0 0
    %976 = vmatpush2.bf16.msra.mxu0 0
    %977 = vmatprep.subr.bf16.mxu0 0
    %978 = vmatpush2.bf16.msra.mxu0 0
    %979 = vmatprep.subr.bf16.mxu0 0
    %980 = vmatpush2.bf16.msra.mxu0 0
    %981 = vmatprep.subr.bf16.mxu0 0
    %982 = vmatpush2.bf16.msra.mxu0 0
    %983 = vmatprep.subr.bf16.mxu0 0
    %984 = vmatpush2.bf16.msra.mxu0 0
    %985 = vmatprep.subr.bf16.mxu0 0
    %986 = vmatpush2.bf16.msra.mxu0 0
    %987 = vmatprep.subr.bf16.mxu0 0
    %988 = vmatpush2.bf16.msra.mxu0 0
    %989 = vmatprep.subr.bf16.mxu0 0
    %990 = vmatpush2.bf16.msra.mxu0 0
    %991 = vmatprep.mubr.bf16.mxu0 0
    %992 = vmatmul.mubr.bf16.gmra.mxu0 %v26
    %v993 = vpop.f32.mrf.mxu0
    %v994 = vadd.f32 0.0, %v993
    %v995 = vpop.f32.mrf.mxu0
    %v996 = vadd.f32 0.0, %v995
    %v997 = vpop.f32.mrf.mxu0
    %v998 = vpop.f32.mrf.mxu0
    %999 = vdwg.mxu0
    %1000 = vmatprep.subr.bf16.mxu0 %v662
    %1001 = vmatpush1.bf16.msra.mxu0 %v661
    %1002 = vmatprep.subr.bf16.mxu0 %v646
    %1003 = vmatpush1.bf16.msra.mxu0 %v645
    %1004 = vmatprep.subr.bf16.mxu0 %v630
    %1005 = vmatpush1.bf16.msra.mxu0 %v629
    %1006 = vmatprep.subr.bf16.mxu0 %v614
    %1007 = vmatpush1.bf16.msra.mxu0 %v613
    %1008 = vmatprep.subr.bf16.mxu0 %v598
    %1009 = vmatpush1.bf16.msra.mxu0 %v597
    %1010 = vmatprep.subr.bf16.mxu0 %v582
    %1011 = vmatpush1.bf16.msra.mxu0 %v581
    %1012 = vmatprep.subr.bf16.mxu0 %v566
    %1013 = vmatpush1.bf16.msra.mxu0 %v565
    %1014 = vmatprep.subr.bf16.mxu0 %v550
    %1015 = vmatpush1.bf16.msra.mxu0 %v549
    %1016 = vmatprep.subr.bf16.mxu0 0
    %1017 = vmatpush2.bf16.msra.mxu0 0
    %1018 = vmatprep.subr.bf16.mxu0 0
    %1019 = vmatpush2.bf16.msra.mxu0 0
    %1020 = vmatprep.subr.bf16.mxu0 0
    %1021 = vmatpush2.bf16.msra.mxu0 0
    %1022 = vmatprep.subr.bf16.mxu0 0
    %1023 = vmatpush2.bf16.msra.mxu0 0
    %1024 = vmatprep.subr.bf16.mxu0 0
    %1025 = vmatpush2.bf16.msra.mxu0 0
    %1026 = vmatprep.subr.bf16.mxu0 0
    %1027 = vmatpush2.bf16.msra.mxu0 0
    %1028 = vmatprep.subr.bf16.mxu0 0
    %1029 = vmatpush2.bf16.msra.mxu0 0
    %1030 = vmatprep.subr.bf16.mxu0 0
    %1031 = vmatpush2.bf16.msra.mxu0 0
    %1032 = vmatprep.mubr.bf16.mxu0 0
    %1033 = vmatmul.mubr.bf16.gmra.mxu0 %v26
    %v1034 = vpop.f32.mrf.mxu0
    %v1035 = vadd.f32 0.0, %v1034
    %v1036 = vpop.f32.mrf.mxu0
    %v1037 = vadd.f32 0.0, %v1036
    %v1038 = vpop.f32.mrf.mxu0
    %v1039 = vpop.f32.mrf.mxu0
    %1040 = vdwg.mxu0
    %1041 = vmatprep.subr.bf16.mxu0 %v664
    %1042 = vmatpush1.bf16.msra.mxu0 %v663
    %1043 = vmatprep.subr.bf16.mxu0 %v648
    %1044 = vmatpush1.bf16.msra.mxu0 %v647
    %1045 = vmatprep.subr.bf16.mxu0 %v632
    %1046 = vmatpush1.bf16.msra.mxu0 %v631
    %1047 = vmatprep.subr.bf16.mxu0 %v616
    %1048 = vmatpush1.bf16.msra.mxu0 %v615
    %1049 = vmatprep.subr.bf16.mxu0 %v600
    %1050 = vmatpush1.bf16.msra.mxu0 %v599
    %1051 = vmatprep.subr.bf16.mxu0 %v584
    %1052 = vmatpush1.bf16.msra.mxu0 %v583
    %1053 = vmatprep.subr.bf16.mxu0 %v568
    %1054 = vmatpush1.bf16.msra.mxu0 %v567
    %1055 = vmatprep.subr.bf16.mxu0 %v552
    %1056 = vmatpush1.bf16.msra.mxu0 %v551
    %1057 = vmatprep.subr.bf16.mxu0 0
    %1058 = vmatpush2.bf16.msra.mxu0 0
    %1059 = vmatprep.subr.bf16.mxu0 0
    %1060 = vmatpush2.bf16.msra.mxu0 0
    %1061 = vmatprep.subr.bf16.mxu0 0
    %1062 = vmatpush2.bf16.msra.mxu0 0
    %1063 = vmatprep.subr.bf16.mxu0 0
    %1064 = vmatpush2.bf16.msra.mxu0 0
    %1065 = vmatprep.subr.bf16.mxu0 0
    %1066 = vmatpush2.bf16.msra.mxu0 0
    %1067 = vmatprep.subr.bf16.mxu0 0
    %1068 = vmatpush2.bf16.msra.mxu0 0
    %1069 = vmatprep.subr.bf16.mxu0 0
    %1070 = vmatpush2.bf16.msra.mxu0 0
    %1071 = vmatprep.subr.bf16.mxu0 0
    %1072 = vmatpush2.bf16.msra.mxu0 0
    %1073 = vmatprep.mubr.bf16.mxu0 0
    %1074 = vmatmul.mubr.bf16.gmra.mxu0 %v26
    %v1075 = vpop.f32.mrf.mxu0
    %v1076 = vadd.f32 0.0, %v1075
    %v1077 = vpop.f32.mrf.mxu0
    %v1078 = vadd.f32 0.0, %v1077
    %v1079 = vpop.f32.mrf.mxu0
    %v1080 = vpop.f32.mrf.mxu0
    %1081 = vdwg.mxu0
    %1082 = vmatprep.subr.bf16.mxu0 %v666
    %1083 = vmatpush1.bf16.msra.mxu0 %v665
    %1084 = vmatprep.subr.bf16.mxu0 %v650
    %1085 = vmatpush1.bf16.msra.mxu0 %v649
    %1086 = vmatprep.subr.bf16.mxu0 %v634
    %1087 = vmatpush1.bf16.msra.mxu0 %v633
    %1088 = vmatprep.subr.bf16.mxu0 %v618
    %1089 = vmatpush1.bf16.msra.mxu0 %v617
    %1090 = vmatprep.subr.bf16.mxu0 %v602
    %1091 = vmatpush1.bf16.msra.mxu0 %v601
    %1092 = vmatprep.subr.bf16.mxu0 %v586
    %1093 = vmatpush1.bf16.msra.mxu0 %v585
    %1094 = vmatprep.subr.bf16.mxu0 %v570
    %1095 = vmatpush1.bf16.msra.mxu0 %v569
    %1096 = vmatprep.subr.bf16.mxu0 %v554
    %1097 = vmatpush1.bf16.msra.mxu0 %v553
    %1098 = vmatprep.subr.bf16.mxu0 0
    %1099 = vmatpush2.bf16.msra.mxu0 0
    %1100 = vmatprep.subr.bf16.mxu0 0
    %1101 = vmatpush2.bf16.msra.mxu0 0
    %1102 = vmatprep.subr.bf16.mxu0 0
    %1103 = vmatpush2.bf16.msra.mxu0 0
    %1104 = vmatprep.subr.bf16.mxu0 0
    %1105 = vmatpush2.bf16.msra.mxu0 0
    %1106 = vmatprep.subr.bf16.mxu0 0
    %1107 = vmatpush2.bf16.msra.mxu0 0
    %1108 = vmatprep.subr.bf16.mxu0 0
    %1109 = vmatpush2.bf16.msra.mxu0 0
    %1110 = vmatprep.subr.bf16.mxu0 0
    %1111 = vmatpush2.bf16.msra.mxu0 0
    %1112 = vmatprep.subr.bf16.mxu0 0
    %1113 = vmatpush2.bf16.msra.mxu0 0
    %1114 = vmatprep.mubr.bf16.mxu0 0
    %1115 = vmatmul.mubr.bf16.gmra.mxu0 %v26
    %v1116 = vpop.f32.mrf.mxu0
    %v1117 = vadd.f32 0.0, %v1116
    %v1118 = vpop.f32.mrf.mxu0
    %v1119 = vadd.f32 0.0, %v1118
    %v1120 = vpop.f32.mrf.mxu0
    %v1121 = vpop.f32.mrf.mxu0
    %1122 = vdwg.mxu0
    %v1139 = vcombine.low %v830, %v832
    %v1140 = vcombine.low %v871, %v873
    %v1142 = vunpack.c.l.s4 1983009808
    %v1143 = vunpack.c.0.s8 %v1142
    %v1144 = vlaneseq
    %v1145 = vshrl.u32 %v1144, 7
    %v1146 = vsub.s32 %v1143, %v1145
    %v1147 = vrot.slane %v1139, %v1146
    %v1149 = vunpack.c.l.s4 1983009808
    %v1150 = vunpack.c.0.s8 %v1149
    %v1151 = vlaneseq
    %v1152 = vshrl.u32 %v1151, 7
    %v1153 = vsub.s32 %v1150, %v1152
    %v1154 = vrot.slane %v1140, %v1153
    %v1155 = vcombine.low %v1147, %v1154
    %v1156 = vcombine.low %v912, %v914
    %v1157 = vcombine.low %v953, %v955
    %v1159 = vunpack.c.l.s4 1983009808
    %v1160 = vunpack.c.0.s8 %v1159
    %v1161 = vlaneseq
    %v1162 = vshrl.u32 %v1161, 7
    %v1163 = vsub.s32 %v1160, %v1162
    %v1164 = vrot.slane %v1156, %v1163
    %v1166 = vunpack.c.l.s4 1983009808
    %v1167 = vunpack.c.0.s8 %v1166
    %v1168 = vlaneseq
    %v1169 = vshrl.u32 %v1168, 7
    %v1170 = vsub.s32 %v1167, %v1169
    %v1171 = vrot.slane %v1157, %v1170
    %v1172 = vcombine.low %v1164, %v1171
    %v1173 = vcombine.low %v994, %v996
    %v1174 = vcombine.low %v1035, %v1037
    %v1176 = vunpack.c.l.s4 1983009808
    %v1177 = vunpack.c.0.s8 %v1176
    %v1178 = vlaneseq
    %v1179 = vshrl.u32 %v1178, 7
    %v1180 = vsub.s32 %v1177, %v1179
    %v1181 = vrot.slane %v1173, %v1180
    %v1183 = vunpack.c.l.s4 1983009808
    %v1184 = vunpack.c.0.s8 %v1183
    %v1185 = vlaneseq
    %v1186 = vshrl.u32 %v1185, 7
    %v1187 = vsub.s32 %v1184, %v1186
    %v1188 = vrot.slane %v1174, %v1187
    %v1189 = vcombine.low %v1181, %v1188
    %v1190 = vcombine.low %v1076, %v1078
    %v1191 = vcombine.low %v1117, %v1119
    %v1193 = vunpack.c.l.s4 1983009808
    %v1194 = vunpack.c.0.s8 %v1193
    %v1195 = vlaneseq
    %v1196 = vshrl.u32 %v1195, 7
    %v1197 = vsub.s32 %v1194, %v1196
    %v1198 = vrot.slane %v1190, %v1197
    %v1200 = vunpack.c.l.s4 1983009808
    %v1201 = vunpack.c.0.s8 %v1200
    %v1202 = vlaneseq
    %v1203 = vshrl.u32 %v1202, 7
    %v1204 = vsub.s32 %v1201, %v1203
    %v1205 = vrot.slane %v1191, %v1204
    %v1206 = vcombine.low %v1198, %v1205
    %1211 = vst [vmem:[%s2] sm:$0xff] %v1155
    %1212 = vst [vmem:[%s2 + $0x8] sm:$0xff] %v1172
    %1213 = vst [vmem:[%s2 + $0x10] sm:$0xff] %v1189
    %1214 = vst [vmem:[%s2 + $0x18] sm:$0xff] %v1206
    // Predicated region
    $region14: #{mnist_generator_forward.5} parent=1 // pred_check
      _
    $region15: #{mnist_generator_forward.5} parent=1 // pred_check_branch
      %1216 = sbr.rel (0) target = $region17
    $region16: #{mnist_generator_forward.5} parent=1 // pred_region
      _
    $region17: #{mnist_generator_forward.5} parent=1 // pred_fallthru
      _
    // Predicated region
    $region18: #{mnist_generator_forward.5} parent=1 // pred_check
      _
    $region19: #{mnist_generator_forward.5} parent=1 // pred_check_branch
      %1218 = sbr.rel (0) target = $region21
    $region20: #{mnist_generator_forward.5} parent=1 // pred_region
      _
    $region21: #{mnist_generator_forward.5} parent=1 // pred_fallthru
      _
    %1219 = vsyncpa [#allocation3], 1

// kernel: mnist_generator_forward.7
$region0: #{mnist_generator_forward.7}
  #allocation0 [shape = 'u32[]', space=smem, size = 0x4, offset = 0x4, fixed_abs, tag = 'smem constant byte address 0x4 - core index']
  #allocation1 [shape = 'u32[144,128]{1,0:T(1,128)}', space=vmem, size = 0x12000, scoped, tag = 'internal scratch']
  %s0 = inlined_call_operand.vmem [shape: f32[98,64], index: 0, kind: input, shape index: {}]
  %s1 = inlined_call_operand.vmem [shape: f32[1,64], index: 1, kind: input, shape index: {}]
  %s2 = inlined_call_operand.vmem [shape: f32[1,64], index: 2, kind: input, shape index: {}]
  %s3 = inlined_call_operand.vmem [shape: bf16[64,512], index: 3, kind: input, shape index: {}]
  %s4 = inlined_call_operand.vmem [shape: f32[98,512], index: 4, kind: output, shape index: {}]
  %s5 = sld [smem:[#allocation0]]
  $region26: #{mnist_generator_forward.7} parent=0
    _
  %s7 = ssub.s32 1, %s5
  %s8 = scalar_select 0, %s7, %s5
  // Predicated region
  $region2: #{mnist_generator_forward.7} parent=0 // pred_check
    _
  $region3: #{mnist_generator_forward.7} parent=0 // pred_check_branch
    %10 = sbr.rel (0) target = $region5
  $region4: #{mnist_generator_forward.7} parent=0 // pred_region
    _
  $region5: #{mnist_generator_forward.7} parent=0 // pred_fallthru
    _
  // Predicated region
  $region6: #{mnist_generator_forward.7} parent=0 // pred_check
    _
  $region7: #{mnist_generator_forward.7} parent=0 // pred_check_branch
    %12 = sbr.rel (0) target = $region9
  $region8: #{mnist_generator_forward.7} parent=0 // pred_region
    _
  $region9: #{mnist_generator_forward.7} parent=0 // pred_fallthru
    _
  // Predicated region
  $region10: #{mnist_generator_forward.7} parent=0 // pred_check
    _
  $region11: #{mnist_generator_forward.7} parent=0 // pred_check_branch
    %14 = sbr.rel (0) target = $region13
  $region12: #{mnist_generator_forward.7} parent=0 // pred_region
    _
  $region13: #{mnist_generator_forward.7} parent=0 // pred_fallthru
    _
  // Predicated region
  $region14: #{mnist_generator_forward.7} parent=0 // pred_check
    _
  $region15: #{mnist_generator_forward.7} parent=0 // pred_check_branch
    %16 = sbr.rel (0) target = $region17
  $region16: #{mnist_generator_forward.7} parent=0 // pred_region
    _
  $region17: #{mnist_generator_forward.7} parent=0 // pred_fallthru
    _
  %v18 = vld [vmem:[%s0] sm:$0xff]
  %v19 = vld [vmem:[%s0 + $0x8] sm:$0xff]
  %v20 = vld [vmem:[%s0 + $0x10] sm:$0xff]
  %v21 = vld [vmem:[%s0 + $0x18] sm:$0xff]
  %v22 = vld [vmem:[%s0 + $0x20] sm:$0xff]
  %v23 = vld [vmem:[%s0 + $0x28] sm:$0xff]
  %v24 = vld [vmem:[%s0 + $0x30] sm:$0xff]
  %v25 = vld [vmem:[%s0 + $0x38] sm:$0xff]
  %v26 = vld [vmem:[%s0 + $0x40] sm:$0xff]
  %v27 = vld [vmem:[%s0 + $0x48] sm:$0xff]
  %v28 = vld [vmem:[%s0 + $0x50] sm:$0xff]
  %v29 = vld [vmem:[%s0 + $0x58] sm:$0xff]
  %v30 = vld [vmem:[%s0 + $0x60] sm:$0x3]
  %vm31 = vcmask 523264
  %v32 = vsel %vm31, %v18, 0.0
  %v33 = vsel %vm31, %v19, 0.0
  %v34 = vadd.f32 %v32, %v33
  %v35 = vsel %vm31, %v20, 0.0
  %v36 = vadd.f32 %v34, %v35
  %v37 = vsel %vm31, %v21, 0.0
  %v38 = vadd.f32 %v36, %v37
  %v39 = vsel %vm31, %v22, 0.0
  %v40 = vadd.f32 %v38, %v39
  %v41 = vsel %vm31, %v23, 0.0
  %v42 = vadd.f32 %v40, %v41
  %v43 = vsel %vm31, %v24, 0.0
  %v44 = vadd.f32 %v42, %v43
  %v45 = vsel %vm31, %v25, 0.0
  %v46 = vadd.f32 %v44, %v45
  %v47 = vsel %vm31, %v26, 0.0
  %v48 = vadd.f32 %v46, %v47
  %v49 = vsel %vm31, %v27, 0.0
  %v50 = vadd.f32 %v48, %v49
  %v51 = vsel %vm31, %v28, 0.0
  %v52 = vadd.f32 %v50, %v51
  %v53 = vsel %vm31, %v29, 0.0
  %v54 = vadd.f32 %v52, %v53
  %vm55 = vcmask 517120
  %v56 = vsel %vm55, %v30, 0.0
  %v57 = vadd.f32 %v54, %v56
  %v58 = vrot.slane %v57, 4
  %v59 = vadd.f32 %v57, %v58
  %v60 = vrot.slane %v59, 2
  %v61 = vadd.f32 %v59, %v60
  %v62 = vrot.slane %v61, 1
  %v63 = vadd.f32 %v61, %v62
  %v64 = vrcp.pop 98.0
  %v65 = vmul.f32 %v63, %v64
  %v66 = vsub.f32 %v18, %v65
  %v67 = vsub.f32 %v19, %v65
  %v68 = vsub.f32 %v20, %v65
  %v69 = vsub.f32 %v21, %v65
  %v70 = vsub.f32 %v22, %v65
  %v71 = vsub.f32 %v23, %v65
  %v72 = vsub.f32 %v24, %v65
  %v73 = vsub.f32 %v25, %v65
  %v74 = vsub.f32 %v26, %v65
  %v75 = vsub.f32 %v27, %v65
  %v76 = vsub.f32 %v28, %v65
  %v77 = vsub.f32 %v29, %v65
  %v78 = vsub.f32 %v30, %v65
  %v79 = vmul.f32 %v66, %v66
  %v80 = vmul.f32 %v67, %v67
  %v81 = vmul.f32 %v68, %v68
  %v82 = vmul.f32 %v69, %v69
  %v83 = vmul.f32 %v70, %v70
  %v84 = vmul.f32 %v71, %v71
  %v85 = vmul.f32 %v72, %v72
  %v86 = vmul.f32 %v73, %v73
  %v87 = vmul.f32 %v74, %v74
  %v88 = vmul.f32 %v75, %v75
  %v89 = vmul.f32 %v76, %v76
  %v90 = vmul.f32 %v77, %v77
  %v91 = vmul.f32 %v78, %v78
  %v92 = vsel %vm31, %v79, 0.0
  %v93 = vsel %vm31, %v80, 0.0
  %v94 = vadd.f32 %v92, %v93
  %v95 = vsel %vm31, %v81, 0.0
  %v96 = vadd.f32 %v94, %v95
  %v97 = vsel %vm31, %v82, 0.0
  %v98 = vadd.f32 %v96, %v97
  %v99 = vsel %vm31, %v83, 0.0
  %v100 = vadd.f32 %v98, %v99
  %v101 = vsel %vm31, %v84, 0.0
  %v102 = vadd.f32 %v100, %v101
  %v103 = vsel %vm31, %v85, 0.0
  %v104 = vadd.f32 %v102, %v103
  %v105 = vsel %vm31, %v86, 0.0
  %v106 = vadd.f32 %v104, %v105
  %v107 = vsel %vm31, %v87, 0.0
  %v108 = vadd.f32 %v106, %v107
  %v109 = vsel %vm31, %v88, 0.0
  %v110 = vadd.f32 %v108, %v109
  %v111 = vsel %vm31, %v89, 0.0
  %v112 = vadd.f32 %v110, %v111
  %v113 = vsel %vm31, %v90, 0.0
  %v114 = vadd.f32 %v112, %v113
  %v115 = vsel %vm55, %v91, 0.0
  %v116 = vadd.f32 %v114, %v115
  %v117 = vrot.slane %v116, 4
  %v118 = vadd.f32 %v116, %v117
  %v119 = vrot.slane %v118, 2
  %v120 = vadd.f32 %v118, %v119
  %v121 = vrot.slane %v120, 1
  %v122 = vadd.f32 %v120, %v121
  %v123 = vmul.f32 %v122, %v64
  %v124 = vadd.f32 %v123, 1e-05
  %v125 = vrsqrt.pop %v124
  %v126 = vmul.f32 %v66, %v125
  %v127 = vmul.f32 %v67, %v125
  %v128 = vmul.f32 %v68, %v125
  %v129 = vmul.f32 %v69, %v125
  %v130 = vmul.f32 %v70, %v125
  %v131 = vmul.f32 %v71, %v125
  %v132 = vmul.f32 %v72, %v125
  %v133 = vmul.f32 %v73, %v125
  %v134 = vmul.f32 %v74, %v125
  %v135 = vmul.f32 %v75, %v125
  %v136 = vmul.f32 %v76, %v125
  %v137 = vmul.f32 %v77, %v125
  %v138 = vmul.f32 %v78, %v125
  %v139 = vld [vmem:[%s1] sm:$0x1]
  %v141 = vlaneseq
  %v142 = vshrl.u32 %v141, 7
  %v143 = vsub.s32 0, %v142
  %v144 = vrot.slane %v139, %v143
  %v146 = vmul.f32 %v126, %v144
  %v147 = vmul.f32 %v127, %v144
  %v148 = vmul.f32 %v128, %v144
  %v149 = vmul.f32 %v129, %v144
  %v150 = vmul.f32 %v130, %v144
  %v151 = vmul.f32 %v131, %v144
  %v152 = vmul.f32 %v132, %v144
  %v153 = vmul.f32 %v133, %v144
  %v154 = vmul.f32 %v134, %v144
  %v155 = vmul.f32 %v135, %v144
  %v156 = vmul.f32 %v136, %v144
  %v157 = vmul.f32 %v137, %v144
  %v158 = vmul.f32 %v138, %v144
  %v159 = vld [vmem:[%s2] sm:$0x1]
  %v161 = vlaneseq
  %v162 = vshrl.u32 %v161, 7
  %v163 = vsub.s32 0, %v162
  %v164 = vrot.slane %v159, %v163
  %v166 = vadd.f32 %v146, %v164
  %v167 = vadd.f32 %v147, %v164
  %v168 = vadd.f32 %v148, %v164
  %v169 = vadd.f32 %v149, %v164
  %v170 = vadd.f32 %v150, %v164
  %v171 = vadd.f32 %v151, %v164
  %v172 = vadd.f32 %v152, %v164
  %v173 = vadd.f32 %v153, %v164
  %v174 = vadd.f32 %v154, %v164
  %v175 = vadd.f32 %v155, %v164
  %v176 = vadd.f32 %v156, %v164
  %v177 = vadd.f32 %v157, %v164
  %v178 = vadd.f32 %v158, %v164
  %v179 = vmax.f32 %v166, 0.0
  %v180 = vmax.f32 %v167, 0.0
  %v181 = vmax.f32 %v168, 0.0
  %v182 = vmax.f32 %v169, 0.0
  %v183 = vmax.f32 %v170, 0.0
  %v184 = vmax.f32 %v171, 0.0
  %v185 = vmax.f32 %v172, 0.0
  %v186 = vmax.f32 %v173, 0.0
  %v187 = vmax.f32 %v174, 0.0
  %v188 = vmax.f32 %v175, 0.0
  %v189 = vmax.f32 %v176, 0.0
  %v190 = vmax.f32 %v177, 0.0
  %v191 = vmax.f32 %v178, 0.0
  %v192 = vpack.c.bf16 %v180, %v179
  %v193 = vpack.c.bf16 %v182, %v181
  %v194 = vpack.c.bf16 %v184, %v183
  %v195 = vpack.c.bf16 %v186, %v185
  %v196 = vpack.c.bf16 %v188, %v187
  %v197 = vpack.c.bf16 %v190, %v189
  %v198 = vpack.c.bf16 %v191, %v191
  %v199 = vld [vmem:[%s3] sm:$0xff]
  %v200 = vld [vmem:[%s3 + $0x8] sm:$0xff]
  %v201 = vld [vmem:[%s3 + $0x10] sm:$0xff]
  %v202 = vld [vmem:[%s3 + $0x18] sm:$0xff]
  %v203 = vld [vmem:[%s3 + $0x20] sm:$0xff]
  %v204 = vld [vmem:[%s3 + $0x28] sm:$0xff]
  %v205 = vld [vmem:[%s3 + $0x30] sm:$0xff]
  %v206 = vld [vmem:[%s3 + $0x38] sm:$0xff]
  %v207 = vld [vmem:[%s3 + $0x40] sm:$0xff]
  %v208 = vld [vmem:[%s3 + $0x48] sm:$0xff]
  %v209 = vld [vmem:[%s3 + $0x50] sm:$0xff]
  %v210 = vld [vmem:[%s3 + $0x58] sm:$0xff]
  %v211 = vld [vmem:[%s3 + $0x60] sm:$0xff]
  %v212 = vld [vmem:[%s3 + $0x68] sm:$0xff]
  %v213 = vld [vmem:[%s3 + $0x70] sm:$0xff]
  %v214 = vld [vmem:[%s3 + $0x78] sm:$0xff]
  %v231 = vunpack.c.l.b16 %v199
  %v232 = vunpack.c.h.b16 %v199
  %v233 = vunpack.c.l.b16 %v200
  %v234 = vunpack.c.h.b16 %v200
  %v235 = vunpack.c.l.b16 %v201
  %v236 = vunpack.c.h.b16 %v201
  %v237 = vunpack.c.l.b16 %v202
  %v238 = vunpack.c.h.b16 %v202
  %v239 = vunpack.c.l.b16 %v203
  %v240 = vunpack.c.h.b16 %v203
  %v241 = vunpack.c.l.b16 %v204
  %v242 = vunpack.c.h.b16 %v204
  %v243 = vunpack.c.l.b16 %v205
  %v244 = vunpack.c.h.b16 %v205
  %v245 = vunpack.c.l.b16 %v206
  %v246 = vunpack.c.h.b16 %v206
  %v247 = vunpack.c.l.b16 %v207
  %v248 = vunpack.c.h.b16 %v207
  %v249 = vunpack.c.l.b16 %v208
  %v250 = vunpack.c.h.b16 %v208
  %v251 = vunpack.c.l.b16 %v209
  %v252 = vunpack.c.h.b16 %v209
  %v253 = vunpack.c.l.b16 %v210
  %v254 = vunpack.c.h.b16 %v210
  %v255 = vunpack.c.l.b16 %v211
  %v256 = vunpack.c.h.b16 %v211
  %v257 = vunpack.c.l.b16 %v212
  %v258 = vunpack.c.h.b16 %v212
  %v259 = vunpack.c.l.b16 %v213
  %v260 = vunpack.c.h.b16 %v213
  %v261 = vunpack.c.l.b16 %v214
  %v262 = vunpack.c.h.b16 %v214
  %v263 = vpack.c.b16 %v235, %v231
  %v264 = vpack.c.b16 %v236, %v232
  %v265 = vpack.c.b16 %v237, %v233
  %v266 = vpack.c.b16 %v238, %v234
  %v267 = vpack.c.b16 %v243, %v239
  %v268 = vpack.c.b16 %v244, %v240
  %v269 = vpack.c.b16 %v245, %v241
  %v270 = vpack.c.b16 %v246, %v242
  %v271 = vpack.c.b16 %v251, %v247
  %v272 = vpack.c.b16 %v252, %v248
  %v273 = vpack.c.b16 %v253, %v249
  %v274 = vpack.c.b16 %v254, %v250
  %v275 = vpack.c.b16 %v259, %v255
  %v276 = vpack.c.b16 %v260, %v256
  %v277 = vpack.c.b16 %v261, %v257
  %v278 = vpack.c.b16 %v262, %v258
  %v296 = vsel %vm31, %v192, 0
  %v299 = vsel %vm31, %v193, 0
  %v302 = vsel %vm31, %v194, 0
  %v305 = vsel %vm31, %v195, 0
  %v308 = vsel %vm31, %v196, 0
  %v311 = vsel %vm31, %v197, 0
  %v314 = vsel %vm31, %v198, 0
  %316 = vmatprep.subr.bf16.mxu0 0
  %317 = vmatpush1.bf16.msra.mxu0 0
  %318 = vmatprep.subr.bf16.mxu0 0
  %319 = vmatpush1.bf16.msra.mxu0 0
  %320 = vmatprep.subr.bf16.mxu0 0
  %321 = vmatpush1.bf16.msra.mxu0 0
  %322 = vmatprep.subr.bf16.mxu0 0
  %323 = vmatpush1.bf16.msra.mxu0 0
  %324 = vmatprep.subr.bf16.mxu0 %v276
  %325 = vmatpush1.bf16.msra.mxu0 %v275
  %326 = vmatprep.subr.bf16.mxu0 %v272
  %327 = vmatpush1.bf16.msra.mxu0 %v271
  %328 = vmatprep.subr.bf16.mxu0 %v268
  %329 = vmatpush1.bf16.msra.mxu0 %v267
  %330 = vmatprep.subr.bf16.mxu0 %v264
  %331 = vmatpush1.bf16.msra.mxu0 %v263
  %332 = vmatprep.subr.bf16.mxu0 0
  %333 = vmatpush2.bf16.msra.mxu0 0
  %334 = vmatprep.subr.bf16.mxu0 0
  %335 = vmatpush2.bf16.msra.mxu0 0
  %336 = vmatprep.subr.bf16.mxu0 0
  %337 = vmatpush2.bf16.msra.mxu0 0
  %338 = vmatprep.subr.bf16.mxu0 0
  %339 = vmatpush2.bf16.msra.mxu0 0
  %340 = vmatprep.subr.bf16.mxu0 0
  %341 = vmatpush2.bf16.msra.mxu0 0
  %342 = vmatprep.subr.bf16.mxu0 0
  %343 = vmatpush2.bf16.msra.mxu0 0
  %344 = vmatprep.subr.bf16.mxu0 0
  %345 = vmatpush2.bf16.msra.mxu0 0
  %346 = vmatprep.subr.bf16.mxu0 0
  %347 = vmatpush2.bf16.msra.mxu0 0
  %348 = vmatprep.mubr.bf16.mxu0 0
  %349 = vmatmul.mubr.bf16.gmra.mxu0 %v296
  %v350 = vpop.f32.mrf.mxu0
  %v351 = vadd.f32 0.0, %v350
  %v352 = vpop.f32.mrf.mxu0
  %v353 = vadd.f32 0.0, %v352
  %v354 = vpop.f32.mrf.mxu0
  %v355 = vadd.f32 0.0, %v354
  %v356 = vpop.f32.mrf.mxu0
  %v357 = vadd.f32 0.0, %v356
  %358 = vmatprep.mubr.bf16.mxu0 0
  %359 = vmatmul.mubr.bf16.gmra.mxu0 %v299
  %v360 = vpop.f32.mrf.mxu0
  %v361 = vadd.f32 0.0, %v360
  %v362 = vpop.f32.mrf.mxu0
  %v363 = vadd.f32 0.0, %v362
  %v364 = vpop.f32.mrf.mxu0
  %v365 = vadd.f32 0.0, %v364
  %v366 = vpop.f32.mrf.mxu0
  %v367 = vadd.f32 0.0, %v366
  %368 = vmatprep.mubr.bf16.mxu0 0
  %369 = vmatmul.mubr.bf16.gmra.mxu0 %v302
  %v370 = vpop.f32.mrf.mxu0
  %v371 = vadd.f32 0.0, %v370
  %v372 = vpop.f32.mrf.mxu0
  %v373 = vadd.f32 0.0, %v372
  %v374 = vpop.f32.mrf.mxu0
  %v375 = vadd.f32 0.0, %v374
  %v376 = vpop.f32.mrf.mxu0
  %v377 = vadd.f32 0.0, %v376
  %378 = vmatprep.mubr.bf16.mxu0 0
  %379 = vmatmul.mubr.bf16.gmra.mxu0 %v305
  %v380 = vpop.f32.mrf.mxu0
  %v381 = vadd.f32 0.0, %v380
  %v382 = vpop.f32.mrf.mxu0
  %v383 = vadd.f32 0.0, %v382
  %v384 = vpop.f32.mrf.mxu0
  %v385 = vadd.f32 0.0, %v384
  %v386 = vpop.f32.mrf.mxu0
  %v387 = vadd.f32 0.0, %v386
  %388 = vmatprep.mubr.bf16.mxu0 0
  %389 = vmatmul.mubr.bf16.gmra.mxu0 %v308
  %v390 = vpop.f32.mrf.mxu0
  %v391 = vadd.f32 0.0, %v390
  %v392 = vpop.f32.mrf.mxu0
  %v393 = vadd.f32 0.0, %v392
  %v394 = vpop.f32.mrf.mxu0
  %v395 = vadd.f32 0.0, %v394
  %v396 = vpop.f32.mrf.mxu0
  %v397 = vadd.f32 0.0, %v396
  %398 = vmatprep.mubr.bf16.mxu0 0
  %399 = vmatmul.mubr.bf16.gmra.mxu0 %v311
  %v400 = vpop.f32.mrf.mxu0
  %v401 = vadd.f32 0.0, %v400
  %v402 = vpop.f32.mrf.mxu0
  %v403 = vadd.f32 0.0, %v402
  %v404 = vpop.f32.mrf.mxu0
  %v405 = vadd.f32 0.0, %v404
  %v406 = vpop.f32.mrf.mxu0
  %v407 = vadd.f32 0.0, %v406
  %408 = vmatprep.mubr.bf16.mxu0 0
  %409 = vmatmul.mubr.bf16.gmra.mxu0 %v314
  %v410 = vpop.f32.mrf.mxu0
  %v411 = vadd.f32 0.0, %v410
  %v412 = vpop.f32.mrf.mxu0
  %v413 = vadd.f32 0.0, %v412
  %v414 = vpop.f32.mrf.mxu0
  %v415 = vpop.f32.mrf.mxu0
  %416 = vdwg.mxu0
  %417 = vmatprep.subr.bf16.mxu0 0
  %418 = vmatpush1.bf16.msra.mxu0 0
  %419 = vmatprep.subr.bf16.mxu0 0
  %420 = vmatpush1.bf16.msra.mxu0 0
  %421 = vmatprep.subr.bf16.mxu0 0
  %422 = vmatpush1.bf16.msra.mxu0 0
  %423 = vmatprep.subr.bf16.mxu0 0
  %424 = vmatpush1.bf16.msra.mxu0 0
  %425 = vmatprep.subr.bf16.mxu0 %v278
  %426 = vmatpush1.bf16.msra.mxu0 %v277
  %427 = vmatprep.subr.bf16.mxu0 %v274
  %428 = vmatpush1.bf16.msra.mxu0 %v273
  %429 = vmatprep.subr.bf16.mxu0 %v270
  %430 = vmatpush1.bf16.msra.mxu0 %v269
  %431 = vmatprep.subr.bf16.mxu0 %v266
  %432 = vmatpush1.bf16.msra.mxu0 %v265
  %433 = vmatprep.subr.bf16.mxu0 0
  %434 = vmatpush2.bf16.msra.mxu0 0
  %435 = vmatprep.subr.bf16.mxu0 0
  %436 = vmatpush2.bf16.msra.mxu0 0
  %437 = vmatprep.subr.bf16.mxu0 0
  %438 = vmatpush2.bf16.msra.mxu0 0
  %439 = vmatprep.subr.bf16.mxu0 0
  %440 = vmatpush2.bf16.msra.mxu0 0
  %441 = vmatprep.subr.bf16.mxu0 0
  %442 = vmatpush2.bf16.msra.mxu0 0
  %443 = vmatprep.subr.bf16.mxu0 0
  %444 = vmatpush2.bf16.msra.mxu0 0
  %445 = vmatprep.subr.bf16.mxu0 0
  %446 = vmatpush2.bf16.msra.mxu0 0
  %447 = vmatprep.subr.bf16.mxu0 0
  %448 = vmatpush2.bf16.msra.mxu0 0
  %449 = vmatprep.mubr.bf16.mxu0 0
  %450 = vmatmul.mubr.bf16.gmra.mxu0 %v296
  %v451 = vpop.f32.mrf.mxu0
  %v452 = vadd.f32 0.0, %v451
  %v453 = vpop.f32.mrf.mxu0
  %v454 = vadd.f32 0.0, %v453
  %v455 = vpop.f32.mrf.mxu0
  %v456 = vadd.f32 0.0, %v455
  %v457 = vpop.f32.mrf.mxu0
  %v458 = vadd.f32 0.0, %v457
  %459 = vmatprep.mubr.bf16.mxu0 0
  %460 = vmatmul.mubr.bf16.gmra.mxu0 %v299
  %v461 = vpop.f32.mrf.mxu0
  %v462 = vadd.f32 0.0, %v461
  %v463 = vpop.f32.mrf.mxu0
  %v464 = vadd.f32 0.0, %v463
  %v465 = vpop.f32.mrf.mxu0
  %v466 = vadd.f32 0.0, %v465
  %v467 = vpop.f32.mrf.mxu0
  %v468 = vadd.f32 0.0, %v467
  %469 = vmatprep.mubr.bf16.mxu0 0
  %470 = vmatmul.mubr.bf16.gmra.mxu0 %v302
  %v471 = vpop.f32.mrf.mxu0
  %v472 = vadd.f32 0.0, %v471
  %v473 = vpop.f32.mrf.mxu0
  %v474 = vadd.f32 0.0, %v473
  %v475 = vpop.f32.mrf.mxu0
  %v476 = vadd.f32 0.0, %v475
  %v477 = vpop.f32.mrf.mxu0
  %v478 = vadd.f32 0.0, %v477
  %479 = vmatprep.mubr.bf16.mxu0 0
  %480 = vmatmul.mubr.bf16.gmra.mxu0 %v305
  %v481 = vpop.f32.mrf.mxu0
  %v482 = vadd.f32 0.0, %v481
  %v483 = vpop.f32.mrf.mxu0
  %v484 = vadd.f32 0.0, %v483
  %v485 = vpop.f32.mrf.mxu0
  %v486 = vadd.f32 0.0, %v485
  %v487 = vpop.f32.mrf.mxu0
  %v488 = vadd.f32 0.0, %v487
  %489 = vmatprep.mubr.bf16.mxu0 0
  %490 = vmatmul.mubr.bf16.gmra.mxu0 %v308
  %v491 = vpop.f32.mrf.mxu0
  %v492 = vadd.f32 0.0, %v491
  %v493 = vpop.f32.mrf.mxu0
  %v494 = vadd.f32 0.0, %v493
  %v495 = vpop.f32.mrf.mxu0
  %v496 = vadd.f32 0.0, %v495
  %v497 = vpop.f32.mrf.mxu0
  %v498 = vadd.f32 0.0, %v497
  %499 = vmatprep.mubr.bf16.mxu0 0
  %500 = vmatmul.mubr.bf16.gmra.mxu0 %v311
  %v501 = vpop.f32.mrf.mxu0
  %v502 = vadd.f32 0.0, %v501
  %v503 = vpop.f32.mrf.mxu0
  %v504 = vadd.f32 0.0, %v503
  %v505 = vpop.f32.mrf.mxu0
  %v506 = vadd.f32 0.0, %v505
  %v507 = vpop.f32.mrf.mxu0
  %v508 = vadd.f32 0.0, %v507
  %509 = vmatprep.mubr.bf16.mxu0 0
  %510 = vmatmul.mubr.bf16.gmra.mxu0 %v314
  %v511 = vpop.f32.mrf.mxu0
  %v512 = vadd.f32 0.0, %v511
  %v513 = vpop.f32.mrf.mxu0
  %v514 = vadd.f32 0.0, %v513
  %v515 = vpop.f32.mrf.mxu0
  %v516 = vpop.f32.mrf.mxu0
  %517 = vdwg.mxu0
  %518 = vst [vmem:[%s4] sm:$0xff] %v351
  %519 = vst [vmem:[%s4 + $0x8] sm:$0xff] %v353
  %520 = vst [vmem:[%s4 + $0x10] sm:$0xff] %v452
  %521 = vst [vmem:[%s4 + $0x18] sm:$0xff] %v454
  %522 = vst [vmem:[%s4 + $0x20] sm:$0xff] %v355
  %523 = vst [vmem:[%s4 + $0x28] sm:$0xff] %v357
  %524 = vst [vmem:[%s4 + $0x30] sm:$0xff] %v456
  %525 = vst [vmem:[%s4 + $0x38] sm:$0xff] %v458
  %526 = vst [vmem:[%s4 + $0x40] sm:$0xff] %v361
  %527 = vst [vmem:[%s4 + $0x48] sm:$0xff] %v363
  %528 = vst [vmem:[%s4 + $0x50] sm:$0xff] %v462
  %529 = vst [vmem:[%s4 + $0x58] sm:$0xff] %v464
  %530 = vst [vmem:[%s4 + $0x60] sm:$0xff] %v365
  %531 = vst [vmem:[%s4 + $0x68] sm:$0xff] %v367
  %532 = vst [vmem:[%s4 + $0x70] sm:$0xff] %v466
  %533 = vst [vmem:[%s4 + $0x78] sm:$0xff] %v468
  %534 = vst [vmem:[%s4 + $0x80] sm:$0xff] %v371
  %535 = vst [vmem:[%s4 + $0x88] sm:$0xff] %v373
  %536 = vst [vmem:[%s4 + $0x90] sm:$0xff] %v472
  %537 = vst [vmem:[%s4 + $0x98] sm:$0xff] %v474
  %538 = vst [vmem:[%s4 + $0xa0] sm:$0xff] %v375
  %539 = vst [vmem:[%s4 + $0xa8] sm:$0xff] %v377
  %540 = vst [vmem:[%s4 + $0xb0] sm:$0xff] %v476
  %541 = vst [vmem:[%s4 + $0xb8] sm:$0xff] %v478
  %542 = vst [vmem:[%s4 + $0xc0] sm:$0xff] %v381
  %543 = vst [vmem:[%s4 + $0xc8] sm:$0xff] %v383
  %544 = vst [vmem:[%s4 + $0xd0] sm:$0xff] %v482
  %545 = vst [vmem:[%s4 + $0xd8] sm:$0xff] %v484
  %546 = vst [vmem:[%s4 + $0xe0] sm:$0xff] %v385
  %547 = vst [vmem:[%s4 + $0xe8] sm:$0xff] %v387
  %548 = vst [vmem:[%s4 + $0xf0] sm:$0xff] %v486
  %549 = vst [vmem:[%s4 + $0xf8] sm:$0xff] %v488
  %550 = vst [vmem:[%s4 + $0x100] sm:$0xff] %v391
  %551 = vst [vmem:[%s4 + $0x108] sm:$0xff] %v393
  %552 = vst [vmem:[%s4 + $0x110] sm:$0xff] %v492
  %553 = vst [vmem:[%s4 + $0x118] sm:$0xff] %v494
  %554 = vst [vmem:[%s4 + $0x120] sm:$0xff] %v395
  %555 = vst [vmem:[%s4 + $0x128] sm:$0xff] %v397
  %556 = vst [vmem:[%s4 + $0x130] sm:$0xff] %v496
  %557 = vst [vmem:[%s4 + $0x138] sm:$0xff] %v498
  %558 = vst [vmem:[%s4 + $0x140] sm:$0xff] %v401
  %559 = vst [vmem:[%s4 + $0x148] sm:$0xff] %v403
  %560 = vst [vmem:[%s4 + $0x150] sm:$0xff] %v502
  %561 = vst [vmem:[%s4 + $0x158] sm:$0xff] %v504
  %562 = vst [vmem:[%s4 + $0x160] sm:$0xff] %v405
  %563 = vst [vmem:[%s4 + $0x168] sm:$0xff] %v407
  %564 = vst [vmem:[%s4 + $0x170] sm:$0xff] %v506
  %565 = vst [vmem:[%s4 + $0x178] sm:$0xff] %v508
  %566 = vst [vmem:[%s4 + $0x180] sm:$0x3] %v411
  %567 = vst [vmem:[%s4 + $0x188] sm:$0x3] %v413
  %568 = vst [vmem:[%s4 + $0x190] sm:$0x3] %v512
  %569 = vst [vmem:[%s4 + $0x198] sm:$0x3] %v514
  // Predicated region
  $region18: #{mnist_generator_forward.7} parent=0 // pred_check
    _
  $region19: #{mnist_generator_forward.7} parent=0 // pred_check_branch
    %571 = sbr.rel (0) target = $region21
  $region20: #{mnist_generator_forward.7} parent=0 // pred_region
    _
  $region21: #{mnist_generator_forward.7} parent=0 // pred_fallthru
    _
  // Predicated region
  $region22: #{mnist_generator_forward.7} parent=0 // pred_check
    _
  $region23: #{mnist_generator_forward.7} parent=0 // pred_check_branch
    %573 = sbr.rel (0) target = $region25
  $region24: #{mnist_generator_forward.7} parent=0 // pred_region
    _
  $region25: #{mnist_generator_forward.7} parent=0 // pred_fallthru
    _

// kernel: mnist_generator_forward.8
$region0: #{mnist_generator_forward.8}
  #allocation0 [shape = 'u32[]', space=smem, size = 0x4, offset = 0x4, fixed_abs, tag = 'smem constant byte address 0x4 - core index']
  #allocation1 [shape = 'u32[144,128]{1,0:T(1,128)}', space=vmem, size = 0x12000, scoped, tag = 'internal scratch']
  %s0 = inlined_call_operand.vmem [shape: f32[392,32], index: 0, kind: input, shape index: {}]
  %s1 = inlined_call_operand.vmem [shape: f32[1,32], index: 1, kind: input, shape index: {}]
  %s2 = inlined_call_operand.vmem [shape: f32[1,32], index: 2, kind: input, shape index: {}]
  %s3 = inlined_call_operand.vmem [shape: bf16[32,16], index: 3, kind: input, shape index: {}]
  %s4 = inlined_call_operand.vmem [shape: f32[392,16], index: 4, kind: output, shape index: {}]
  %s5 = sld [smem:[#allocation0]]
  $region26: #{mnist_generator_forward.8} parent=0
    _
  %s7 = ssub.s32 1, %s5
  %s8 = scalar_select 0, %s7, %s5
  // Predicated region
  $region2: #{mnist_generator_forward.8} parent=0 // pred_check
    _
  $region3: #{mnist_generator_forward.8} parent=0 // pred_check_branch
    %10 = sbr.rel (0) target = $region5
  $region4: #{mnist_generator_forward.8} parent=0 // pred_region
    _
  $region5: #{mnist_generator_forward.8} parent=0 // pred_fallthru
    _
  // Predicated region
  $region6: #{mnist_generator_forward.8} parent=0 // pred_check
    _
  $region7: #{mnist_generator_forward.8} parent=0 // pred_check_branch
    %12 = sbr.rel (0) target = $region9
  $region8: #{mnist_generator_forward.8} parent=0 // pred_region
    _
  $region9: #{mnist_generator_forward.8} parent=0 // pred_fallthru
    _
  // Predicated region
  $region10: #{mnist_generator_forward.8} parent=0 // pred_check
    _
  $region11: #{mnist_generator_forward.8} parent=0 // pred_check_branch
    %14 = sbr.rel (0) target = $region13
  $region12: #{mnist_generator_forward.8} parent=0 // pred_region
    _
  $region13: #{mnist_generator_forward.8} parent=0 // pred_fallthru
    _
  // Predicated region
  $region14: #{mnist_generator_forward.8} parent=0 // pred_check
    _
  $region15: #{mnist_generator_forward.8} parent=0 // pred_check_branch
    %16 = sbr.rel (0) target = $region17
  $region16: #{mnist_generator_forward.8} parent=0 // pred_region
    _
  $region17: #{mnist_generator_forward.8} parent=0 // pred_fallthru
    _
  %v18 = vld [vmem:[%s0] sm:$0xff]
  %v19 = vld [vmem:[%s0 + $0x8] sm:$0xff]
  %v20 = vld [vmem:[%s0 + $0x10] sm:$0xff]
  %v21 = vld [vmem:[%s0 + $0x18] sm:$0xff]
  %v22 = vld [vmem:[%s0 + $0x20] sm:$0xff]
  %v23 = vld [vmem:[%s0 + $0x28] sm:$0xff]
  %v24 = vld [vmem:[%s0 + $0x30] sm:$0xff]
  %v25 = vld [vmem:[%s0 + $0x38] sm:$0xff]
  %v26 = vld [vmem:[%s0 + $0x40] sm:$0xff]
  %v27 = vld [vmem:[%s0 + $0x48] sm:$0xff]
  %v28 = vld [vmem:[%s0 + $0x50] sm:$0xff]
  %v29 = vld [vmem:[%s0 + $0x58] sm:$0xff]
  %v30 = vld [vmem:[%s0 + $0x60] sm:$0xff]
  %v31 = vld [vmem:[%s0 + $0x68] sm:$0xff]
  %v32 = vld [vmem:[%s0 + $0x70] sm:$0xff]
  %v33 = vld [vmem:[%s0 + $0x78] sm:$0xff]
  %v34 = vld [vmem:[%s0 + $0x80] sm:$0xff]
  %v35 = vld [vmem:[%s0 + $0x88] sm:$0xff]
  %v36 = vld [vmem:[%s0 + $0x90] sm:$0xff]
  %v37 = vld [vmem:[%s0 + $0x98] sm:$0xff]
  %v38 = vld [vmem:[%s0 + $0xa0] sm:$0xff]
  %v39 = vld [vmem:[%s0 + $0xa8] sm:$0xff]
  %v40 = vld [vmem:[%s0 + $0xb0] sm:$0xff]
  %v41 = vld [vmem:[%s0 + $0xb8] sm:$0xff]
  %v42 = vld [vmem:[%s0 + $0xc0] sm:$0xff]
  %v43 = vld [vmem:[%s0 + $0xc8] sm:$0xff]
  %v44 = vld [vmem:[%s0 + $0xd0] sm:$0xff]
  %v45 = vld [vmem:[%s0 + $0xd8] sm:$0xff]
  %v46 = vld [vmem:[%s0 + $0xe0] sm:$0xff]
  %v47 = vld [vmem:[%s0 + $0xe8] sm:$0xff]
  %v48 = vld [vmem:[%s0 + $0xf0] sm:$0xff]
  %v49 = vld [vmem:[%s0 + $0xf8] sm:$0xff]
  %v50 = vld [vmem:[%s0 + $0x100] sm:$0xff]
  %v51 = vld [vmem:[%s0 + $0x108] sm:$0xff]
  %v52 = vld [vmem:[%s0 + $0x110] sm:$0xff]
  %v53 = vld [vmem:[%s0 + $0x118] sm:$0xff]
  %v54 = vld [vmem:[%s0 + $0x120] sm:$0xff]
  %v55 = vld [vmem:[%s0 + $0x128] sm:$0xff]
  %v56 = vld [vmem:[%s0 + $0x130] sm:$0xff]
  %v57 = vld [vmem:[%s0 + $0x138] sm:$0xff]
  %v58 = vld [vmem:[%s0 + $0x140] sm:$0xff]
  %v59 = vld [vmem:[%s0 + $0x148] sm:$0xff]
  %v60 = vld [vmem:[%s0 + $0x150] sm:$0xff]
  %v61 = vld [vmem:[%s0 + $0x158] sm:$0xff]
  %v62 = vld [vmem:[%s0 + $0x160] sm:$0xff]
  %v63 = vld [vmem:[%s0 + $0x168] sm:$0xff]
  %v64 = vld [vmem:[%s0 + $0x170] sm:$0xff]
  %v65 = vld [vmem:[%s0 + $0x178] sm:$0xff]
  %v66 = vld [vmem:[%s0 + $0x180] sm:$0xff]
  %vm67 = vcmask 261120
  %v68 = vsel %vm67, %v18, 0.0
  %v69 = vsel %vm67, %v19, 0.0
  %v70 = vadd.f32 %v68, %v69
  %v71 = vsel %vm67, %v20, 0.0
  %v72 = vadd.f32 %v70, %v71
  %v73 = vsel %vm67, %v21, 0.0
  %v74 = vadd.f32 %v72, %v73
  %v75 = vsel %vm67, %v22, 0.0
  %v76 = vadd.f32 %v74, %v75
  %v77 = vsel %vm67, %v23, 0.0
  %v78 = vadd.f32 %v76, %v77
  %v79 = vsel %vm67, %v24, 0.0
  %v80 = vadd.f32 %v78, %v79
  %v81 = vsel %vm67, %v25, 0.0
  %v82 = vadd.f32 %v80, %v81
  %v83 = vsel %vm67, %v26, 0.0
  %v84 = vadd.f32 %v82, %v83
  %v85 = vsel %vm67, %v27, 0.0
  %v86 = vadd.f32 %v84, %v85
  %v87 = vsel %vm67, %v28, 0.0
  %v88 = vadd.f32 %v86, %v87
  %v89 = vsel %vm67, %v29, 0.0
  %v90 = vadd.f32 %v88, %v89
  %v91 = vsel %vm67, %v30, 0.0
  %v92 = vadd.f32 %v90, %v91
  %v93 = vsel %vm67, %v31, 0.0
  %v94 = vadd.f32 %v92, %v93
  %v95 = vsel %vm67, %v32, 0.0
  %v96 = vadd.f32 %v94, %v95
  %v97 = vsel %vm67, %v33, 0.0
  %v98 = vadd.f32 %v96, %v97
  %v99 = vsel %vm67, %v34, 0.0
  %v100 = vadd.f32 %v98, %v99
  %v101 = vsel %vm67, %v35, 0.0
  %v102 = vadd.f32 %v100, %v101
  %v103 = vsel %vm67, %v36, 0.0
  %v104 = vadd.f32 %v102, %v103
  %v105 = vsel %vm67, %v37, 0.0
  %v106 = vadd.f32 %v104, %v105
  %v107 = vsel %vm67, %v38, 0.0
  %v108 = vadd.f32 %v106, %v107
  %v109 = vsel %vm67, %v39, 0.0
  %v110 = vadd.f32 %v108, %v109
  %v111 = vsel %vm67, %v40, 0.0
  %v112 = vadd.f32 %v110, %v111
  %v113 = vsel %vm67, %v41, 0.0
  %v114 = vadd.f32 %v112, %v113
  %v115 = vsel %vm67, %v42, 0.0
  %v116 = vadd.f32 %v114, %v115
  %v117 = vsel %vm67, %v43, 0.0
  %v118 = vadd.f32 %v116, %v117
  %v119 = vsel %vm67, %v44, 0.0
  %v120 = vadd.f32 %v118, %v119
  %v121 = vsel %vm67, %v45, 0.0
  %v122 = vadd.f32 %v120, %v121
  %v123 = vsel %vm67, %v46, 0.0
  %v124 = vadd.f32 %v122, %v123
  %v125 = vsel %vm67, %v47, 0.0
  %v126 = vadd.f32 %v124, %v125
  %v127 = vsel %vm67, %v48, 0.0
  %v128 = vadd.f32 %v126, %v127
  %v129 = vsel %vm67, %v49, 0.0
  %v130 = vadd.f32 %v128, %v129
  %v131 = vsel %vm67, %v50, 0.0
  %v132 = vadd.f32 %v130, %v131
  %v133 = vsel %vm67, %v51, 0.0
  %v134 = vadd.f32 %v132, %v133
  %v135 = vsel %vm67, %v52, 0.0
  %v136 = vadd.f32 %v134, %v135
  %v137 = vsel %vm67, %v53, 0.0
  %v138 = vadd.f32 %v136, %v137
  %v139 = vsel %vm67, %v54, 0.0
  %v140 = vadd.f32 %v138, %v139
  %v141 = vsel %vm67, %v55, 0.0
  %v142 = vadd.f32 %v140, %v141
  %v143 = vsel %vm67, %v56, 0.0
  %v144 = vadd.f32 %v142, %v143
  %v145 = vsel %vm67, %v57, 0.0
  %v146 = vadd.f32 %v144, %v145
  %v147 = vsel %vm67, %v58, 0.0
  %v148 = vadd.f32 %v146, %v147
  %v149 = vsel %vm67, %v59, 0.0
  %v150 = vadd.f32 %v148, %v149
  %v151 = vsel %vm67, %v60, 0.0
  %v152 = vadd.f32 %v150, %v151
  %v153 = vsel %vm67, %v61, 0.0
  %v154 = vadd.f32 %v152, %v153
  %v155 = vsel %vm67, %v62, 0.0
  %v156 = vadd.f32 %v154, %v155
  %v157 = vsel %vm67, %v63, 0.0
  %v158 = vadd.f32 %v156, %v157
  %v159 = vsel %vm67, %v64, 0.0
  %v160 = vadd.f32 %v158, %v159
  %v161 = vsel %vm67, %v65, 0.0
  %v162 = vadd.f32 %v160, %v161
  %v163 = vsel %vm67, %v66, 0.0
  %v164 = vadd.f32 %v162, %v163
  %v165 = vrot.slane %v164, 4
  %v166 = vadd.f32 %v164, %v165
  %v167 = vrot.slane %v166, 2
  %v168 = vadd.f32 %v166, %v167
  %v169 = vrot.slane %v168, 1
  %v170 = vadd.f32 %v168, %v169
  %v171 = vrcp.pop 392.0
  %v172 = vmul.f32 %v170, %v171
  %v173 = vsub.f32 %v18, %v172
  %v174 = vsub.f32 %v19, %v172
  %v175 = vsub.f32 %v20, %v172
  %v176 = vsub.f32 %v21, %v172
  %v177 = vsub.f32 %v22, %v172
  %v178 = vsub.f32 %v23, %v172
  %v179 = vsub.f32 %v24, %v172
  %v180 = vsub.f32 %v25, %v172
  %v181 = vsub.f32 %v26, %v172
  %v182 = vsub.f32 %v27, %v172
  %v183 = vsub.f32 %v28, %v172
  %v184 = vsub.f32 %v29, %v172
  %v185 = vsub.f32 %v30, %v172
  %v186 = vsub.f32 %v31, %v172
  %v187 = vsub.f32 %v32, %v172
  %v188 = vsub.f32 %v33, %v172
  %v189 = vsub.f32 %v34, %v172
  %v190 = vsub.f32 %v35, %v172
  %v191 = vsub.f32 %v36, %v172
  %v192 = vsub.f32 %v37, %v172
  %v193 = vsub.f32 %v38, %v172
  %v194 = vsub.f32 %v39, %v172
  %v195 = vsub.f32 %v40, %v172
  %v196 = vsub.f32 %v41, %v172
  %v197 = vsub.f32 %v42, %v172
  %v198 = vsub.f32 %v43, %v172
  %v199 = vsub.f32 %v44, %v172
  %v200 = vsub.f32 %v45, %v172
  %v201 = vsub.f32 %v46, %v172
  %v202 = vsub.f32 %v47, %v172
  %v203 = vsub.f32 %v48, %v172
  %v204 = vsub.f32 %v49, %v172
  %v205 = vsub.f32 %v50, %v172
  %v206 = vsub.f32 %v51, %v172
  %v207 = vsub.f32 %v52, %v172
  %v208 = vsub.f32 %v53, %v172
  %v209 = vsub.f32 %v54, %v172
  %v210 = vsub.f32 %v55, %v172
  %v211 = vsub.f32 %v56, %v172
  %v212 = vsub.f32 %v57, %v172
  %v213 = vsub.f32 %v58, %v172
  %v214 = vsub.f32 %v59, %v172
  %v215 = vsub.f32 %v60, %v172
  %v216 = vsub.f32 %v61, %v172
  %v217 = vsub.f32 %v62, %v172
  %v218 = vsub.f32 %v63, %v172
  %v219 = vsub.f32 %v64, %v172
  %v220 = vsub.f32 %v65, %v172
  %v221 = vsub.f32 %v66, %v172
  %v222 = vmul.f32 %v173, %v173
  %v223 = vmul.f32 %v174, %v174
  %v224 = vmul.f32 %v175, %v175
  %v225 = vmul.f32 %v176, %v176
  %v226 = vmul.f32 %v177, %v177
  %v227 = vmul.f32 %v178, %v178
  %v228 = vmul.f32 %v179, %v179
  %v229 = vmul.f32 %v180, %v180
  %v230 = vmul.f32 %v181, %v181
  %v231 = vmul.f32 %v182, %v182
  %v232 = vmul.f32 %v183, %v183
  %v233 = vmul.f32 %v184, %v184
  %v234 = vmul.f32 %v185, %v185
  %v235 = vmul.f32 %v186, %v186
  %v236 = vmul.f32 %v187, %v187
  %v237 = vmul.f32 %v188, %v188
  %v238 = vmul.f32 %v189, %v189
  %v239 = vmul.f32 %v190, %v190
  %v240 = vmul.f32 %v191, %v191
  %v241 = vmul.f32 %v192, %v192
  %v242 = vmul.f32 %v193, %v193
  %v243 = vmul.f32 %v194, %v194
  %v244 = vmul.f32 %v195, %v195
  %v245 = vmul.f32 %v196, %v196
  %v246 = vmul.f32 %v197, %v197
  %v247 = vmul.f32 %v198, %v198
  %v248 = vmul.f32 %v199, %v199
  %v249 = vmul.f32 %v200, %v200
  %v250 = vmul.f32 %v201, %v201
  %v251 = vmul.f32 %v202, %v202
  %v252 = vmul.f32 %v203, %v203
  %v253 = vmul.f32 %v204, %v204
  %v254 = vmul.f32 %v205, %v205
  %v255 = vmul.f32 %v206, %v206
  %v256 = vmul.f32 %v207, %v207
  %v257 = vmul.f32 %v208, %v208
  %v258 = vmul.f32 %v209, %v209
  %v259 = vmul.f32 %v210, %v210
  %v260 = vmul.f32 %v211, %v211
  %v261 = vmul.f32 %v212, %v212
  %v262 = vmul.f32 %v213, %v213
  %v263 = vmul.f32 %v214, %v214
  %v264 = vmul.f32 %v215, %v215
  %v265 = vmul.f32 %v216, %v216
  %v266 = vmul.f32 %v217, %v217
  %v267 = vmul.f32 %v218, %v218
  %v268 = vmul.f32 %v219, %v219
  %v269 = vmul.f32 %v220, %v220
  %v270 = vmul.f32 %v221, %v221
  %v271 = vsel %vm67, %v222, 0.0
  %v272 = vsel %vm67, %v223, 0.0
  %v273 = vadd.f32 %v271, %v272
  %v274 = vsel %vm67, %v224, 0.0
  %v275 = vadd.f32 %v273, %v274
  %v276 = vsel %vm67, %v225, 0.0
  %v277 = vadd.f32 %v275, %v276
  %v278 = vsel %vm67, %v226, 0.0
  %v279 = vadd.f32 %v277, %v278
  %v280 = vsel %vm67, %v227, 0.0
  %v281 = vadd.f32 %v279, %v280
  %v282 = vsel %vm67, %v228, 0.0
  %v283 = vadd.f32 %v281, %v282
  %v284 = vsel %vm67, %v229, 0.0
  %v285 = vadd.f32 %v283, %v284
  %v286 = vsel %vm67, %v230, 0.0
  %v287 = vadd.f32 %v285, %v286
  %v288 = vsel %vm67, %v231, 0.0
  %v289 = vadd.f32 %v287, %v288
  %v290 = vsel %vm67, %v232, 0.0
  %v291 = vadd.f32 %v289, %v290
  %v292 = vsel %vm67, %v233, 0.0
  %v293 = vadd.f32 %v291, %v292
  %v294 = vsel %vm67, %v234, 0.0
  %v295 = vadd.f32 %v293, %v294
  %v296 = vsel %vm67, %v235, 0.0
  %v297 = vadd.f32 %v295, %v296
  %v298 = vsel %vm67, %v236, 0.0
  %v299 = vadd.f32 %v297, %v298
  %v300 = vsel %vm67, %v237, 0.0
  %v301 = vadd.f32 %v299, %v300
  %v302 = vsel %vm67, %v238, 0.0
  %v303 = vadd.f32 %v301, %v302
  %v304 = vsel %vm67, %v239, 0.0
  %v305 = vadd.f32 %v303, %v304
  %v306 = vsel %vm67, %v240, 0.0
  %v307 = vadd.f32 %v305, %v306
  %v308 = vsel %vm67, %v241, 0.0
  %v309 = vadd.f32 %v307, %v308
  %v310 = vsel %vm67, %v242, 0.0
  %v311 = vadd.f32 %v309, %v310
  %v312 = vsel %vm67, %v243, 0.0
  %v313 = vadd.f32 %v311, %v312
  %v314 = vsel %vm67, %v244, 0.0
  %v315 = vadd.f32 %v313, %v314
  %v316 = vsel %vm67, %v245, 0.0
  %v317 = vadd.f32 %v315, %v316
  %v318 = vsel %vm67, %v246, 0.0
  %v319 = vadd.f32 %v317, %v318
  %v320 = vsel %vm67, %v247, 0.0
  %v321 = vadd.f32 %v319, %v320
  %v322 = vsel %vm67, %v248, 0.0
  %v323 = vadd.f32 %v321, %v322
  %v324 = vsel %vm67, %v249, 0.0
  %v325 = vadd.f32 %v323, %v324
  %v326 = vsel %vm67, %v250, 0.0
  %v327 = vadd.f32 %v325, %v326
  %v328 = vsel %vm67, %v251, 0.0
  %v329 = vadd.f32 %v327, %v328
  %v330 = vsel %vm67, %v252, 0.0
  %v331 = vadd.f32 %v329, %v330
  %v332 = vsel %vm67, %v253, 0.0
  %v333 = vadd.f32 %v331, %v332
  %v334 = vsel %vm67, %v254, 0.0
  %v335 = vadd.f32 %v333, %v334
  %v336 = vsel %vm67, %v255, 0.0
  %v337 = vadd.f32 %v335, %v336
  %v338 = vsel %vm67, %v256, 0.0
  %v339 = vadd.f32 %v337, %v338
  %v340 = vsel %vm67, %v257, 0.0
  %v341 = vadd.f32 %v339, %v340
  %v342 = vsel %vm67, %v258, 0.0
  %v343 = vadd.f32 %v341, %v342
  %v344 = vsel %vm67, %v259, 0.0
  %v345 = vadd.f32 %v343, %v344
  %v346 = vsel %vm67, %v260, 0.0
  %v347 = vadd.f32 %v345, %v346
  %v348 = vsel %vm67, %v261, 0.0
  %v349 = vadd.f32 %v347, %v348
  %v350 = vsel %vm67, %v262, 0.0
  %v351 = vadd.f32 %v349, %v350
  %v352 = vsel %vm67, %v263, 0.0
  %v353 = vadd.f32 %v351, %v352
  %v354 = vsel %vm67, %v264, 0.0
  %v355 = vadd.f32 %v353, %v354
  %v356 = vsel %vm67, %v265, 0.0
  %v357 = vadd.f32 %v355, %v356
  %v358 = vsel %vm67, %v266, 0.0
  %v359 = vadd.f32 %v357, %v358
  %v360 = vsel %vm67, %v267, 0.0
  %v361 = vadd.f32 %v359, %v360
  %v362 = vsel %vm67, %v268, 0.0
  %v363 = vadd.f32 %v361, %v362
  %v364 = vsel %vm67, %v269, 0.0
  %v365 = vadd.f32 %v363, %v364
  %v366 = vsel %vm67, %v270, 0.0
  %v367 = vadd.f32 %v365, %v366
  %v368 = vrot.slane %v367, 4
  %v369 = vadd.f32 %v367, %v368
  %v370 = vrot.slane %v369, 2
  %v371 = vadd.f32 %v369, %v370
  %v372 = vrot.slane %v371, 1
  %v373 = vadd.f32 %v371, %v372
  %v374 = vmul.f32 %v373, %v171
  %v375 = vadd.f32 %v374, 1e-05
  %v376 = vrsqrt.pop %v375
  %v377 = vmul.f32 %v173, %v376
  %v378 = vmul.f32 %v174, %v376
  %v379 = vmul.f32 %v175, %v376
  %v380 = vmul.f32 %v176, %v376
  %v381 = vmul.f32 %v177, %v376
  %v382 = vmul.f32 %v178, %v376
  %v383 = vmul.f32 %v179, %v376
  %v384 = vmul.f32 %v180, %v376
  %v385 = vmul.f32 %v181, %v376
  %v386 = vmul.f32 %v182, %v376
  %v387 = vmul.f32 %v183, %v376
  %v388 = vmul.f32 %v184, %v376
  %v389 = vmul.f32 %v185, %v376
  %v390 = vmul.f32 %v186, %v376
  %v391 = vmul.f32 %v187, %v376
  %v392 = vmul.f32 %v188, %v376
  %v393 = vmul.f32 %v189, %v376
  %v394 = vmul.f32 %v190, %v376
  %v395 = vmul.f32 %v191, %v376
  %v396 = vmul.f32 %v192, %v376
  %v397 = vmul.f32 %v193, %v376
  %v398 = vmul.f32 %v194, %v376
  %v399 = vmul.f32 %v195, %v376
  %v400 = vmul.f32 %v196, %v376
  %v401 = vmul.f32 %v197, %v376
  %v402 = vmul.f32 %v198, %v376
  %v403 = vmul.f32 %v199, %v376
  %v404 = vmul.f32 %v200, %v376
  %v405 = vmul.f32 %v201, %v376
  %v406 = vmul.f32 %v202, %v376
  %v407 = vmul.f32 %v203, %v376
  %v408 = vmul.f32 %v204, %v376
  %v409 = vmul.f32 %v205, %v376
  %v410 = vmul.f32 %v206, %v376
  %v411 = vmul.f32 %v207, %v376
  %v412 = vmul.f32 %v208, %v376
  %v413 = vmul.f32 %v209, %v376
  %v414 = vmul.f32 %v210, %v376
  %v415 = vmul.f32 %v211, %v376
  %v416 = vmul.f32 %v212, %v376
  %v417 = vmul.f32 %v213, %v376
  %v418 = vmul.f32 %v214, %v376
  %v419 = vmul.f32 %v215, %v376
  %v420 = vmul.f32 %v216, %v376
  %v421 = vmul.f32 %v217, %v376
  %v422 = vmul.f32 %v218, %v376
  %v423 = vmul.f32 %v219, %v376
  %v424 = vmul.f32 %v220, %v376
  %v425 = vmul.f32 %v221, %v376
  %v426 = vld [vmem:[%s1] sm:$0x1]
  %v428 = vlaneseq
  %v429 = vshrl.u32 %v428, 7
  %v430 = vsub.s32 0, %v429
  %v431 = vrot.slane %v426, %v430
  %v433 = vmul.f32 %v377, %v431
  %v434 = vmul.f32 %v378, %v431
  %v435 = vmul.f32 %v379, %v431
  %v436 = vmul.f32 %v380, %v431
  %v437 = vmul.f32 %v381, %v431
  %v438 = vmul.f32 %v382, %v431
  %v439 = vmul.f32 %v383, %v431
  %v440 = vmul.f32 %v384, %v431
  %v441 = vmul.f32 %v385, %v431
  %v442 = vmul.f32 %v386, %v431
  %v443 = vmul.f32 %v387, %v431
  %v444 = vmul.f32 %v388, %v431
  %v445 = vmul.f32 %v389, %v431
  %v446 = vmul.f32 %v390, %v431
  %v447 = vmul.f32 %v391, %v431
  %v448 = vmul.f32 %v392, %v431
  %v449 = vmul.f32 %v393, %v431
  %v450 = vmul.f32 %v394, %v431
  %v451 = vmul.f32 %v395, %v431
  %v452 = vmul.f32 %v396, %v431
  %v453 = vmul.f32 %v397, %v431
  %v454 = vmul.f32 %v398, %v431
  %v455 = vmul.f32 %v399, %v431
  %v456 = vmul.f32 %v400, %v431
  %v457 = vmul.f32 %v401, %v431
  %v458 = vmul.f32 %v402, %v431
  %v459 = vmul.f32 %v403, %v431
  %v460 = vmul.f32 %v404, %v431
  %v461 = vmul.f32 %v405, %v431
  %v462 = vmul.f32 %v406, %v431
  %v463 = vmul.f32 %v407, %v431
  %v464 = vmul.f32 %v408, %v431
  %v465 = vmul.f32 %v409, %v431
  %v466 = vmul.f32 %v410, %v431
  %v467 = vmul.f32 %v411, %v431
  %v468 = vmul.f32 %v412, %v431
  %v469 = vmul.f32 %v413, %v431
  %v470 = vmul.f32 %v414, %v431
  %v471 = vmul.f32 %v415, %v431
  %v472 = vmul.f32 %v416, %v431
  %v473 = vmul.f32 %v417, %v431
  %v474 = vmul.f32 %v418, %v431
  %v475 = vmul.f32 %v419, %v431
  %v476 = vmul.f32 %v420, %v431
  %v477 = vmul.f32 %v421, %v431
  %v478 = vmul.f32 %v422, %v431
  %v479 = vmul.f32 %v423, %v431
  %v480 = vmul.f32 %v424, %v431
  %v481 = vmul.f32 %v425, %v431
  %v482 = vld [vmem:[%s2] sm:$0x1]
  %v484 = vlaneseq
  %v485 = vshrl.u32 %v484, 7
  %v486 = vsub.s32 0, %v485
  %v487 = vrot.slane %v482, %v486
  %v489 = vadd.f32 %v433, %v487
  %v490 = vadd.f32 %v434, %v487
  %v491 = vadd.f32 %v435, %v487
  %v492 = vadd.f32 %v436, %v487
  %v493 = vadd.f32 %v437, %v487
  %v494 = vadd.f32 %v438, %v487
  %v495 = vadd.f32 %v439, %v487
  %v496 = vadd.f32 %v440, %v487
  %v497 = vadd.f32 %v441, %v487
  %v498 = vadd.f32 %v442, %v487
  %v499 = vadd.f32 %v443, %v487
  %v500 = vadd.f32 %v444, %v487
  %v501 = vadd.f32 %v445, %v487
  %v502 = vadd.f32 %v446, %v487
  %v503 = vadd.f32 %v447, %v487
  %v504 = vadd.f32 %v448, %v487
  %v505 = vadd.f32 %v449, %v487
  %v506 = vadd.f32 %v450, %v487
  %v507 = vadd.f32 %v451, %v487
  %v508 = vadd.f32 %v452, %v487
  %v509 = vadd.f32 %v453, %v487
  %v510 = vadd.f32 %v454, %v487
  %v511 = vadd.f32 %v455, %v487
  %v512 = vadd.f32 %v456, %v487
  %v513 = vadd.f32 %v457, %v487
  %v514 = vadd.f32 %v458, %v487
  %v515 = vadd.f32 %v459, %v487
  %v516 = vadd.f32 %v460, %v487
  %v517 = vadd.f32 %v461, %v487
  %v518 = vadd.f32 %v462, %v487
  %v519 = vadd.f32 %v463, %v487
  %v520 = vadd.f32 %v464, %v487
  %v521 = vadd.f32 %v465, %v487
  %v522 = vadd.f32 %v466, %v487
  %v523 = vadd.f32 %v467, %v487
  %v524 = vadd.f32 %v468, %v487
  %v525 = vadd.f32 %v469, %v487
  %v526 = vadd.f32 %v470, %v487
  %v527 = vadd.f32 %v471, %v487
  %v528 = vadd.f32 %v472, %v487
  %v529 = vadd.f32 %v473, %v487
  %v530 = vadd.f32 %v474, %v487
  %v531 = vadd.f32 %v475, %v487
  %v532 = vadd.f32 %v476, %v487
  %v533 = vadd.f32 %v477, %v487
  %v534 = vadd.f32 %v478, %v487
  %v535 = vadd.f32 %v479, %v487
  %v536 = vadd.f32 %v480, %v487
  %v537 = vadd.f32 %v481, %v487
  %v538 = vmax.f32 %v489, 0.0
  %v539 = vmax.f32 %v490, 0.0
  %v540 = vmax.f32 %v491, 0.0
  %v541 = vmax.f32 %v492, 0.0
  %v542 = vmax.f32 %v493, 0.0
  %v543 = vmax.f32 %v494, 0.0
  %v544 = vmax.f32 %v495, 0.0
  %v545 = vmax.f32 %v496, 0.0
  %v546 = vmax.f32 %v497, 0.0
  %v547 = vmax.f32 %v498, 0.0
  %v548 = vmax.f32 %v499, 0.0
  %v549 = vmax.f32 %v500, 0.0
  %v550 = vmax.f32 %v501, 0.0
  %v551 = vmax.f32 %v502, 0.0
  %v552 = vmax.f32 %v503, 0.0
  %v553 = vmax.f32 %v504, 0.0
  %v554 = vmax.f32 %v505, 0.0
  %v555 = vmax.f32 %v506, 0.0
  %v556 = vmax.f32 %v507, 0.0
  %v557 = vmax.f32 %v508, 0.0
  %v558 = vmax.f32 %v509, 0.0
  %v559 = vmax.f32 %v510, 0.0
  %v560 = vmax.f32 %v511, 0.0
  %v561 = vmax.f32 %v512, 0.0
  %v562 = vmax.f32 %v513, 0.0
  %v563 = vmax.f32 %v514, 0.0
  %v564 = vmax.f32 %v515, 0.0
  %v565 = vmax.f32 %v516, 0.0
  %v566 = vmax.f32 %v517, 0.0
  %v567 = vmax.f32 %v518, 0.0
  %v568 = vmax.f32 %v519, 0.0
  %v569 = vmax.f32 %v520, 0.0
  %v570 = vmax.f32 %v521, 0.0
  %v571 = vmax.f32 %v522, 0.0
  %v572 = vmax.f32 %v523, 0.0
  %v573 = vmax.f32 %v524, 0.0
  %v574 = vmax.f32 %v525, 0.0
  %v575 = vmax.f32 %v526, 0.0
  %v576 = vmax.f32 %v527, 0.0
  %v577 = vmax.f32 %v528, 0.0
  %v578 = vmax.f32 %v529, 0.0
  %v579 = vmax.f32 %v530, 0.0
  %v580 = vmax.f32 %v531, 0.0
  %v581 = vmax.f32 %v532, 0.0
  %v582 = vmax.f32 %v533, 0.0
  %v583 = vmax.f32 %v534, 0.0
  %v584 = vmax.f32 %v535, 0.0
  %v585 = vmax.f32 %v536, 0.0
  %v586 = vmax.f32 %v537, 0.0
  %v587 = vpack.c.bf16 %v539, %v538
  %v588 = vpack.c.bf16 %v541, %v540
  %v589 = vpack.c.bf16 %v543, %v542
  %v590 = vpack.c.bf16 %v545, %v544
  %v591 = vpack.c.bf16 %v547, %v546
  %v592 = vpack.c.bf16 %v549, %v548
  %v593 = vpack.c.bf16 %v551, %v550
  %v594 = vpack.c.bf16 %v553, %v552
  %v595 = vpack.c.bf16 %v555, %v554
  %v596 = vpack.c.bf16 %v557, %v556
  %v597 = vpack.c.bf16 %v559, %v558
  %v598 = vpack.c.bf16 %v561, %v560
  %v599 = vpack.c.bf16 %v563, %v562
  %v600 = vpack.c.bf16 %v565, %v564
  %v601 = vpack.c.bf16 %v567, %v566
  %v602 = vpack.c.bf16 %v569, %v568
  %v603 = vpack.c.bf16 %v571, %v570
  %v604 = vpack.c.bf16 %v573, %v572
  %v605 = vpack.c.bf16 %v575, %v574
  %v606 = vpack.c.bf16 %v577, %v576
  %v607 = vpack.c.bf16 %v579, %v578
  %v608 = vpack.c.bf16 %v581, %v580
  %v609 = vpack.c.bf16 %v583, %v582
  %v610 = vpack.c.bf16 %v585, %v584
  %v611 = vpack.c.bf16 %v586, %v586
  %v612 = vld [vmem:[%s3] sm:$0xf]
  %v613 = vld [vmem:[%s3 + $0x4] sm:$0xf]
  %v614 = vld [vmem:[%s3 + $0x8] sm:$0xf]
  %v615 = vld [vmem:[%s3 + $0xc] sm:$0xf]
  %v620 = vunpack.c.l.b16 %v612
  %v621 = vunpack.c.l.b16 %v613
  %v622 = vunpack.c.l.b16 %v614
  %v623 = vunpack.c.l.b16 %v615
  %v624 = vpack.c.b16 %v621, %v620
  %v625 = vpack.c.b16 %v623, %v622
  %v629 = vsel %vm67, %v587, 0
  %v632 = vsel %vm67, %v588, 0
  %v635 = vsel %vm67, %v589, 0
  %v638 = vsel %vm67, %v590, 0
  %v641 = vsel %vm67, %v591, 0
  %v644 = vsel %vm67, %v592, 0
  %v647 = vsel %vm67, %v593, 0
  %v650 = vsel %vm67, %v594, 0
  %v653 = vsel %vm67, %v595, 0
  %v656 = vsel %vm67, %v596, 0
  %v659 = vsel %vm67, %v597, 0
  %v662 = vsel %vm67, %v598, 0
  %v665 = vsel %vm67, %v599, 0
  %v668 = vsel %vm67, %v600, 0
  %v671 = vsel %vm67, %v601, 0
  %v674 = vsel %vm67, %v602, 0
  %v677 = vsel %vm67, %v603, 0
  %v680 = vsel %vm67, %v604, 0
  %v683 = vsel %vm67, %v605, 0
  %v686 = vsel %vm67, %v606, 0
  %v689 = vsel %vm67, %v607, 0
  %v692 = vsel %vm67, %v608, 0
  %v695 = vsel %vm67, %v609, 0
  %v698 = vsel %vm67, %v610, 0
  %v701 = vsel %vm67, %v611, 0
  %703 = vmatprep.subr.bf16.mxu0 0
  %704 = vmatpush1.bf16.msra.mxu0 0
  %705 = vmatprep.subr.bf16.mxu0 0
  %706 = vmatpush1.bf16.msra.mxu0 0
  %707 = vmatprep.subr.bf16.mxu0 0
  %708 = vmatpush1.bf16.msra.mxu0 0
  %709 = vmatprep.subr.bf16.mxu0 0
  %710 = vmatpush1.bf16.msra.mxu0 0
  %711 = vmatprep.subr.bf16.mxu0 0
  %712 = vmatpush1.bf16.msra.mxu0 0
  %713 = vmatprep.subr.bf16.mxu0 0
  %714 = vmatpush1.bf16.msra.mxu0 0
  %715 = vmatprep.subr.bf16.mxu0 0
  %716 = vmatpush1.bf16.msra.mxu0 %v625
  %717 = vmatprep.subr.bf16.mxu0 0
  %718 = vmatpush1.bf16.msra.mxu0 %v624
  %719 = vmatprep.subr.bf16.mxu0 0
  %720 = vmatpush2.bf16.msra.mxu0 0
  %721 = vmatprep.subr.bf16.mxu0 0
  %722 = vmatpush2.bf16.msra.mxu0 0
  %723 = vmatprep.subr.bf16.mxu0 0
  %724 = vmatpush2.bf16.msra.mxu0 0
  %725 = vmatprep.subr.bf16.mxu0 0
  %726 = vmatpush2.bf16.msra.mxu0 0
  %727 = vmatprep.subr.bf16.mxu0 0
  %728 = vmatpush2.bf16.msra.mxu0 0
  %729 = vmatprep.subr.bf16.mxu0 0
  %730 = vmatpush2.bf16.msra.mxu0 0
  %731 = vmatprep.subr.bf16.mxu0 0
  %732 = vmatpush2.bf16.msra.mxu0 0
  %733 = vmatprep.subr.bf16.mxu0 0
  %734 = vmatpush2.bf16.msra.mxu0 0
  %735 = vmatprep.mubr.bf16.mxu0 0
  %736 = vmatmul.mubr.bf16.gmra.mxu0 %v629
  %v737 = vpop.f32.mrf.mxu0
  %v738 = vadd.f32 0.0, %v737
  %v739 = vpop.f32.mrf.mxu0
  %v740 = vpop.f32.mrf.mxu0
  %v741 = vadd.f32 0.0, %v740
  %v742 = vpop.f32.mrf.mxu0
  %743 = vmatprep.mubr.bf16.mxu0 0
  %744 = vmatmul.mubr.bf16.gmra.mxu0 %v632
  %v745 = vpop.f32.mrf.mxu0
  %v746 = vadd.f32 0.0, %v745
  %v747 = vpop.f32.mrf.mxu0
  %v748 = vpop.f32.mrf.mxu0
  %v749 = vadd.f32 0.0, %v748
  %v750 = vpop.f32.mrf.mxu0
  %751 = vmatprep.mubr.bf16.mxu0 0
  %752 = vmatmul.mubr.bf16.gmra.mxu0 %v635
  %v753 = vpop.f32.mrf.mxu0
  %v754 = vadd.f32 0.0, %v753
  %v755 = vpop.f32.mrf.mxu0
  %v756 = vpop.f32.mrf.mxu0
  %v757 = vadd.f32 0.0, %v756
  %v758 = vpop.f32.mrf.mxu0
  %759 = vmatprep.mubr.bf16.mxu0 0
  %760 = vmatmul.mubr.bf16.gmra.mxu0 %v638
  %v761 = vpop.f32.mrf.mxu0
  %v762 = vadd.f32 0.0, %v761
  %v763 = vpop.f32.mrf.mxu0
  %v764 = vpop.f32.mrf.mxu0
  %v765 = vadd.f32 0.0, %v764
  %v766 = vpop.f32.mrf.mxu0
  %767 = vmatprep.mubr.bf16.mxu0 0
  %768 = vmatmul.mubr.bf16.gmra.mxu0 %v641
  %v769 = vpop.f32.mrf.mxu0
  %v770 = vadd.f32 0.0, %v769
  %v771 = vpop.f32.mrf.mxu0
  %v772 = vpop.f32.mrf.mxu0
  %v773 = vadd.f32 0.0, %v772
  %v774 = vpop.f32.mrf.mxu0
  %775 = vmatprep.mubr.bf16.mxu0 0
  %776 = vmatmul.mubr.bf16.gmra.mxu0 %v644
  %v777 = vpop.f32.mrf.mxu0
  %v778 = vadd.f32 0.0, %v777
  %v779 = vpop.f32.mrf.mxu0
  %v780 = vpop.f32.mrf.mxu0
  %v781 = vadd.f32 0.0, %v780
  %v782 = vpop.f32.mrf.mxu0
  %783 = vmatprep.mubr.bf16.mxu0 0
  %784 = vmatmul.mubr.bf16.gmra.mxu0 %v647
  %v785 = vpop.f32.mrf.mxu0
  %v786 = vadd.f32 0.0, %v785
  %v787 = vpop.f32.mrf.mxu0
  %v788 = vpop.f32.mrf.mxu0
  %v789 = vadd.f32 0.0, %v788
  %v790 = vpop.f32.mrf.mxu0
  %791 = vmatprep.mubr.bf16.mxu0 0
  %792 = vmatmul.mubr.bf16.gmra.mxu0 %v650
  %v793 = vpop.f32.mrf.mxu0
  %v794 = vadd.f32 0.0, %v793
  %v795 = vpop.f32.mrf.mxu0
  %v796 = vpop.f32.mrf.mxu0
  %v797 = vadd.f32 0.0, %v796
  %v798 = vpop.f32.mrf.mxu0
  %799 = vmatprep.mubr.bf16.mxu0 0
  %800 = vmatmul.mubr.bf16.gmra.mxu0 %v653
  %v801 = vpop.f32.mrf.mxu0
  %v802 = vadd.f32 0.0, %v801
  %v803 = vpop.f32.mrf.mxu0
  %v804 = vpop.f32.mrf.mxu0
  %v805 = vadd.f32 0.0, %v804
  %v806 = vpop.f32.mrf.mxu0
  %807 = vmatprep.mubr.bf16.mxu0 0
  %808 = vmatmul.mubr.bf16.gmra.mxu0 %v656
  %v809 = vpop.f32.mrf.mxu0
  %v810 = vadd.f32 0.0, %v809
  %v811 = vpop.f32.mrf.mxu0
  %v812 = vpop.f32.mrf.mxu0
  %v813 = vadd.f32 0.0, %v812
  %v814 = vpop.f32.mrf.mxu0
  %815 = vmatprep.mubr.bf16.mxu0 0
  %816 = vmatmul.mubr.bf16.gmra.mxu0 %v659
  %v817 = vpop.f32.mrf.mxu0
  %v818 = vadd.f32 0.0, %v817
  %v819 = vpop.f32.mrf.mxu0
  %v820 = vpop.f32.mrf.mxu0
  %v821 = vadd.f32 0.0, %v820
  %v822 = vpop.f32.mrf.mxu0
  %823 = vmatprep.mubr.bf16.mxu0 0
  %824 = vmatmul.mubr.bf16.gmra.mxu0 %v662
  %v825 = vpop.f32.mrf.mxu0
  %v826 = vadd.f32 0.0, %v825
  %v827 = vpop.f32.mrf.mxu0
  %v828 = vpop.f32.mrf.mxu0
  %v829 = vadd.f32 0.0, %v828
  %v830 = vpop.f32.mrf.mxu0
  %831 = vmatprep.mubr.bf16.mxu0 0
  %832 = vmatmul.mubr.bf16.gmra.mxu0 %v665
  %v833 = vpop.f32.mrf.mxu0
  %v834 = vadd.f32 0.0, %v833
  %v835 = vpop.f32.mrf.mxu0
  %v836 = vpop.f32.mrf.mxu0
  %v837 = vadd.f32 0.0, %v836
  %v838 = vpop.f32.mrf.mxu0
  %839 = vmatprep.mubr.bf16.mxu0 0
  %840 = vmatmul.mubr.bf16.gmra.mxu0 %v668
  %v841 = vpop.f32.mrf.mxu0
  %v842 = vadd.f32 0.0, %v841
  %v843 = vpop.f32.mrf.mxu0
  %v844 = vpop.f32.mrf.mxu0
  %v845 = vadd.f32 0.0, %v844
  %v846 = vpop.f32.mrf.mxu0
  %847 = vmatprep.mubr.bf16.mxu0 0
  %848 = vmatmul.mubr.bf16.gmra.mxu0 %v671
  %v849 = vpop.f32.mrf.mxu0
  %v850 = vadd.f32 0.0, %v849
  %v851 = vpop.f32.mrf.mxu0
  %v852 = vpop.f32.mrf.mxu0
  %v853 = vadd.f32 0.0, %v852
  %v854 = vpop.f32.mrf.mxu0
  %855 = vmatprep.mubr.bf16.mxu0 0
  %856 = vmatmul.mubr.bf16.gmra.mxu0 %v674
  %v857 = vpop.f32.mrf.mxu0
  %v858 = vadd.f32 0.0, %v857
  %v859 = vpop.f32.mrf.mxu0
  %v860 = vpop.f32.mrf.mxu0
  %v861 = vadd.f32 0.0, %v860
  %v862 = vpop.f32.mrf.mxu0
  %863 = vmatprep.mubr.bf16.mxu0 0
  %864 = vmatmul.mubr.bf16.gmra.mxu0 %v677
  %v865 = vpop.f32.mrf.mxu0
  %v866 = vadd.f32 0.0, %v865
  %v867 = vpop.f32.mrf.mxu0
  %v868 = vpop.f32.mrf.mxu0
  %v869 = vadd.f32 0.0, %v868
  %v870 = vpop.f32.mrf.mxu0
  %871 = vmatprep.mubr.bf16.mxu0 0
  %872 = vmatmul.mubr.bf16.gmra.mxu0 %v680
  %v873 = vpop.f32.mrf.mxu0
  %v874 = vadd.f32 0.0, %v873
  %v875 = vpop.f32.mrf.mxu0
  %v876 = vpop.f32.mrf.mxu0
  %v877 = vadd.f32 0.0, %v876
  %v878 = vpop.f32.mrf.mxu0
  %879 = vmatprep.mubr.bf16.mxu0 0
  %880 = vmatmul.mubr.bf16.gmra.mxu0 %v683
  %v881 = vpop.f32.mrf.mxu0
  %v882 = vadd.f32 0.0, %v881
  %v883 = vpop.f32.mrf.mxu0
  %v884 = vpop.f32.mrf.mxu0
  %v885 = vadd.f32 0.0, %v884
  %v886 = vpop.f32.mrf.mxu0
  %887 = vmatprep.mubr.bf16.mxu0 0
  %888 = vmatmul.mubr.bf16.gmra.mxu0 %v686
  %v889 = vpop.f32.mrf.mxu0
  %v890 = vadd.f32 0.0, %v889
  %v891 = vpop.f32.mrf.mxu0
  %v892 = vpop.f32.mrf.mxu0
  %v893 = vadd.f32 0.0, %v892
  %v894 = vpop.f32.mrf.mxu0
  %895 = vmatprep.mubr.bf16.mxu0 0
  %896 = vmatmul.mubr.bf16.gmra.mxu0 %v689
  %v897 = vpop.f32.mrf.mxu0
  %v898 = vadd.f32 0.0, %v897
  %v899 = vpop.f32.mrf.mxu0
  %v900 = vpop.f32.mrf.mxu0
  %v901 = vadd.f32 0.0, %v900
  %v902 = vpop.f32.mrf.mxu0
  %903 = vmatprep.mubr.bf16.mxu0 0
  %904 = vmatmul.mubr.bf16.gmra.mxu0 %v692
  %v905 = vpop.f32.mrf.mxu0
  %v906 = vadd.f32 0.0, %v905
  %v907 = vpop.f32.mrf.mxu0
  %v908 = vpop.f32.mrf.mxu0
  %v909 = vadd.f32 0.0, %v908
  %v910 = vpop.f32.mrf.mxu0
  %911 = vmatprep.mubr.bf16.mxu0 0
  %912 = vmatmul.mubr.bf16.gmra.mxu0 %v695
  %v913 = vpop.f32.mrf.mxu0
  %v914 = vadd.f32 0.0, %v913
  %v915 = vpop.f32.mrf.mxu0
  %v916 = vpop.f32.mrf.mxu0
  %v917 = vadd.f32 0.0, %v916
  %v918 = vpop.f32.mrf.mxu0
  %919 = vmatprep.mubr.bf16.mxu0 0
  %920 = vmatmul.mubr.bf16.gmra.mxu0 %v698
  %v921 = vpop.f32.mrf.mxu0
  %v922 = vadd.f32 0.0, %v921
  %v923 = vpop.f32.mrf.mxu0
  %v924 = vpop.f32.mrf.mxu0
  %v925 = vadd.f32 0.0, %v924
  %v926 = vpop.f32.mrf.mxu0
  %927 = vmatprep.mubr.bf16.mxu0 0
  %928 = vmatmul.mubr.bf16.gmra.mxu0 %v701
  %v929 = vpop.f32.mrf.mxu0
  %v930 = vadd.f32 0.0, %v929
  %v931 = vpop.f32.mrf.mxu0
  %v932 = vpop.f32.mrf.mxu0
  %v933 = vpop.f32.mrf.mxu0
  %934 = vdwg.mxu0
  %vm935 = vcmask 130048
  %936 = vst.msk [vmem:[%s4] sm:$0xff] %vm935, %v738
  %937 = vst.msk [vmem:[%s4 + $0x8] sm:$0xff] %vm935, %v741
  %938 = vst.msk [vmem:[%s4 + $0x10] sm:$0xff] %vm935, %v746
  %939 = vst.msk [vmem:[%s4 + $0x18] sm:$0xff] %vm935, %v749
  %940 = vst.msk [vmem:[%s4 + $0x20] sm:$0xff] %vm935, %v754
  %941 = vst.msk [vmem:[%s4 + $0x28] sm:$0xff] %vm935, %v757
  %942 = vst.msk [vmem:[%s4 + $0x30] sm:$0xff] %vm935, %v762
  %943 = vst.msk [vmem:[%s4 + $0x38] sm:$0xff] %vm935, %v765
  %944 = vst.msk [vmem:[%s4 + $0x40] sm:$0xff] %vm935, %v770
  %945 = vst.msk [vmem:[%s4 + $0x48] sm:$0xff] %vm935, %v773
  %946 = vst.msk [vmem:[%s4 + $0x50] sm:$0xff] %vm935, %v778
  %947 = vst.msk [vmem:[%s4 + $0x58] sm:$0xff] %vm935, %v781
  %948 = vst.msk [vmem:[%s4 + $0x60] sm:$0xff] %vm935, %v786
  %949 = vst.msk [vmem:[%s4 + $0x68] sm:$0xff] %vm935, %v789
  %950 = vst.msk [vmem:[%s4 + $0x70] sm:$0xff] %vm935, %v794
  %951 = vst.msk [vmem:[%s4 + $0x78] sm:$0xff] %vm935, %v797
  %952 = vst.msk [vmem:[%s4 + $0x80] sm:$0xff] %vm935, %v802
  %953 = vst.msk [vmem:[%s4 + $0x88] sm:$0xff] %vm935, %v805
  %954 = vst.msk [vmem:[%s4 + $0x90] sm:$0xff] %vm935, %v810
  %955 = vst.msk [vmem:[%s4 + $0x98] sm:$0xff] %vm935, %v813
  %956 = vst.msk [vmem:[%s4 + $0xa0] sm:$0xff] %vm935, %v818
  %957 = vst.msk [vmem:[%s4 + $0xa8] sm:$0xff] %vm935, %v821
  %958 = vst.msk [vmem:[%s4 + $0xb0] sm:$0xff] %vm935, %v826
  %959 = vst.msk [vmem:[%s4 + $0xb8] sm:$0xff] %vm935, %v829
  %960 = vst.msk [vmem:[%s4 + $0xc0] sm:$0xff] %vm935, %v834
  %961 = vst.msk [vmem:[%s4 + $0xc8] sm:$0xff] %vm935, %v837
  %962 = vst.msk [vmem:[%s4 + $0xd0] sm:$0xff] %vm935, %v842
  %963 = vst.msk [vmem:[%s4 + $0xd8] sm:$0xff] %vm935, %v845
  %964 = vst.msk [vmem:[%s4 + $0xe0] sm:$0xff] %vm935, %v850
  %965 = vst.msk [vmem:[%s4 + $0xe8] sm:$0xff] %vm935, %v853
  %966 = vst.msk [vmem:[%s4 + $0xf0] sm:$0xff] %vm935, %v858
  %967 = vst.msk [vmem:[%s4 + $0xf8] sm:$0xff] %vm935, %v861
  %968 = vst.msk [vmem:[%s4 + $0x100] sm:$0xff] %vm935, %v866
  %969 = vst.msk [vmem:[%s4 + $0x108] sm:$0xff] %vm935, %v869
  %970 = vst.msk [vmem:[%s4 + $0x110] sm:$0xff] %vm935, %v874
  %971 = vst.msk [vmem:[%s4 + $0x118] sm:$0xff] %vm935, %v877
  %972 = vst.msk [vmem:[%s4 + $0x120] sm:$0xff] %vm935, %v882
  %973 = vst.msk [vmem:[%s4 + $0x128] sm:$0xff] %vm935, %v885
  %974 = vst.msk [vmem:[%s4 + $0x130] sm:$0xff] %vm935, %v890
  %975 = vst.msk [vmem:[%s4 + $0x138] sm:$0xff] %vm935, %v893
  %976 = vst.msk [vmem:[%s4 + $0x140] sm:$0xff] %vm935, %v898
  %977 = vst.msk [vmem:[%s4 + $0x148] sm:$0xff] %vm935, %v901
  %978 = vst.msk [vmem:[%s4 + $0x150] sm:$0xff] %vm935, %v906
  %979 = vst.msk [vmem:[%s4 + $0x158] sm:$0xff] %vm935, %v909
  %980 = vst.msk [vmem:[%s4 + $0x160] sm:$0xff] %vm935, %v914
  %981 = vst.msk [vmem:[%s4 + $0x168] sm:$0xff] %vm935, %v917
  %982 = vst.msk [vmem:[%s4 + $0x170] sm:$0xff] %vm935, %v922
  %983 = vst.msk [vmem:[%s4 + $0x178] sm:$0xff] %vm935, %v925
  %984 = vst.msk [vmem:[%s4 + $0x180] sm:$0xff] %vm935, %v930
  // Predicated region
  $region18: #{mnist_generator_forward.8} parent=0 // pred_check
    _
  $region19: #{mnist_generator_forward.8} parent=0 // pred_check_branch
    %986 = sbr.rel (0) target = $region21
  $region20: #{mnist_generator_forward.8} parent=0 // pred_region
    _
  $region21: #{mnist_generator_forward.8} parent=0 // pred_fallthru
    _
  // Predicated region
  $region22: #{mnist_generator_forward.8} parent=0 // pred_check
    _
  $region23: #{mnist_generator_forward.8} parent=0 // pred_check_branch
    %988 = sbr.rel (0) target = $region25
  $region24: #{mnist_generator_forward.8} parent=0 // pred_region
    _
  $region25: #{mnist_generator_forward.8} parent=0 // pred_fallthru
    _

// kernel: mnist_generator_forward.9
$region0: #{mnist_generator_forward.9}
  #allocation0 [shape = 'u32[]', space=smem, size = 0x4, offset = 0x4, fixed_abs, tag = 'smem constant byte address 0x4 - core index']
  #allocation1 [shape = 'u32[144,128]{1,0:T(1,128)}', space=vmem, size = 0x12000, scoped, tag = 'internal scratch']
  %s0 = inlined_call_operand.vmem [shape: f32[2,784], index: 0, kind: input, shape index: {}]
  %s1 = inlined_call_operand.vmem [shape: f32[2,784], index: 1, kind: output, shape index: {}]
  %s2 = sld [smem:[#allocation0]]
  $region14: #{mnist_generator_forward.9} parent=0
    _
  %s4 = ssub.s32 1, %s2
  %s5 = scalar_select 0, %s4, %s2
  // Predicated region
  $region2: #{mnist_generator_forward.9} parent=0 // pred_check
    _
  $region3: #{mnist_generator_forward.9} parent=0 // pred_check_branch
    %7 = sbr.rel (0) target = $region5
  $region4: #{mnist_generator_forward.9} parent=0 // pred_region
    _
  $region5: #{mnist_generator_forward.9} parent=0 // pred_fallthru
    _
  %v8 = vld [vmem:[%s0] sm:$0xff]
  %v9 = vld [vmem:[%s0 + $0x8] sm:$0x3f]
  %v10 = vtanh.pop %v8
  %v11 = vtanh.pop %v9
  %12 = vst [vmem:[%s1] sm:$0xff] %v10
  %vm13 = vcmask 1041408
  %vm14 = vcmask 1043458
  %vm15 = vmor %vm14, %vm13
  %vm16 = vcmask 128004
  %vm17 = vmor %vm16, %vm15
  %18 = vst.msk [vmem:[%s1 + $0x8] sm:$0x3f] %vm17, %v11
  // Predicated region
  $region6: #{mnist_generator_forward.9} parent=0 // pred_check
    _
  $region7: #{mnist_generator_forward.9} parent=0 // pred_check_branch
    %20 = sbr.rel (0) target = $region9
  $region8: #{mnist_generator_forward.9} parent=0 // pred_region
    _
  $region9: #{mnist_generator_forward.9} parent=0 // pred_fallthru
    _
  // Predicated region
  $region10: #{mnist_generator_forward.9} parent=0 // pred_check
    _
  $region11: #{mnist_generator_forward.9} parent=0 // pred_check_branch
    %22 = sbr.rel (0) target = $region13
  $region12: #{mnist_generator_forward.9} parent=0 // pred_region
    _
  $region13: #{mnist_generator_forward.9} parent=0 // pred_fallthru
    _

</llo_original>
